<compile_context>
chip_gen: v7x
topology: tpu7x:2x2x1
jax: 0.10.0
libtpu: 0.0.40
codegen_flags: <defaults>
</compile_context>

<pallas_src>
import functools

import jax
import jax.numpy as jnp
from jax.experimental import pallas as pl
from jax.experimental.pallas import tpu as pltpu

# ---------------- static config (small synthetic version of __init__) ----------------
ATTR_NUM   = 8          # attr_num
DIM        = 32         # args.mmformer_dim
NUM_HEADS  = 4          # heads of the last ViT block
HEAD_DIM   = DIM // NUM_HEADS
HIDDEN     = 4 * DIM    # ViT MLP ratio 4
L_TOKENS   = 16         # tokens per frame from the side nets (197 in the real model)
FRAMES     = 4          # args.frames
NUM_SELECT = 5          # len(temporal_interact_map)
NP         = FRAMES + NUM_SELECT
TEXT_DIM   = 512        # fixed: nn.Linear(512, dim)
SEQ        = ATTR_NUM + L_TOKENS   # 24, multiple of 8 -> sublane-aligned reshapes
LN_EPS     = 1e-6
BN_EPS     = 1e-5


# ---------------------------------- fused kernel ----------------------------------
def _fused_kernel(B,
                  agg_ref, planes_ref, text_ref, wword_ref,
                  wqkv_ref, bqkv_ref, wproj_ref, ln_ref, bias_ref,
                  fc1w_ref, fc1b_ref, fc2w_ref, fc2b_ref,
                  clsw_ref, headp_ref,
                  out_ref):
    f32 = jnp.float32
    BS = B * SEQ

    # -------- build x = cat([word_embed(text).expand(B), Conv1d(k=1) fusion], dim=1) --------
    # word_embed is batch-invariant (PyTorch .expand): computed exactly once.
    textual = jnp.dot(text_ref[...], wword_ref[...],
                      preferred_element_type=f32) + bias_ref[0]          # (ATTR_NUM, DIM)

    # Conv1d(C_in, 1, k=1) over frames (spatial) / selected layers (temporal) is a
    # weighted sum of the NP stacked planes plus both scalar biases (the spatial and
    # temporal fusions are added together in the reference forward).
    fuse = jnp.zeros((B * L_TOKENS, DIM), f32) + (agg_ref[NP] + agg_ref[NP + 1])
    for p in range(NP):                                                  # static, unrolled
        fuse = fuse + agg_ref[p] * planes_ref[p]                         # (B*L, DIM)
    fuse3 = fuse.reshape(B, L_TOKENS, DIM)                               # free (L % 8 == 0)

    x3 = jnp.concatenate(
        [jnp.broadcast_to(textual[None], (B, ATTR_NUM, DIM)), fuse3], axis=1)  # (B, SEQ, DIM)
    x = x3.reshape(BS, DIM)                                              # free (SEQ % 8 == 0)

    def layernorm(v, gi, bi):
        mu = jnp.mean(v, axis=-1, keepdims=True)
        var = jnp.mean(jnp.square(v - mu), axis=-1, keepdims=True)
        return (v - mu) * jax.lax.rsqrt(var + LN_EPS) * ln_ref[gi] + ln_ref[bi]

    # ----------------------------- ViT block: MHSA (pre-norm) -----------------------------
    h = layernorm(x, 0, 1)                                               # (BS, DIM)
    scale = HEAD_DIM ** -0.5
    attn = jnp.zeros((BS, DIM), f32)
    for hh in range(NUM_HEADS):                                          # static, unrolled
        qh = jnp.dot(h, wqkv_ref[hh], preferred_element_type=f32) + bqkv_ref[hh]
        kh = jnp.dot(h, wqkv_ref[NUM_HEADS + hh],
                     preferred_element_type=f32) + bqkv_ref[NUM_HEADS + hh]
        vh = jnp.dot(h, wqkv_ref[2 * NUM_HEADS + hh],
                     preferred_element_type=f32) + bqkv_ref[2 * NUM_HEADS + hh]
        q3 = qh.reshape(B, SEQ, HEAD_DIM)                                # free reshapes
        k3 = kh.reshape(B, SEQ, HEAD_DIM)
        v3 = vh.reshape(B, SEQ, HEAD_DIM)
        s = jnp.einsum('bqd,bkd->bqk', q3, k3, preferred_element_type=f32) * scale
        s = s - jnp.max(s, axis=-1, keepdims=True)
        e = jnp.exp(s)
        p = e * pl.reciprocal(jnp.sum(e, axis=-1, keepdims=True), approx=True)
        o3 = jnp.einsum('bqk,bkd->bqd', p, v3, preferred_element_type=f32)
        # proj(concat_h o_h) == sum_h o_h @ proj_w[h*HD:(h+1)*HD, :]  -> no concat needed.
        attn = attn + jnp.dot(o3.reshape(BS, HEAD_DIM), wproj_ref[hh],
                              preferred_element_type=f32)
    x = x + attn + bias_ref[1]                                           # drop_path == identity (eval)

    # ----------------------------- ViT block: MLP -----------------------------
    h2 = layernorm(x, 2, 3)
    h2 = jnp.dot(h2, fc1w_ref[...], preferred_element_type=f32) + fc1b_ref[...]
    # TODO(synk): timm's Block uses exact erf-GELU; tanh-approx GELU is used here
    # because erf has no guaranteed Mosaic lowering (small numeric difference).
    h2 = jax.nn.gelu(h2, approximate=True)
    h2 = jnp.dot(h2, fc2w_ref[...], preferred_element_type=f32) + bias_ref[2]
    x = x + h2

    # ----------------- final LayerNorm + per-attribute heads + BatchNorm1d(eval) -----------------
    y = layernorm(x, 4, 5).reshape(B, SEQ, DIM)                          # self.norm
    xa = y[:, :ATTR_NUM, :]                                              # (B, ATTR, DIM), aligned slice
    logits = jnp.sum(xa * clsw_ref[...][None, :, :], axis=-1) + headp_ref[0]      # (B, ATTR)
    logits = (logits - headp_ref[3]) * jax.lax.rsqrt(headp_ref[4] + BN_EPS) \
             * headp_ref[1] + headp_ref[2]
    out_ref[...] = logits


# ---------------------------------- wrapper ----------------------------------
def transformer_classifier_forward(spatial_feats, temporal_feats, text_feats, params):
    """spatial_feats: (B*F, L, D)  temporal_feats: (NS, B, L, D)  text_feats: (attr_num, 512)."""
    B = spatial_feats.shape[0] // FRAMES

    # --- glue: stack frame / selected-layer planes feature-last as (NP, B*L, D) ---
    spa_planes = spatial_feats.reshape(B, FRAMES, L_TOKENS, DIM)
    spa_planes = jnp.transpose(spa_planes, (1, 0, 2, 3)).reshape(FRAMES, B * L_TOKENS, DIM)
    tem_planes = temporal_feats.reshape(NUM_SELECT, B * L_TOKENS, DIM)
    planes = jnp.concatenate([spa_planes, tem_planes], axis=0)           # (NP, B*L, D)

    # --- host-side parameter packing: fewer DMA descriptors, and per-head weight
    #     slicing here avoids unaligned lane-offset slices / concat inside the kernel ---
    agg = jnp.concatenate([params["spa_w"], params["tem_w"],
                           params["spa_b"], params["tem_b"]], axis=0)    # (NP+2,) SMEM scalars
    w_heads = params["qkv_w"].reshape(DIM, 3, NUM_HEADS, HEAD_DIM)
    w_heads = jnp.transpose(w_heads, (1, 2, 0, 3)).reshape(3 * NUM_HEADS, DIM, HEAD_DIM)
    b_heads = params["qkv_b"].reshape(1, 3, NUM_HEADS, HEAD_DIM)
    b_heads = jnp.transpose(b_heads, (1, 2, 0, 3)).reshape(3 * NUM_HEADS, 1, HEAD_DIM)
    wp_heads = params["proj_w"].reshape(NUM_HEADS, HEAD_DIM, DIM)
    ln_pack = jnp.stack([params["ln1_g"], params["ln1_b"],
                         params["ln2_g"], params["ln2_b"],
                         params["lnf_g"], params["lnf_b"]], axis=0)      # (6, 1, DIM)
    bias_pack = jnp.stack([params["b_word"], params["proj_b"], params["fc2_b"]], axis=0)
    head_pack = jnp.stack([params["cls_b"], params["bn_g"], params["bn_b"],
                           params["bn_m"], params["bn_v"]], axis=0)      # (5, 1, ATTR)

    vmem = pl.BlockSpec(memory_space=pltpu.MemorySpace.VMEM)
    smem = pl.BlockSpec(memory_space=pltpu.MemorySpace.SMEM)

    # Single fused kernel: x / block / head all stay on-chip (no intermediate HBM
    # round trips, one launch), batch folded into the matmul M dimension (B*SEQ rows).
    # TODO(synk): at production batch sizes, add a batch-chunk grid axis marked
    # "parallel" so v7x's second TensorCore takes half the batch; at B=2 a single
    # invocation has the lowest overhead.
    return pl.pallas_call(
        functools.partial(_fused_kernel, B),
        out_shape=jax.ShapeDtypeStruct((B, ATTR_NUM), jnp.float32),
        in_specs=[smem] + [vmem] * 14,
        out_specs=vmem,
    )(agg, planes, text_feats, params["w_word"],
      w_heads, b_heads, wp_heads, ln_pack, bias_pack,
      params["fc1_w"], params["fc1_b"], params["fc2_w"], params["fc2_b"],
      params["cls_w"], head_pack)


# ------------------------------ deterministic params ------------------------------
def init_params(key):
    ks = jax.random.split(key, 10)
    n = lambda k, shape: 0.02 * jax.random.normal(k, shape, jnp.float32)
    p = {
        "w_word": n(ks[0], (TEXT_DIM, DIM)), "b_word": jnp.zeros((1, DIM), jnp.float32),
        "spa_w": n(ks[1], (FRAMES,)), "spa_b": jnp.zeros((1,), jnp.float32),
        "tem_w": n(ks[2], (NUM_SELECT,)), "tem_b": jnp.zeros((1,), jnp.float32),
        "ln1_g": jnp.ones((1, DIM), jnp.float32), "ln1_b": jnp.zeros((1, DIM), jnp.float32),
        "qkv_w": n(ks[3], (DIM, 3 * DIM)), "qkv_b": jnp.zeros((1, 3 * DIM), jnp.float32),
        "proj_w": n(ks[4], (DIM, DIM)), "proj_b": jnp.zeros((1, DIM), jnp.float32),
        "ln2_g": jnp.ones((1, DIM), jnp.float32), "ln2_b": jnp.zeros((1, DIM), jnp.float32),
        "fc1_w": n(ks[5], (DIM, HIDDEN)), "fc1_b": jnp.zeros((1, HIDDEN), jnp.float32),
        "fc2_w": n(ks[6], (HIDDEN, DIM)), "fc2_b": jnp.zeros((1, DIM), jnp.float32),
        "lnf_g": jnp.ones((1, DIM), jnp.float32), "lnf_b": jnp.zeros((1, DIM), jnp.float32),
        "cls_w": n(ks[7], (ATTR_NUM, DIM)), "cls_b": jnp.zeros((1, ATTR_NUM), jnp.float32),
        # BatchNorm1d(attr_num) defaults; eval-mode running statistics.
        "bn_g": jnp.ones((1, ATTR_NUM), jnp.float32), "bn_b": jnp.zeros((1, ATTR_NUM), jnp.float32),
        "bn_m": jnp.zeros((1, ATTR_NUM), jnp.float32), "bn_v": jnp.ones((1, ATTR_NUM), jnp.float32),
    }
    return p


if __name__ == "__main__":
    key = jax.random.PRNGKey(0)
    k1, k2, k3, kp = jax.random.split(key, 4)
    B = 2
    # Synthetic stand-ins for the side-net / CLIP-text outputs (external modules).
    spatial_feats = jax.random.normal(k1, (B * FRAMES, L_TOKENS, DIM), jnp.float32)
    temporal_feats = jax.random.normal(k2, (NUM_SELECT, B, L_TOKENS, DIM), jnp.float32)
    text_feats = jax.random.normal(k3, (ATTR_NUM, TEXT_DIM), jnp.float32)
    params = init_params(kp)

    fwd = jax.jit(transformer_classifier_forward)
    logits = fwd(spatial_feats, temporal_feats, text_feats, params)
    logits = jax.block_until_ready(logits)
    assert logits.shape == (B, ATTR_NUM) and logits.dtype == jnp.float32
    print("KERNEL_OK")
</pallas_src>

<mosaic_0001>
module attributes {stable_mosaic.version = 11 : i64} {
  func.func @_fused_kernel(%arg0: memref<11xf32, #tpu.memory_space<smem>>, %arg1: memref<9x32x32xf32, #tpu.memory_space<vmem>>, %arg2: memref<8x512xf32, #tpu.memory_space<vmem>>, %arg3: memref<512x32xf32, #tpu.memory_space<vmem>>, %arg4: memref<12x32x8xf32, #tpu.memory_space<vmem>>, %arg5: memref<12x1x8xf32, #tpu.memory_space<vmem>>, %arg6: memref<4x8x32xf32, #tpu.memory_space<vmem>>, %arg7: memref<6x1x32xf32, #tpu.memory_space<vmem>>, %arg8: memref<3x1x32xf32, #tpu.memory_space<vmem>>, %arg9: memref<32x128xf32, #tpu.memory_space<vmem>>, %arg10: memref<1x128xf32, #tpu.memory_space<vmem>>, %arg11: memref<128x32xf32, #tpu.memory_space<vmem>>, %arg12: memref<1x32xf32, #tpu.memory_space<vmem>>, %arg13: memref<8x32xf32, #tpu.memory_space<vmem>>, %arg14: memref<5x1x8xf32, #tpu.memory_space<vmem>>, %arg15: memref<2x8xf32, #tpu.memory_space<vmem>>) attributes {dimension_semantics = [], scalar_prefetch = 0 : i64, scratch_operands = 0 : i64, tpu.core_type = #tpu.core_type<tc>} {
    %c0 = arith.constant 0 : index
    %c0_0 = arith.constant 0 : index
    %0 = vector.load %arg2[%c0, %c0_0] : memref<8x512xf32, #tpu.memory_space<vmem>>, vector<8x512xf32>
    %c0_1 = arith.constant 0 : index
    %c0_2 = arith.constant 0 : index
    %1 = vector.load %arg3[%c0_1, %c0_2] : memref<512x32xf32, #tpu.memory_space<vmem>>, vector<512x32xf32>
    %cst = arith.constant dense<0.000000e+00> : vector<8x32xf32>
    %2 = tpu.matmul %0, %1, %cst {dimension_numbers = #tpu.dot_dimension_numbers<[1], [0], [0], [1], [0, 0, 1, 1], [], []>} : vector<8x512xf32>, vector<512x32xf32>, vector<8x32xf32> -> vector<8x32xf32>
    %c0_3 = arith.constant 0 : index
    %c0_4 = arith.constant 0 : index
    %c0_5 = arith.constant 0 : index
    %3 = vector.load %arg8[%c0_3, %c0_4, %c0_5] : memref<3x1x32xf32, #tpu.memory_space<vmem>>, vector<1x1x32xf32>
    %4 = vector.shape_cast %3 : vector<1x1x32xf32> to vector<1x32xf32>
    %5 = vector.broadcast %4 : vector<1x32xf32> to vector<8x32xf32>
    %6 = arith.addf %2, %5 : vector<8x32xf32>
    %cst_6 = arith.constant 0.000000e+00 : f32
    %7 = vector.broadcast %cst_6 : f32 to vector<32x32xf32>
    %c9 = arith.constant 9 : index
    %8 = memref.load %arg0[%c9] : memref<11xf32, #tpu.memory_space<smem>>
    %c10 = arith.constant 10 : index
    %9 = memref.load %arg0[%c10] : memref<11xf32, #tpu.memory_space<smem>>
    %10 = arith.addf %8, %9 : f32
    %11 = vector.broadcast %10 : f32 to vector<32x32xf32>
    %12 = arith.addf %7, %11 : vector<32x32xf32>
    %c0_7 = arith.constant 0 : index
    %13 = memref.load %arg0[%c0_7] : memref<11xf32, #tpu.memory_space<smem>>
    %c0_8 = arith.constant 0 : index
    %c0_9 = arith.constant 0 : index
    %c0_10 = arith.constant 0 : index
    %14 = vector.load %arg1[%c0_8, %c0_9, %c0_10] : memref<9x32x32xf32, #tpu.memory_space<vmem>>, vector<1x32x32xf32>
    %15 = vector.shape_cast %14 : vector<1x32x32xf32> to vector<32x32xf32>
    %16 = vector.broadcast %13 : f32 to vector<32x32xf32>
    %17 = arith.mulf %16, %15 : vector<32x32xf32>
    %18 = arith.addf %12, %17 : vector<32x32xf32>
    %c1 = arith.constant 1 : index
    %19 = memref.load %arg0[%c1] : memref<11xf32, #tpu.memory_space<smem>>
    %c1_11 = arith.constant 1 : index
    %c0_12 = arith.constant 0 : index
    %c0_13 = arith.constant 0 : index
    %20 = vector.load %arg1[%c1_11, %c0_12, %c0_13] : memref<9x32x32xf32, #tpu.memory_space<vmem>>, vector<1x32x32xf32>
    %21 = vector.shape_cast %20 : vector<1x32x32xf32> to vector<32x32xf32>
    %22 = vector.broadcast %19 : f32 to vector<32x32xf32>
    %23 = arith.mulf %22, %21 : vector<32x32xf32>
    %24 = arith.addf %18, %23 : vector<32x32xf32>
    %c2 = arith.constant 2 : index
    %25 = memref.load %arg0[%c2] : memref<11xf32, #tpu.memory_space<smem>>
    %c2_14 = arith.constant 2 : index
    %c0_15 = arith.constant 0 : index
    %c0_16 = arith.constant 0 : index
    %26 = vector.load %arg1[%c2_14, %c0_15, %c0_16] : memref<9x32x32xf32, #tpu.memory_space<vmem>>, vector<1x32x32xf32>
    %27 = vector.shape_cast %26 : vector<1x32x32xf32> to vector<32x32xf32>
    %28 = vector.broadcast %25 : f32 to vector<32x32xf32>
    %29 = arith.mulf %28, %27 : vector<32x32xf32>
    %30 = arith.addf %24, %29 : vector<32x32xf32>
    %c3 = arith.constant 3 : index
    %31 = memref.load %arg0[%c3] : memref<11xf32, #tpu.memory_space<smem>>
    %c3_17 = arith.constant 3 : index
    %c0_18 = arith.constant 0 : index
    %c0_19 = arith.constant 0 : index
    %32 = vector.load %arg1[%c3_17, %c0_18, %c0_19] : memref<9x32x32xf32, #tpu.memory_space<vmem>>, vector<1x32x32xf32>
    %33 = vector.shape_cast %32 : vector<1x32x32xf32> to vector<32x32xf32>
    %34 = vector.broadcast %31 : f32 to vector<32x32xf32>
    %35 = arith.mulf %34, %33 : vector<32x32xf32>
    %36 = arith.addf %30, %35 : vector<32x32xf32>
    %c4 = arith.constant 4 : index
    %37 = memref.load %arg0[%c4] : memref<11xf32, #tpu.memory_space<smem>>
    %c4_20 = arith.constant 4 : index
    %c0_21 = arith.constant 0 : index
    %c0_22 = arith.constant 0 : index
    %38 = vector.load %arg1[%c4_20, %c0_21, %c0_22] : memref<9x32x32xf32, #tpu.memory_space<vmem>>, vector<1x32x32xf32>
    %39 = vector.shape_cast %38 : vector<1x32x32xf32> to vector<32x32xf32>
    %40 = vector.broadcast %37 : f32 to vector<32x32xf32>
    %41 = arith.mulf %40, %39 : vector<32x32xf32>
    %42 = arith.addf %36, %41 : vector<32x32xf32>
    %c5 = arith.constant 5 : index
    %43 = memref.load %arg0[%c5] : memref<11xf32, #tpu.memory_space<smem>>
    %c5_23 = arith.constant 5 : index
    %c0_24 = arith.constant 0 : index
    %c0_25 = arith.constant 0 : index
    %44 = vector.load %arg1[%c5_23, %c0_24, %c0_25] : memref<9x32x32xf32, #tpu.memory_space<vmem>>, vector<1x32x32xf32>
    %45 = vector.shape_cast %44 : vector<1x32x32xf32> to vector<32x32xf32>
    %46 = vector.broadcast %43 : f32 to vector<32x32xf32>
    %47 = arith.mulf %46, %45 : vector<32x32xf32>
    %48 = arith.addf %42, %47 : vector<32x32xf32>
    %c6 = arith.constant 6 : index
    %49 = memref.load %arg0[%c6] : memref<11xf32, #tpu.memory_space<smem>>
    %c6_26 = arith.constant 6 : index
    %c0_27 = arith.constant 0 : index
    %c0_28 = arith.constant 0 : index
    %50 = vector.load %arg1[%c6_26, %c0_27, %c0_28] : memref<9x32x32xf32, #tpu.memory_space<vmem>>, vector<1x32x32xf32>
    %51 = vector.shape_cast %50 : vector<1x32x32xf32> to vector<32x32xf32>
    %52 = vector.broadcast %49 : f32 to vector<32x32xf32>
    %53 = arith.mulf %52, %51 : vector<32x32xf32>
    %54 = arith.addf %48, %53 : vector<32x32xf32>
    %c7 = arith.constant 7 : index
    %55 = memref.load %arg0[%c7] : memref<11xf32, #tpu.memory_space<smem>>
    %c7_29 = arith.constant 7 : index
    %c0_30 = arith.constant 0 : index
    %c0_31 = arith.constant 0 : index
    %56 = vector.load %arg1[%c7_29, %c0_30, %c0_31] : memref<9x32x32xf32, #tpu.memory_space<vmem>>, vector<1x32x32xf32>
    %57 = vector.shape_cast %56 : vector<1x32x32xf32> to vector<32x32xf32>
    %58 = vector.broadcast %55 : f32 to vector<32x32xf32>
    %59 = arith.mulf %58, %57 : vector<32x32xf32>
    %60 = arith.addf %54, %59 : vector<32x32xf32>
    %c8 = arith.constant 8 : index
    %61 = memref.load %arg0[%c8] : memref<11xf32, #tpu.memory_space<smem>>
    %c8_32 = arith.constant 8 : index
    %c0_33 = arith.constant 0 : index
    %c0_34 = arith.constant 0 : index
    %62 = vector.load %arg1[%c8_32, %c0_33, %c0_34] : memref<9x32x32xf32, #tpu.memory_space<vmem>>, vector<1x32x32xf32>
    %63 = vector.shape_cast %62 : vector<1x32x32xf32> to vector<32x32xf32>
    %64 = vector.broadcast %61 : f32 to vector<32x32xf32>
    %65 = arith.mulf %64, %63 : vector<32x32xf32>
    %66 = arith.addf %60, %65 : vector<32x32xf32>
    %67 = vector.shape_cast %66 : vector<32x32xf32> to vector<2x16x32xf32>
    %68 = vector.shape_cast %6 : vector<8x32xf32> to vector<1x8x32xf32>
    %69 = vector.shape_cast %68 : vector<1x8x32xf32> to vector<1x8x32xf32>
    %70 = vector.broadcast %69 : vector<1x8x32xf32> to vector<2x8x32xf32>
    %71 = tpu.concatenate %70, %67 in 1 : vector<2x8x32xf32>, vector<2x16x32xf32> -> vector<2x24x32xf32>
    %72 = vector.shape_cast %71 : vector<2x24x32xf32> to vector<48x32xf32>
    %cst_35 = arith.constant dense<0.000000e+00> : vector<48xf32>
    %73 = vector.multi_reduction <add>, %72, %cst_35 [1] : vector<48x32xf32> to vector<48xf32>
    %74 = vector.shape_cast %73 : vector<48xf32> to vector<48x1xf32>
    %cst_36 = arith.constant 3.200000e+01 : f32
    %75 = vector.broadcast %cst_36 : f32 to vector<48x1xf32>
    %76 = arith.divf %74, %75 : vector<48x1xf32>
    %77 = vector.broadcast %76 : vector<48x1xf32> to vector<48x32xf32>
    %78 = arith.subf %72, %77 : vector<48x32xf32>
    %79 = arith.mulf %78, %78 : vector<48x32xf32>
    %cst_37 = arith.constant dense<0.000000e+00> : vector<48xf32>
    %80 = vector.multi_reduction <add>, %79, %cst_37 [1] : vector<48x32xf32> to vector<48xf32>
    %81 = vector.shape_cast %80 : vector<48xf32> to vector<48x1xf32>
    %cst_38 = arith.constant 3.200000e+01 : f32
    %82 = vector.broadcast %cst_38 : f32 to vector<48x1xf32>
    %83 = arith.divf %81, %82 : vector<48x1xf32>
    %84 = vector.broadcast %76 : vector<48x1xf32> to vector<48x32xf32>
    %85 = arith.subf %72, %84 : vector<48x32xf32>
    %cst_39 = arith.constant 9.99999997E-7 : f32
    %86 = vector.broadcast %cst_39 : f32 to vector<48x1xf32>
    %87 = arith.addf %83, %86 : vector<48x1xf32>
    %88 = math.rsqrt %87 : vector<48x1xf32>
    %89 = vector.broadcast %88 : vector<48x1xf32> to vector<48x32xf32>
    %90 = arith.mulf %85, %89 : vector<48x32xf32>
    %c0_40 = arith.constant 0 : index
    %c0_41 = arith.constant 0 : index
    %c0_42 = arith.constant 0 : index
    %91 = vector.load %arg7[%c0_40, %c0_41, %c0_42] : memref<6x1x32xf32, #tpu.memory_space<vmem>>, vector<1x1x32xf32>
    %92 = vector.shape_cast %91 : vector<1x1x32xf32> to vector<1x32xf32>
    %93 = vector.broadcast %92 : vector<1x32xf32> to vector<48x32xf32>
    %94 = arith.mulf %90, %93 : vector<48x32xf32>
    %c1_43 = arith.constant 1 : index
    %c0_44 = arith.constant 0 : index
    %c0_45 = arith.constant 0 : index
    %95 = vector.load %arg7[%c1_43, %c0_44, %c0_45] : memref<6x1x32xf32, #tpu.memory_space<vmem>>, vector<1x1x32xf32>
    %96 = vector.shape_cast %95 : vector<1x1x32xf32> to vector<1x32xf32>
    %97 = vector.broadcast %96 : vector<1x32xf32> to vector<48x32xf32>
    %98 = arith.addf %94, %97 : vector<48x32xf32>
    %cst_46 = arith.constant 0.000000e+00 : f32
    %99 = vector.broadcast %cst_46 : f32 to vector<48x32xf32>
    %c0_47 = arith.constant 0 : index
    %c0_48 = arith.constant 0 : index
    %c0_49 = arith.constant 0 : index
    %100 = vector.load %arg4[%c0_47, %c0_48, %c0_49] : memref<12x32x8xf32, #tpu.memory_space<vmem>>, vector<1x32x8xf32>
    %101 = vector.shape_cast %100 : vector<1x32x8xf32> to vector<32x8xf32>
    %cst_50 = arith.constant dense<0.000000e+00> : vector<48x8xf32>
    %102 = tpu.matmul %98, %101, %cst_50 {dimension_numbers = #tpu.dot_dimension_numbers<[1], [0], [0], [1], [0, 0, 1, 1], [], []>} : vector<48x32xf32>, vector<32x8xf32>, vector<48x8xf32> -> vector<48x8xf32>
    %c0_51 = arith.constant 0 : index
    %c0_52 = arith.constant 0 : index
    %c0_53 = arith.constant 0 : index
    %103 = vector.load %arg5[%c0_51, %c0_52, %c0_53] : memref<12x1x8xf32, #tpu.memory_space<vmem>>, vector<1x1x8xf32>
    %104 = vector.shape_cast %103 : vector<1x1x8xf32> to vector<1x8xf32>
    %105 = vector.broadcast %104 : vector<1x8xf32> to vector<48x8xf32>
    %106 = arith.addf %102, %105 : vector<48x8xf32>
    %c4_54 = arith.constant 4 : index
    %c0_55 = arith.constant 0 : index
    %c0_56 = arith.constant 0 : index
    %107 = vector.load %arg4[%c4_54, %c0_55, %c0_56] : memref<12x32x8xf32, #tpu.memory_space<vmem>>, vector<1x32x8xf32>
    %108 = vector.shape_cast %107 : vector<1x32x8xf32> to vector<32x8xf32>
    %cst_57 = arith.constant dense<0.000000e+00> : vector<48x8xf32>
    %109 = tpu.matmul %98, %108, %cst_57 {dimension_numbers = #tpu.dot_dimension_numbers<[1], [0], [0], [1], [0, 0, 1, 1], [], []>} : vector<48x32xf32>, vector<32x8xf32>, vector<48x8xf32> -> vector<48x8xf32>
    %c4_58 = arith.constant 4 : index
    %c0_59 = arith.constant 0 : index
    %c0_60 = arith.constant 0 : index
    %110 = vector.load %arg5[%c4_58, %c0_59, %c0_60] : memref<12x1x8xf32, #tpu.memory_space<vmem>>, vector<1x1x8xf32>
    %111 = vector.shape_cast %110 : vector<1x1x8xf32> to vector<1x8xf32>
    %112 = vector.broadcast %111 : vector<1x8xf32> to vector<48x8xf32>
    %113 = arith.addf %109, %112 : vector<48x8xf32>
    %c8_61 = arith.constant 8 : index
    %c0_62 = arith.constant 0 : index
    %c0_63 = arith.constant 0 : index
    %114 = vector.load %arg4[%c8_61, %c0_62, %c0_63] : memref<12x32x8xf32, #tpu.memory_space<vmem>>, vector<1x32x8xf32>
    %115 = vector.shape_cast %114 : vector<1x32x8xf32> to vector<32x8xf32>
    %cst_64 = arith.constant dense<0.000000e+00> : vector<48x8xf32>
    %116 = tpu.matmul %98, %115, %cst_64 {dimension_numbers = #tpu.dot_dimension_numbers<[1], [0], [0], [1], [0, 0, 1, 1], [], []>} : vector<48x32xf32>, vector<32x8xf32>, vector<48x8xf32> -> vector<48x8xf32>
    %c8_65 = arith.constant 8 : index
    %c0_66 = arith.constant 0 : index
    %c0_67 = arith.constant 0 : index
    %117 = vector.load %arg5[%c8_65, %c0_66, %c0_67] : memref<12x1x8xf32, #tpu.memory_space<vmem>>, vector<1x1x8xf32>
    %118 = vector.shape_cast %117 : vector<1x1x8xf32> to vector<1x8xf32>
    %119 = vector.broadcast %118 : vector<1x8xf32> to vector<48x8xf32>
    %120 = arith.addf %116, %119 : vector<48x8xf32>
    %121 = vector.shape_cast %106 : vector<48x8xf32> to vector<2x24x8xf32>
    %122 = vector.shape_cast %113 : vector<48x8xf32> to vector<2x24x8xf32>
    %123 = vector.shape_cast %120 : vector<48x8xf32> to vector<2x24x8xf32>
    "tpu.trace_start"() <{level = 10 : i32, message = "bqd,bkd->bqk"}> : () -> ()
    %cst_68 = arith.constant dense<0.000000e+00> : vector<2x24x24xf32>
    %124 = tpu.matmul %121, %122, %cst_68 {dimension_numbers = #tpu.dot_dimension_numbers<[2], [2], [1], [1], [0, 0, 0, 1, 1, 1], [0], [0]>} : vector<2x24x8xf32>, vector<2x24x8xf32>, vector<2x24x24xf32> -> vector<2x24x24xf32>
    "tpu.trace_stop"() : () -> ()
    %cst_69 = arith.constant 0.353553385 : f32
    %125 = vector.broadcast %cst_69 : f32 to vector<2x24x24xf32>
    %126 = arith.mulf %124, %125 : vector<2x24x24xf32>
    %cst_70 = arith.constant dense<0xFF800000> : vector<2x24xf32>
    %127 = vector.multi_reduction <maximumf>, %126, %cst_70 [2] : vector<2x24x24xf32> to vector<2x24xf32>
    %128 = vector.shape_cast %127 : vector<2x24xf32> to vector<2x24x1xf32>
    %129 = vector.broadcast %128 : vector<2x24x1xf32> to vector<2x24x24xf32>
    %130 = arith.subf %126, %129 : vector<2x24x24xf32>
    %131 = math.exp %130 : vector<2x24x24xf32>
    %cst_71 = arith.constant dense<0.000000e+00> : vector<2x24xf32>
    %132 = vector.multi_reduction <add>, %131, %cst_71 [2] : vector<2x24x24xf32> to vector<2x24xf32>
    %133 = vector.shape_cast %132 : vector<2x24xf32> to vector<2x24x1xf32>
    %134 = tpu.reciprocal %133 {approx = true} : vector<2x24x1xf32> -> vector<2x24x1xf32>
    %135 = vector.broadcast %134 : vector<2x24x1xf32> to vector<2x24x24xf32>
    %136 = arith.mulf %131, %135 : vector<2x24x24xf32>
    "tpu.trace_start"() <{level = 10 : i32, message = "bqk,bkd->bqd"}> : () -> ()
    %cst_72 = arith.constant dense<0.000000e+00> : vector<2x24x8xf32>
    %137 = tpu.matmul %136, %123, %cst_72 {dimension_numbers = #tpu.dot_dimension_numbers<[2], [1], [1], [2], [0, 0, 0, 1, 1, 2], [0], [0]>} : vector<2x24x24xf32>, vector<2x24x8xf32>, vector<2x24x8xf32> -> vector<2x24x8xf32>
    "tpu.trace_stop"() : () -> ()
    %138 = vector.shape_cast %137 : vector<2x24x8xf32> to vector<48x8xf32>
    %c0_73 = arith.constant 0 : index
    %c0_74 = arith.constant 0 : index
    %c0_75 = arith.constant 0 : index
    %139 = vector.load %arg6[%c0_73, %c0_74, %c0_75] : memref<4x8x32xf32, #tpu.memory_space<vmem>>, vector<1x8x32xf32>
    %140 = vector.shape_cast %139 : vector<1x8x32xf32> to vector<8x32xf32>
    %cst_76 = arith.constant dense<0.000000e+00> : vector<48x32xf32>
    %141 = tpu.matmul %138, %140, %cst_76 {dimension_numbers = #tpu.dot_dimension_numbers<[1], [0], [0], [1], [0, 0, 1, 1], [], []>} : vector<48x8xf32>, vector<8x32xf32>, vector<48x32xf32> -> vector<48x32xf32>
    %142 = arith.addf %99, %141 : vector<48x32xf32>
    %c1_77 = arith.constant 1 : index
    %c0_78 = arith.constant 0 : index
    %c0_79 = arith.constant 0 : index
    %143 = vector.load %arg4[%c1_77, %c0_78, %c0_79] : memref<12x32x8xf32, #tpu.memory_space<vmem>>, vector<1x32x8xf32>
    %144 = vector.shape_cast %143 : vector<1x32x8xf32> to vector<32x8xf32>
    %cst_80 = arith.constant dense<0.000000e+00> : vector<48x8xf32>
    %145 = tpu.matmul %98, %144, %cst_80 {dimension_numbers = #tpu.dot_dimension_numbers<[1], [0], [0], [1], [0, 0, 1, 1], [], []>} : vector<48x32xf32>, vector<32x8xf32>, vector<48x8xf32> -> vector<48x8xf32>
    %c1_81 = arith.constant 1 : index
    %c0_82 = arith.constant 0 : index
    %c0_83 = arith.constant 0 : index
    %146 = vector.load %arg5[%c1_81, %c0_82, %c0_83] : memref<12x1x8xf32, #tpu.memory_space<vmem>>, vector<1x1x8xf32>
    %147 = vector.shape_cast %146 : vector<1x1x8xf32> to vector<1x8xf32>
    %148 = vector.broadcast %147 : vector<1x8xf32> to vector<48x8xf32>
    %149 = arith.addf %145, %148 : vector<48x8xf32>
    %c5_84 = arith.constant 5 : index
    %c0_85 = arith.constant 0 : index
    %c0_86 = arith.constant 0 : index
    %150 = vector.load %arg4[%c5_84, %c0_85, %c0_86] : memref<12x32x8xf32, #tpu.memory_space<vmem>>, vector<1x32x8xf32>
    %151 = vector.shape_cast %150 : vector<1x32x8xf32> to vector<32x8xf32>
    %cst_87 = arith.constant dense<0.000000e+00> : vector<48x8xf32>
    %152 = tpu.matmul %98, %151, %cst_87 {dimension_numbers = #tpu.dot_dimension_numbers<[1], [0], [0], [1], [0, 0, 1, 1], [], []>} : vector<48x32xf32>, vector<32x8xf32>, vector<48x8xf32> -> vector<48x8xf32>
    %c5_88 = arith.constant 5 : index
    %c0_89 = arith.constant 0 : index
    %c0_90 = arith.constant 0 : index
    %153 = vector.load %arg5[%c5_88, %c0_89, %c0_90] : memref<12x1x8xf32, #tpu.memory_space<vmem>>, vector<1x1x8xf32>
    %154 = vector.shape_cast %153 : vector<1x1x8xf32> to vector<1x8xf32>
    %155 = vector.broadcast %154 : vector<1x8xf32> to vector<48x8xf32>
    %156 = arith.addf %152, %155 : vector<48x8xf32>
    %c9_91 = arith.constant 9 : index
    %c0_92 = arith.constant 0 : index
    %c0_93 = arith.constant 0 : index
    %157 = vector.load %arg4[%c9_91, %c0_92, %c0_93] : memref<12x32x8xf32, #tpu.memory_space<vmem>>, vector<1x32x8xf32>
    %158 = vector.shape_cast %157 : vector<1x32x8xf32> to vector<32x8xf32>
    %cst_94 = arith.constant dense<0.000000e+00> : vector<48x8xf32>
    %159 = tpu.matmul %98, %158, %cst_94 {dimension_numbers = #tpu.dot_dimension_numbers<[1], [0], [0], [1], [0, 0, 1, 1], [], []>} : vector<48x32xf32>, vector<32x8xf32>, vector<48x8xf32> -> vector<48x8xf32>
    %c9_95 = arith.constant 9 : index
    %c0_96 = arith.constant 0 : index
    %c0_97 = arith.constant 0 : index
    %160 = vector.load %arg5[%c9_95, %c0_96, %c0_97] : memref<12x1x8xf32, #tpu.memory_space<vmem>>, vector<1x1x8xf32>
    %161 = vector.shape_cast %160 : vector<1x1x8xf32> to vector<1x8xf32>
    %162 = vector.broadcast %161 : vector<1x8xf32> to vector<48x8xf32>
    %163 = arith.addf %159, %162 : vector<48x8xf32>
    %164 = vector.shape_cast %149 : vector<48x8xf32> to vector<2x24x8xf32>
    %165 = vector.shape_cast %156 : vector<48x8xf32> to vector<2x24x8xf32>
    %166 = vector.shape_cast %163 : vector<48x8xf32> to vector<2x24x8xf32>
    "tpu.trace_start"() <{level = 10 : i32, message = "bqd,bkd->bqk"}> : () -> ()
    %cst_98 = arith.constant dense<0.000000e+00> : vector<2x24x24xf32>
    %167 = tpu.matmul %164, %165, %cst_98 {dimension_numbers = #tpu.dot_dimension_numbers<[2], [2], [1], [1], [0, 0, 0, 1, 1, 1], [0], [0]>} : vector<2x24x8xf32>, vector<2x24x8xf32>, vector<2x24x24xf32> -> vector<2x24x24xf32>
    "tpu.trace_stop"() : () -> ()
    %cst_99 = arith.constant 0.353553385 : f32
    %168 = vector.broadcast %cst_99 : f32 to vector<2x24x24xf32>
    %169 = arith.mulf %167, %168 : vector<2x24x24xf32>
    %cst_100 = arith.constant dense<0xFF800000> : vector<2x24xf32>
    %170 = vector.multi_reduction <maximumf>, %169, %cst_100 [2] : vector<2x24x24xf32> to vector<2x24xf32>
    %171 = vector.shape_cast %170 : vector<2x24xf32> to vector<2x24x1xf32>
    %172 = vector.broadcast %171 : vector<2x24x1xf32> to vector<2x24x24xf32>
    %173 = arith.subf %169, %172 : vector<2x24x24xf32>
    %174 = math.exp %173 : vector<2x24x24xf32>
    %cst_101 = arith.constant dense<0.000000e+00> : vector<2x24xf32>
    %175 = vector.multi_reduction <add>, %174, %cst_101 [2] : vector<2x24x24xf32> to vector<2x24xf32>
    %176 = vector.shape_cast %175 : vector<2x24xf32> to vector<2x24x1xf32>
    %177 = tpu.reciprocal %176 {approx = true} : vector<2x24x1xf32> -> vector<2x24x1xf32>
    %178 = vector.broadcast %177 : vector<2x24x1xf32> to vector<2x24x24xf32>
    %179 = arith.mulf %174, %178 : vector<2x24x24xf32>
    "tpu.trace_start"() <{level = 10 : i32, message = "bqk,bkd->bqd"}> : () -> ()
    %cst_102 = arith.constant dense<0.000000e+00> : vector<2x24x8xf32>
    %180 = tpu.matmul %179, %166, %cst_102 {dimension_numbers = #tpu.dot_dimension_numbers<[2], [1], [1], [2], [0, 0, 0, 1, 1, 2], [0], [0]>} : vector<2x24x24xf32>, vector<2x24x8xf32>, vector<2x24x8xf32> -> vector<2x24x8xf32>
    "tpu.trace_stop"() : () -> ()
    %181 = vector.shape_cast %180 : vector<2x24x8xf32> to vector<48x8xf32>
    %c1_103 = arith.constant 1 : index
    %c0_104 = arith.constant 0 : index
    %c0_105 = arith.constant 0 : index
    %182 = vector.load %arg6[%c1_103, %c0_104, %c0_105] : memref<4x8x32xf32, #tpu.memory_space<vmem>>, vector<1x8x32xf32>
    %183 = vector.shape_cast %182 : vector<1x8x32xf32> to vector<8x32xf32>
    %cst_106 = arith.constant dense<0.000000e+00> : vector<48x32xf32>
    %184 = tpu.matmul %181, %183, %cst_106 {dimension_numbers = #tpu.dot_dimension_numbers<[1], [0], [0], [1], [0, 0, 1, 1], [], []>} : vector<48x8xf32>, vector<8x32xf32>, vector<48x32xf32> -> vector<48x32xf32>
    %185 = arith.addf %142, %184 : vector<48x32xf32>
    %c2_107 = arith.constant 2 : index
    %c0_108 = arith.constant 0 : index
    %c0_109 = arith.constant 0 : index
    %186 = vector.load %arg4[%c2_107, %c0_108, %c0_109] : memref<12x32x8xf32, #tpu.memory_space<vmem>>, vector<1x32x8xf32>
    %187 = vector.shape_cast %186 : vector<1x32x8xf32> to vector<32x8xf32>
    %cst_110 = arith.constant dense<0.000000e+00> : vector<48x8xf32>
    %188 = tpu.matmul %98, %187, %cst_110 {dimension_numbers = #tpu.dot_dimension_numbers<[1], [0], [0], [1], [0, 0, 1, 1], [], []>} : vector<48x32xf32>, vector<32x8xf32>, vector<48x8xf32> -> vector<48x8xf32>
    %c2_111 = arith.constant 2 : index
    %c0_112 = arith.constant 0 : index
    %c0_113 = arith.constant 0 : index
    %189 = vector.load %arg5[%c2_111, %c0_112, %c0_113] : memref<12x1x8xf32, #tpu.memory_space<vmem>>, vector<1x1x8xf32>
    %190 = vector.shape_cast %189 : vector<1x1x8xf32> to vector<1x8xf32>
    %191 = vector.broadcast %190 : vector<1x8xf32> to vector<48x8xf32>
    %192 = arith.addf %188, %191 : vector<48x8xf32>
    %c6_114 = arith.constant 6 : index
    %c0_115 = arith.constant 0 : index
    %c0_116 = arith.constant 0 : index
    %193 = vector.load %arg4[%c6_114, %c0_115, %c0_116] : memref<12x32x8xf32, #tpu.memory_space<vmem>>, vector<1x32x8xf32>
    %194 = vector.shape_cast %193 : vector<1x32x8xf32> to vector<32x8xf32>
    %cst_117 = arith.constant dense<0.000000e+00> : vector<48x8xf32>
    %195 = tpu.matmul %98, %194, %cst_117 {dimension_numbers = #tpu.dot_dimension_numbers<[1], [0], [0], [1], [0, 0, 1, 1], [], []>} : vector<48x32xf32>, vector<32x8xf32>, vector<48x8xf32> -> vector<48x8xf32>
    %c6_118 = arith.constant 6 : index
    %c0_119 = arith.constant 0 : index
    %c0_120 = arith.constant 0 : index
    %196 = vector.load %arg5[%c6_118, %c0_119, %c0_120] : memref<12x1x8xf32, #tpu.memory_space<vmem>>, vector<1x1x8xf32>
    %197 = vector.shape_cast %196 : vector<1x1x8xf32> to vector<1x8xf32>
    %198 = vector.broadcast %197 : vector<1x8xf32> to vector<48x8xf32>
    %199 = arith.addf %195, %198 : vector<48x8xf32>
    %c10_121 = arith.constant 10 : index
    %c0_122 = arith.constant 0 : index
    %c0_123 = arith.constant 0 : index
    %200 = vector.load %arg4[%c10_121, %c0_122, %c0_123] : memref<12x32x8xf32, #tpu.memory_space<vmem>>, vector<1x32x8xf32>
    %201 = vector.shape_cast %200 : vector<1x32x8xf32> to vector<32x8xf32>
    %cst_124 = arith.constant dense<0.000000e+00> : vector<48x8xf32>
    %202 = tpu.matmul %98, %201, %cst_124 {dimension_numbers = #tpu.dot_dimension_numbers<[1], [0], [0], [1], [0, 0, 1, 1], [], []>} : vector<48x32xf32>, vector<32x8xf32>, vector<48x8xf32> -> vector<48x8xf32>
    %c10_125 = arith.constant 10 : index
    %c0_126 = arith.constant 0 : index
    %c0_127 = arith.constant 0 : index
    %203 = vector.load %arg5[%c10_125, %c0_126, %c0_127] : memref<12x1x8xf32, #tpu.memory_space<vmem>>, vector<1x1x8xf32>
    %204 = vector.shape_cast %203 : vector<1x1x8xf32> to vector<1x8xf32>
    %205 = vector.broadcast %204 : vector<1x8xf32> to vector<48x8xf32>
    %206 = arith.addf %202, %205 : vector<48x8xf32>
    %207 = vector.shape_cast %192 : vector<48x8xf32> to vector<2x24x8xf32>
    %208 = vector.shape_cast %199 : vector<48x8xf32> to vector<2x24x8xf32>
    %209 = vector.shape_cast %206 : vector<48x8xf32> to vector<2x24x8xf32>
    "tpu.trace_start"() <{level = 10 : i32, message = "bqd,bkd->bqk"}> : () -> ()
    %cst_128 = arith.constant dense<0.000000e+00> : vector<2x24x24xf32>
    %210 = tpu.matmul %207, %208, %cst_128 {dimension_numbers = #tpu.dot_dimension_numbers<[2], [2], [1], [1], [0, 0, 0, 1, 1, 1], [0], [0]>} : vector<2x24x8xf32>, vector<2x24x8xf32>, vector<2x24x24xf32> -> vector<2x24x24xf32>
    "tpu.trace_stop"() : () -> ()
    %cst_129 = arith.constant 0.353553385 : f32
    %211 = vector.broadcast %cst_129 : f32 to vector<2x24x24xf32>
    %212 = arith.mulf %210, %211 : vector<2x24x24xf32>
    %cst_130 = arith.constant dense<0xFF800000> : vector<2x24xf32>
    %213 = vector.multi_reduction <maximumf>, %212, %cst_130 [2] : vector<2x24x24xf32> to vector<2x24xf32>
    %214 = vector.shape_cast %213 : vector<2x24xf32> to vector<2x24x1xf32>
    %215 = vector.broadcast %214 : vector<2x24x1xf32> to vector<2x24x24xf32>
    %216 = arith.subf %212, %215 : vector<2x24x24xf32>
    %217 = math.exp %216 : vector<2x24x24xf32>
    %cst_131 = arith.constant dense<0.000000e+00> : vector<2x24xf32>
    %218 = vector.multi_reduction <add>, %217, %cst_131 [2] : vector<2x24x24xf32> to vector<2x24xf32>
    %219 = vector.shape_cast %218 : vector<2x24xf32> to vector<2x24x1xf32>
    %220 = tpu.reciprocal %219 {approx = true} : vector<2x24x1xf32> -> vector<2x24x1xf32>
    %221 = vector.broadcast %220 : vector<2x24x1xf32> to vector<2x24x24xf32>
    %222 = arith.mulf %217, %221 : vector<2x24x24xf32>
    "tpu.trace_start"() <{level = 10 : i32, message = "bqk,bkd->bqd"}> : () -> ()
    %cst_132 = arith.constant dense<0.000000e+00> : vector<2x24x8xf32>
    %223 = tpu.matmul %222, %209, %cst_132 {dimension_numbers = #tpu.dot_dimension_numbers<[2], [1], [1], [2], [0, 0, 0, 1, 1, 2], [0], [0]>} : vector<2x24x24xf32>, vector<2x24x8xf32>, vector<2x24x8xf32> -> vector<2x24x8xf32>
    "tpu.trace_stop"() : () -> ()
    %224 = vector.shape_cast %223 : vector<2x24x8xf32> to vector<48x8xf32>
    %c2_133 = arith.constant 2 : index
    %c0_134 = arith.constant 0 : index
    %c0_135 = arith.constant 0 : index
    %225 = vector.load %arg6[%c2_133, %c0_134, %c0_135] : memref<4x8x32xf32, #tpu.memory_space<vmem>>, vector<1x8x32xf32>
    %226 = vector.shape_cast %225 : vector<1x8x32xf32> to vector<8x32xf32>
    %cst_136 = arith.constant dense<0.000000e+00> : vector<48x32xf32>
    %227 = tpu.matmul %224, %226, %cst_136 {dimension_numbers = #tpu.dot_dimension_numbers<[1], [0], [0], [1], [0, 0, 1, 1], [], []>} : vector<48x8xf32>, vector<8x32xf32>, vector<48x32xf32> -> vector<48x32xf32>
    %228 = arith.addf %185, %227 : vector<48x32xf32>
    %c3_137 = arith.constant 3 : index
    %c0_138 = arith.constant 0 : index
    %c0_139 = arith.constant 0 : index
    %229 = vector.load %arg4[%c3_137, %c0_138, %c0_139] : memref<12x32x8xf32, #tpu.memory_space<vmem>>, vector<1x32x8xf32>
    %230 = vector.shape_cast %229 : vector<1x32x8xf32> to vector<32x8xf32>
    %cst_140 = arith.constant dense<0.000000e+00> : vector<48x8xf32>
    %231 = tpu.matmul %98, %230, %cst_140 {dimension_numbers = #tpu.dot_dimension_numbers<[1], [0], [0], [1], [0, 0, 1, 1], [], []>} : vector<48x32xf32>, vector<32x8xf32>, vector<48x8xf32> -> vector<48x8xf32>
    %c3_141 = arith.constant 3 : index
    %c0_142 = arith.constant 0 : index
    %c0_143 = arith.constant 0 : index
    %232 = vector.load %arg5[%c3_141, %c0_142, %c0_143] : memref<12x1x8xf32, #tpu.memory_space<vmem>>, vector<1x1x8xf32>
    %233 = vector.shape_cast %232 : vector<1x1x8xf32> to vector<1x8xf32>
    %234 = vector.broadcast %233 : vector<1x8xf32> to vector<48x8xf32>
    %235 = arith.addf %231, %234 : vector<48x8xf32>
    %c7_144 = arith.constant 7 : index
    %c0_145 = arith.constant 0 : index
    %c0_146 = arith.constant 0 : index
    %236 = vector.load %arg4[%c7_144, %c0_145, %c0_146] : memref<12x32x8xf32, #tpu.memory_space<vmem>>, vector<1x32x8xf32>
    %237 = vector.shape_cast %236 : vector<1x32x8xf32> to vector<32x8xf32>
    %cst_147 = arith.constant dense<0.000000e+00> : vector<48x8xf32>
    %238 = tpu.matmul %98, %237, %cst_147 {dimension_numbers = #tpu.dot_dimension_numbers<[1], [0], [0], [1], [0, 0, 1, 1], [], []>} : vector<48x32xf32>, vector<32x8xf32>, vector<48x8xf32> -> vector<48x8xf32>
    %c7_148 = arith.constant 7 : index
    %c0_149 = arith.constant 0 : index
    %c0_150 = arith.constant 0 : index
    %239 = vector.load %arg5[%c7_148, %c0_149, %c0_150] : memref<12x1x8xf32, #tpu.memory_space<vmem>>, vector<1x1x8xf32>
    %240 = vector.shape_cast %239 : vector<1x1x8xf32> to vector<1x8xf32>
    %241 = vector.broadcast %240 : vector<1x8xf32> to vector<48x8xf32>
    %242 = arith.addf %238, %241 : vector<48x8xf32>
    %c11 = arith.constant 11 : index
    %c0_151 = arith.constant 0 : index
    %c0_152 = arith.constant 0 : index
    %243 = vector.load %arg4[%c11, %c0_151, %c0_152] : memref<12x32x8xf32, #tpu.memory_space<vmem>>, vector<1x32x8xf32>
    %244 = vector.shape_cast %243 : vector<1x32x8xf32> to vector<32x8xf32>
    %cst_153 = arith.constant dense<0.000000e+00> : vector<48x8xf32>
    %245 = tpu.matmul %98, %244, %cst_153 {dimension_numbers = #tpu.dot_dimension_numbers<[1], [0], [0], [1], [0, 0, 1, 1], [], []>} : vector<48x32xf32>, vector<32x8xf32>, vector<48x8xf32> -> vector<48x8xf32>
    %c11_154 = arith.constant 11 : index
    %c0_155 = arith.constant 0 : index
    %c0_156 = arith.constant 0 : index
    %246 = vector.load %arg5[%c11_154, %c0_155, %c0_156] : memref<12x1x8xf32, #tpu.memory_space<vmem>>, vector<1x1x8xf32>
    %247 = vector.shape_cast %246 : vector<1x1x8xf32> to vector<1x8xf32>
    %248 = vector.broadcast %247 : vector<1x8xf32> to vector<48x8xf32>
    %249 = arith.addf %245, %248 : vector<48x8xf32>
    %250 = vector.shape_cast %235 : vector<48x8xf32> to vector<2x24x8xf32>
    %251 = vector.shape_cast %242 : vector<48x8xf32> to vector<2x24x8xf32>
    %252 = vector.shape_cast %249 : vector<48x8xf32> to vector<2x24x8xf32>
    "tpu.trace_start"() <{level = 10 : i32, message = "bqd,bkd->bqk"}> : () -> ()
    %cst_157 = arith.constant dense<0.000000e+00> : vector<2x24x24xf32>
    %253 = tpu.matmul %250, %251, %cst_157 {dimension_numbers = #tpu.dot_dimension_numbers<[2], [2], [1], [1], [0, 0, 0, 1, 1, 1], [0], [0]>} : vector<2x24x8xf32>, vector<2x24x8xf32>, vector<2x24x24xf32> -> vector<2x24x24xf32>
    "tpu.trace_stop"() : () -> ()
    %cst_158 = arith.constant 0.353553385 : f32
    %254 = vector.broadcast %cst_158 : f32 to vector<2x24x24xf32>
    %255 = arith.mulf %253, %254 : vector<2x24x24xf32>
    %cst_159 = arith.constant dense<0xFF800000> : vector<2x24xf32>
    %256 = vector.multi_reduction <maximumf>, %255, %cst_159 [2] : vector<2x24x24xf32> to vector<2x24xf32>
    %257 = vector.shape_cast %256 : vector<2x24xf32> to vector<2x24x1xf32>
    %258 = vector.broadcast %257 : vector<2x24x1xf32> to vector<2x24x24xf32>
    %259 = arith.subf %255, %258 : vector<2x24x24xf32>
    %260 = math.exp %259 : vector<2x24x24xf32>
    %cst_160 = arith.constant dense<0.000000e+00> : vector<2x24xf32>
    %261 = vector.multi_reduction <add>, %260, %cst_160 [2] : vector<2x24x24xf32> to vector<2x24xf32>
    %262 = vector.shape_cast %261 : vector<2x24xf32> to vector<2x24x1xf32>
    %263 = tpu.reciprocal %262 {approx = true} : vector<2x24x1xf32> -> vector<2x24x1xf32>
    %264 = vector.broadcast %263 : vector<2x24x1xf32> to vector<2x24x24xf32>
    %265 = arith.mulf %260, %264 : vector<2x24x24xf32>
    "tpu.trace_start"() <{level = 10 : i32, message = "bqk,bkd->bqd"}> : () -> ()
    %cst_161 = arith.constant dense<0.000000e+00> : vector<2x24x8xf32>
    %266 = tpu.matmul %265, %252, %cst_161 {dimension_numbers = #tpu.dot_dimension_numbers<[2], [1], [1], [2], [0, 0, 0, 1, 1, 2], [0], [0]>} : vector<2x24x24xf32>, vector<2x24x8xf32>, vector<2x24x8xf32> -> vector<2x24x8xf32>
    "tpu.trace_stop"() : () -> ()
    %267 = vector.shape_cast %266 : vector<2x24x8xf32> to vector<48x8xf32>
    %c3_162 = arith.constant 3 : index
    %c0_163 = arith.constant 0 : index
    %c0_164 = arith.constant 0 : index
    %268 = vector.load %arg6[%c3_162, %c0_163, %c0_164] : memref<4x8x32xf32, #tpu.memory_space<vmem>>, vector<1x8x32xf32>
    %269 = vector.shape_cast %268 : vector<1x8x32xf32> to vector<8x32xf32>
    %cst_165 = arith.constant dense<0.000000e+00> : vector<48x32xf32>
    %270 = tpu.matmul %267, %269, %cst_165 {dimension_numbers = #tpu.dot_dimension_numbers<[1], [0], [0], [1], [0, 0, 1, 1], [], []>} : vector<48x8xf32>, vector<8x32xf32>, vector<48x32xf32> -> vector<48x32xf32>
    %271 = arith.addf %228, %270 : vector<48x32xf32>
    %272 = arith.addf %72, %271 : vector<48x32xf32>
    %c1_166 = arith.constant 1 : index
    %c0_167 = arith.constant 0 : index
    %c0_168 = arith.constant 0 : index
    %273 = vector.load %arg8[%c1_166, %c0_167, %c0_168] : memref<3x1x32xf32, #tpu.memory_space<vmem>>, vector<1x1x32xf32>
    %274 = vector.shape_cast %273 : vector<1x1x32xf32> to vector<1x32xf32>
    %275 = vector.broadcast %274 : vector<1x32xf32> to vector<48x32xf32>
    %276 = arith.addf %272, %275 : vector<48x32xf32>
    %cst_169 = arith.constant dense<0.000000e+00> : vector<48xf32>
    %277 = vector.multi_reduction <add>, %276, %cst_169 [1] : vector<48x32xf32> to vector<48xf32>
    %278 = vector.shape_cast %277 : vector<48xf32> to vector<48x1xf32>
    %cst_170 = arith.constant 3.200000e+01 : f32
    %279 = vector.broadcast %cst_170 : f32 to vector<48x1xf32>
    %280 = arith.divf %278, %279 : vector<48x1xf32>
    %281 = vector.broadcast %280 : vector<48x1xf32> to vector<48x32xf32>
    %282 = arith.subf %276, %281 : vector<48x32xf32>
    %283 = arith.mulf %282, %282 : vector<48x32xf32>
    %cst_171 = arith.constant dense<0.000000e+00> : vector<48xf32>
    %284 = vector.multi_reduction <add>, %283, %cst_171 [1] : vector<48x32xf32> to vector<48xf32>
    %285 = vector.shape_cast %284 : vector<48xf32> to vector<48x1xf32>
    %cst_172 = arith.constant 3.200000e+01 : f32
    %286 = vector.broadcast %cst_172 : f32 to vector<48x1xf32>
    %287 = arith.divf %285, %286 : vector<48x1xf32>
    %288 = vector.broadcast %280 : vector<48x1xf32> to vector<48x32xf32>
    %289 = arith.subf %276, %288 : vector<48x32xf32>
    %cst_173 = arith.constant 9.99999997E-7 : f32
    %290 = vector.broadcast %cst_173 : f32 to vector<48x1xf32>
    %291 = arith.addf %287, %290 : vector<48x1xf32>
    %292 = math.rsqrt %291 : vector<48x1xf32>
    %293 = vector.broadcast %292 : vector<48x1xf32> to vector<48x32xf32>
    %294 = arith.mulf %289, %293 : vector<48x32xf32>
    %c2_174 = arith.constant 2 : index
    %c0_175 = arith.constant 0 : index
    %c0_176 = arith.constant 0 : index
    %295 = vector.load %arg7[%c2_174, %c0_175, %c0_176] : memref<6x1x32xf32, #tpu.memory_space<vmem>>, vector<1x1x32xf32>
    %296 = vector.shape_cast %295 : vector<1x1x32xf32> to vector<1x32xf32>
    %297 = vector.broadcast %296 : vector<1x32xf32> to vector<48x32xf32>
    %298 = arith.mulf %294, %297 : vector<48x32xf32>
    %c3_177 = arith.constant 3 : index
    %c0_178 = arith.constant 0 : index
    %c0_179 = arith.constant 0 : index
    %299 = vector.load %arg7[%c3_177, %c0_178, %c0_179] : memref<6x1x32xf32, #tpu.memory_space<vmem>>, vector<1x1x32xf32>
    %300 = vector.shape_cast %299 : vector<1x1x32xf32> to vector<1x32xf32>
    %301 = vector.broadcast %300 : vector<1x32xf32> to vector<48x32xf32>
    %302 = arith.addf %298, %301 : vector<48x32xf32>
    %c0_180 = arith.constant 0 : index
    %c0_181 = arith.constant 0 : index
    %303 = vector.load %arg9[%c0_180, %c0_181] : memref<32x128xf32, #tpu.memory_space<vmem>>, vector<32x128xf32>
    %cst_182 = arith.constant dense<0.000000e+00> : vector<48x128xf32>
    %304 = tpu.matmul %302, %303, %cst_182 {dimension_numbers = #tpu.dot_dimension_numbers<[1], [0], [0], [1], [0, 0, 1, 1], [], []>} : vector<48x32xf32>, vector<32x128xf32>, vector<48x128xf32> -> vector<48x128xf32>
    %c0_183 = arith.constant 0 : index
    %c0_184 = arith.constant 0 : index
    %305 = vector.load %arg10[%c0_183, %c0_184] : memref<1x128xf32, #tpu.memory_space<vmem>>, vector<1x128xf32>
    %306 = vector.broadcast %305 : vector<1x128xf32> to vector<48x128xf32>
    %307 = arith.addf %304, %306 : vector<48x128xf32>
    %308 = arith.mulf %307, %307 : vector<48x128xf32>
    %309 = arith.mulf %307, %308 : vector<48x128xf32>
    %cst_185 = arith.constant 4.471500e-02 : f32
    %310 = vector.broadcast %cst_185 : f32 to vector<48x128xf32>
    %311 = arith.mulf %310, %309 : vector<48x128xf32>
    %312 = arith.addf %307, %311 : vector<48x128xf32>
    %cst_186 = arith.constant 0.797884583 : f32
    %313 = vector.broadcast %cst_186 : f32 to vector<48x128xf32>
    %314 = arith.mulf %313, %312 : vector<48x128xf32>
    %315 = math.tanh %314 : vector<48x128xf32>
    %cst_187 = arith.constant 1.000000e+00 : f32
    %316 = vector.broadcast %cst_187 : f32 to vector<48x128xf32>
    %317 = arith.addf %316, %315 : vector<48x128xf32>
    %cst_188 = arith.constant 5.000000e-01 : f32
    %318 = vector.broadcast %cst_188 : f32 to vector<48x128xf32>
    %319 = arith.mulf %318, %317 : vector<48x128xf32>
    %320 = arith.mulf %307, %319 : vector<48x128xf32>
    %c0_189 = arith.constant 0 : index
    %c0_190 = arith.constant 0 : index
    %321 = vector.load %arg11[%c0_189, %c0_190] : memref<128x32xf32, #tpu.memory_space<vmem>>, vector<128x32xf32>
    %cst_191 = arith.constant dense<0.000000e+00> : vector<48x32xf32>
    %322 = tpu.matmul %320, %321, %cst_191 {dimension_numbers = #tpu.dot_dimension_numbers<[1], [0], [0], [1], [0, 0, 1, 1], [], []>} : vector<48x128xf32>, vector<128x32xf32>, vector<48x32xf32> -> vector<48x32xf32>
    %c2_192 = arith.constant 2 : index
    %c0_193 = arith.constant 0 : index
    %c0_194 = arith.constant 0 : index
    %323 = vector.load %arg8[%c2_192, %c0_193, %c0_194] : memref<3x1x32xf32, #tpu.memory_space<vmem>>, vector<1x1x32xf32>
    %324 = vector.shape_cast %323 : vector<1x1x32xf32> to vector<1x32xf32>
    %325 = vector.broadcast %324 : vector<1x32xf32> to vector<48x32xf32>
    %326 = arith.addf %322, %325 : vector<48x32xf32>
    %327 = arith.addf %276, %326 : vector<48x32xf32>
    %cst_195 = arith.constant dense<0.000000e+00> : vector<48xf32>
    %328 = vector.multi_reduction <add>, %327, %cst_195 [1] : vector<48x32xf32> to vector<48xf32>
    %329 = vector.shape_cast %328 : vector<48xf32> to vector<48x1xf32>
    %cst_196 = arith.constant 3.200000e+01 : f32
    %330 = vector.broadcast %cst_196 : f32 to vector<48x1xf32>
    %331 = arith.divf %329, %330 : vector<48x1xf32>
    %332 = vector.broadcast %331 : vector<48x1xf32> to vector<48x32xf32>
    %333 = arith.subf %327, %332 : vector<48x32xf32>
    %334 = arith.mulf %333, %333 : vector<48x32xf32>
    %cst_197 = arith.constant dense<0.000000e+00> : vector<48xf32>
    %335 = vector.multi_reduction <add>, %334, %cst_197 [1] : vector<48x32xf32> to vector<48xf32>
    %336 = vector.shape_cast %335 : vector<48xf32> to vector<48x1xf32>
    %cst_198 = arith.constant 3.200000e+01 : f32
    %337 = vector.broadcast %cst_198 : f32 to vector<48x1xf32>
    %338 = arith.divf %336, %337 : vector<48x1xf32>
    %339 = vector.broadcast %331 : vector<48x1xf32> to vector<48x32xf32>
    %340 = arith.subf %327, %339 : vector<48x32xf32>
    %cst_199 = arith.constant 9.99999997E-7 : f32
    %341 = vector.broadcast %cst_199 : f32 to vector<48x1xf32>
    %342 = arith.addf %338, %341 : vector<48x1xf32>
    %343 = math.rsqrt %342 : vector<48x1xf32>
    %344 = vector.broadcast %343 : vector<48x1xf32> to vector<48x32xf32>
    %345 = arith.mulf %340, %344 : vector<48x32xf32>
    %c4_200 = arith.constant 4 : index
    %c0_201 = arith.constant 0 : index
    %c0_202 = arith.constant 0 : index
    %346 = vector.load %arg7[%c4_200, %c0_201, %c0_202] : memref<6x1x32xf32, #tpu.memory_space<vmem>>, vector<1x1x32xf32>
    %347 = vector.shape_cast %346 : vector<1x1x32xf32> to vector<1x32xf32>
    %348 = vector.broadcast %347 : vector<1x32xf32> to vector<48x32xf32>
    %349 = arith.mulf %345, %348 : vector<48x32xf32>
    %c5_203 = arith.constant 5 : index
    %c0_204 = arith.constant 0 : index
    %c0_205 = arith.constant 0 : index
    %350 = vector.load %arg7[%c5_203, %c0_204, %c0_205] : memref<6x1x32xf32, #tpu.memory_space<vmem>>, vector<1x1x32xf32>
    %351 = vector.shape_cast %350 : vector<1x1x32xf32> to vector<1x32xf32>
    %352 = vector.broadcast %351 : vector<1x32xf32> to vector<48x32xf32>
    %353 = arith.addf %349, %352 : vector<48x32xf32>
    %354 = vector.shape_cast %353 : vector<48x32xf32> to vector<2x24x32xf32>
    %355 = vector.extract_strided_slice %354 {offsets = [0, 0, 0], sizes = [2, 8, 32], strides = [1, 1, 1]} : vector<2x24x32xf32> to vector<2x8x32xf32>
    %c0_206 = arith.constant 0 : index
    %c0_207 = arith.constant 0 : index
    %356 = vector.load %arg13[%c0_206, %c0_207] : memref<8x32xf32, #tpu.memory_space<vmem>>, vector<8x32xf32>
    %357 = vector.shape_cast %356 : vector<8x32xf32> to vector<1x8x32xf32>
    %358 = vector.broadcast %357 : vector<1x8x32xf32> to vector<2x8x32xf32>
    %359 = arith.mulf %355, %358 : vector<2x8x32xf32>
    %cst_208 = arith.constant dense<0.000000e+00> : vector<2x8xf32>
    %360 = vector.multi_reduction <add>, %359, %cst_208 [2] : vector<2x8x32xf32> to vector<2x8xf32>
    %c0_209 = arith.constant 0 : index
    %c0_210 = arith.constant 0 : index
    %c0_211 = arith.constant 0 : index
    %361 = vector.load %arg14[%c0_209, %c0_210, %c0_211] : memref<5x1x8xf32, #tpu.memory_space<vmem>>, vector<1x1x8xf32>
    %362 = vector.shape_cast %361 : vector<1x1x8xf32> to vector<1x8xf32>
    %363 = vector.broadcast %362 : vector<1x8xf32> to vector<2x8xf32>
    %364 = arith.addf %360, %363 : vector<2x8xf32>
    %c3_212 = arith.constant 3 : index
    %c0_213 = arith.constant 0 : index
    %c0_214 = arith.constant 0 : index
    %365 = vector.load %arg14[%c3_212, %c0_213, %c0_214] : memref<5x1x8xf32, #tpu.memory_space<vmem>>, vector<1x1x8xf32>
    %366 = vector.shape_cast %365 : vector<1x1x8xf32> to vector<1x8xf32>
    %367 = vector.broadcast %366 : vector<1x8xf32> to vector<2x8xf32>
    %368 = arith.subf %364, %367 : vector<2x8xf32>
    %c4_215 = arith.constant 4 : index
    %c0_216 = arith.constant 0 : index
    %c0_217 = arith.constant 0 : index
    %369 = vector.load %arg14[%c4_215, %c0_216, %c0_217] : memref<5x1x8xf32, #tpu.memory_space<vmem>>, vector<1x1x8xf32>
    %370 = vector.shape_cast %369 : vector<1x1x8xf32> to vector<1x8xf32>
    %cst_218 = arith.constant 9.99999974E-6 : f32
    %371 = vector.broadcast %cst_218 : f32 to vector<1x8xf32>
    %372 = arith.addf %370, %371 : vector<1x8xf32>
    %373 = math.rsqrt %372 : vector<1x8xf32>
    %374 = vector.broadcast %373 : vector<1x8xf32> to vector<2x8xf32>
    %375 = arith.mulf %368, %374 : vector<2x8xf32>
    %c1_219 = arith.constant 1 : index
    %c0_220 = arith.constant 0 : index
    %c0_221 = arith.constant 0 : index
    %376 = vector.load %arg14[%c1_219, %c0_220, %c0_221] : memref<5x1x8xf32, #tpu.memory_space<vmem>>, vector<1x1x8xf32>
    %377 = vector.shape_cast %376 : vector<1x1x8xf32> to vector<1x8xf32>
    %378 = vector.broadcast %377 : vector<1x8xf32> to vector<2x8xf32>
    %379 = arith.mulf %375, %378 : vector<2x8xf32>
    %c2_222 = arith.constant 2 : index
    %c0_223 = arith.constant 0 : index
    %c0_224 = arith.constant 0 : index
    %380 = vector.load %arg14[%c2_222, %c0_223, %c0_224] : memref<5x1x8xf32, #tpu.memory_space<vmem>>, vector<1x1x8xf32>
    %381 = vector.shape_cast %380 : vector<1x1x8xf32> to vector<1x8xf32>
    %382 = vector.broadcast %381 : vector<1x8xf32> to vector<2x8xf32>
    %383 = arith.addf %379, %382 : vector<2x8xf32>
    %c0_225 = arith.constant 0 : index
    %c0_226 = arith.constant 0 : index
    %384 = vector.load %arg15[%c0_225, %c0_226] : memref<2x8xf32, #tpu.memory_space<vmem>>, vector<2x8xf32>
    tpu.vector_store %arg15[%c0_225, %c0_226], %383 {strides = array<i32>} : memref<2x8xf32, #tpu.memory_space<vmem>>, vector<2x8xf32>,
    return
  }
}

</mosaic_0001>

<llo_original>
// kernel: transformer_classifier_forward.1
$region0: #{transformer_classifier_forward.1}
  #allocation0 [shape = 'u32[]', space=smem, size = 0x4, offset = 0x4, fixed_abs, tag = 'smem constant byte address 0x4 - core index']
  #allocation1 [shape = 'u32[144,128]{1,0:T(1,128)}', space=vmem, size = 0x12000, scoped, tag = 'internal scratch']
  %s0 = inlined_call_operand.vmem [shape: f32[11], index: 0, kind: input, shape index: {}]
  %s1 = inlined_call_operand.vmem [shape: f32[9,32,32], index: 1, kind: input, shape index: {}]
  %s2 = inlined_call_operand.vmem [shape: f32[8,512], index: 2, kind: input, shape index: {}]
  %s3 = inlined_call_operand.vmem [shape: f32[512,32], index: 3, kind: input, shape index: {}]
  %s4 = inlined_call_operand.vmem [shape: f32[12,32,8], index: 4, kind: input, shape index: {}]
  %s5 = inlined_call_operand.vmem [shape: f32[12,1,8], index: 5, kind: input, shape index: {}]
  %s6 = inlined_call_operand.vmem [shape: f32[4,8,32], index: 6, kind: input, shape index: {}]
  %s7 = inlined_call_operand.vmem [shape: f32[6,1,32], index: 7, kind: input, shape index: {}]
  %s8 = inlined_call_operand.vmem [shape: f32[3,1,32], index: 8, kind: input, shape index: {}]
  %s9 = inlined_call_operand.vmem [shape: f32[32,128], index: 9, kind: input, shape index: {}]
  %s10 = inlined_call_operand.vmem [shape: f32[1,128], index: 10, kind: input, shape index: {}]
  %s11 = inlined_call_operand.vmem [shape: f32[128,32], index: 11, kind: input, shape index: {}]
  %s12 = inlined_call_operand.vmem [shape: f32[1,32], index: 12, kind: input, shape index: {}]
  %s13 = inlined_call_operand.vmem [shape: f32[8,32], index: 13, kind: input, shape index: {}]
  %s14 = inlined_call_operand.vmem [shape: f32[5,1,8], index: 14, kind: input, shape index: {}]
  %s15 = inlined_call_operand.hbm [shape: f32[2,8], index: 15, kind: output, shape index: {}]
  %s16 = sld [smem:[#allocation0]]
  $region74: #{transformer_classifier_forward.1} parent=0
    _
  %s18 = ssub.s32 1, %s16
  %s19 = scalar_select 0, %s18, %s16
  $region1: #{transformer_classifier_forward.1} parent=0
    #allocation2 [shape = 'u8[512]{0}', space=smem, size = 0x200, scoped, tag = 'input window, operand 0, single buffered']
    #allocation3 [shape = 's32[1]{0}', space=sflag, size = 0x4, scoped, tag = 'scoped memory for transformer_classifier_forward.1']
    #allocation4 [shape = 's32[1]{0}', space=sflag, size = 0x4, scoped, tag = 'scoped memory for transformer_classifier_forward.1']
    #allocation5 [shape = 'u8[1024]{0}', space=vmem, size = 0x400, scoped, tag = 'output window, operand 0, single buffered']
    %20 = vsyncpa [#allocation4], 0
    %21 = vsyncpa [#allocation3], 0
    // Predicated region
    $region2: #{transformer_classifier_forward.1} parent=1 // pred_check
      _
    $region3: #{transformer_classifier_forward.1} parent=1 // pred_check_branch
      %23 = sbr.rel (0) target = $region5
    $region4: #{transformer_classifier_forward.1} parent=1 // pred_region
      %s25 = ssub.s32 16, 16
      %26 = vsyncadd [#allocation4], %s25
      %s28 = sshll.u32 %s0, 4
      %s29 = int_to_ptr.vmem [resolvable:$true] %s28
      %31 = dma.vmem_to_smem %s29, 16, [#allocation2], [#allocation4]
    $region5: #{transformer_classifier_forward.1} parent=1 // pred_fallthru
      _
    // Predicated region
    $region6: #{transformer_classifier_forward.1} parent=1 // pred_check
      _
    $region7: #{transformer_classifier_forward.1} parent=1 // pred_check_branch
      %33 = sbr.rel (0) target = $region9
    $region8: #{transformer_classifier_forward.1} parent=1 // pred_region
      _
    $region9: #{transformer_classifier_forward.1} parent=1 // pred_fallthru
      _
    // Predicated region
    $region10: #{transformer_classifier_forward.1} parent=1 // pred_check
      _
    $region11: #{transformer_classifier_forward.1} parent=1 // pred_check_branch
      %35 = sbr.rel (0) target = $region13
    $region12: #{transformer_classifier_forward.1} parent=1 // pred_region
      _
    $region13: #{transformer_classifier_forward.1} parent=1 // pred_fallthru
      _
    // Predicated region
    $region14: #{transformer_classifier_forward.1} parent=1 // pred_check
      _
    $region15: #{transformer_classifier_forward.1} parent=1 // pred_check_branch
      %37 = sbr.rel (0) target = $region17
    $region16: #{transformer_classifier_forward.1} parent=1 // pred_region
      _
    $region17: #{transformer_classifier_forward.1} parent=1 // pred_fallthru
      _
    // Predicated region
    $region18: #{transformer_classifier_forward.1} parent=1 // pred_check
      _
    $region19: #{transformer_classifier_forward.1} parent=1 // pred_check_branch
      %39 = sbr.rel (0) target = $region21
    $region20: #{transformer_classifier_forward.1} parent=1 // pred_region
      _
    $region21: #{transformer_classifier_forward.1} parent=1 // pred_fallthru
      _
    // Predicated region
    $region22: #{transformer_classifier_forward.1} parent=1 // pred_check
      _
    $region23: #{transformer_classifier_forward.1} parent=1 // pred_check_branch
      %41 = sbr.rel (0) target = $region25
    $region24: #{transformer_classifier_forward.1} parent=1 // pred_region
      _
    $region25: #{transformer_classifier_forward.1} parent=1 // pred_fallthru
      _
    // Predicated region
    $region26: #{transformer_classifier_forward.1} parent=1 // pred_check
      _
    $region27: #{transformer_classifier_forward.1} parent=1 // pred_check_branch
      %43 = sbr.rel (0) target = $region29
    $region28: #{transformer_classifier_forward.1} parent=1 // pred_region
      _
    $region29: #{transformer_classifier_forward.1} parent=1 // pred_fallthru
      _
    // Predicated region
    $region30: #{transformer_classifier_forward.1} parent=1 // pred_check
      _
    $region31: #{transformer_classifier_forward.1} parent=1 // pred_check_branch
      %45 = sbr.rel (0) target = $region33
    $region32: #{transformer_classifier_forward.1} parent=1 // pred_region
      _
    $region33: #{transformer_classifier_forward.1} parent=1 // pred_fallthru
      _
    // Predicated region
    $region34: #{transformer_classifier_forward.1} parent=1 // pred_check
      _
    $region35: #{transformer_classifier_forward.1} parent=1 // pred_check_branch
      %47 = sbr.rel (0) target = $region37
    $region36: #{transformer_classifier_forward.1} parent=1 // pred_region
      _
    $region37: #{transformer_classifier_forward.1} parent=1 // pred_fallthru
      _
    // Predicated region
    $region38: #{transformer_classifier_forward.1} parent=1 // pred_check
      _
    $region39: #{transformer_classifier_forward.1} parent=1 // pred_check_branch
      %49 = sbr.rel (0) target = $region41
    $region40: #{transformer_classifier_forward.1} parent=1 // pred_region
      _
    $region41: #{transformer_classifier_forward.1} parent=1 // pred_fallthru
      _
    // Predicated region
    $region42: #{transformer_classifier_forward.1} parent=1 // pred_check
      _
    $region43: #{transformer_classifier_forward.1} parent=1 // pred_check_branch
      %51 = sbr.rel (0) target = $region45
    $region44: #{transformer_classifier_forward.1} parent=1 // pred_region
      _
    $region45: #{transformer_classifier_forward.1} parent=1 // pred_fallthru
      _
    // Predicated region
    $region46: #{transformer_classifier_forward.1} parent=1 // pred_check
      _
    $region47: #{transformer_classifier_forward.1} parent=1 // pred_check_branch
      %53 = sbr.rel (0) target = $region49
    $region48: #{transformer_classifier_forward.1} parent=1 // pred_region
      _
    $region49: #{transformer_classifier_forward.1} parent=1 // pred_fallthru
      _
    // Predicated region
    $region50: #{transformer_classifier_forward.1} parent=1 // pred_check
      _
    $region51: #{transformer_classifier_forward.1} parent=1 // pred_check_branch
      %55 = sbr.rel (0) target = $region53
    $region52: #{transformer_classifier_forward.1} parent=1 // pred_region
      _
    $region53: #{transformer_classifier_forward.1} parent=1 // pred_fallthru
      _
    // Predicated region
    $region54: #{transformer_classifier_forward.1} parent=1 // pred_check
      _
    $region55: #{transformer_classifier_forward.1} parent=1 // pred_check_branch
      %57 = sbr.rel (0) target = $region57
    $region56: #{transformer_classifier_forward.1} parent=1 // pred_region
      _
    $region57: #{transformer_classifier_forward.1} parent=1 // pred_fallthru
      _
    // Predicated region
    $region58: #{transformer_classifier_forward.1} parent=1 // pred_check
      _
    $region59: #{transformer_classifier_forward.1} parent=1 // pred_check_branch
      %59 = sbr.rel (0) target = $region61
    $region60: #{transformer_classifier_forward.1} parent=1 // pred_region
      _
    $region61: #{transformer_classifier_forward.1} parent=1 // pred_fallthru
      _
    // Predicated region
    $region62: #{transformer_classifier_forward.1} parent=1 // pred_check
      _
    $region63: #{transformer_classifier_forward.1} parent=1 // pred_check_branch
      %61 = sbr.rel (0) target = $region65
    $region64: #{transformer_classifier_forward.1} parent=1 // pred_region
      %62 = dma.done [#allocation4], 16
    $region65: #{transformer_classifier_forward.1} parent=1 // pred_fallthru
      _
    %63 = sfence
    %v64 = vld [vmem:[%s2] sm:$0xff]
    %v65 = vld [vmem:[%s2 + $0x8] sm:$0xff]
    %v66 = vld [vmem:[%s2 + $0x10] sm:$0xff]
    %v67 = vld [vmem:[%s2 + $0x18] sm:$0xff]
    %v68 = vld [vmem:[%s3] sm:$0xff]
    %v69 = vld [vmem:[%s3 + $0x8] sm:$0xff]
    %v70 = vld [vmem:[%s3 + $0x10] sm:$0xff]
    %v71 = vld [vmem:[%s3 + $0x18] sm:$0xff]
    %v72 = vld [vmem:[%s3 + $0x20] sm:$0xff]
    %v73 = vld [vmem:[%s3 + $0x28] sm:$0xff]
    %v74 = vld [vmem:[%s3 + $0x30] sm:$0xff]
    %v75 = vld [vmem:[%s3 + $0x38] sm:$0xff]
    %v76 = vld [vmem:[%s3 + $0x40] sm:$0xff]
    %v77 = vld [vmem:[%s3 + $0x48] sm:$0xff]
    %v78 = vld [vmem:[%s3 + $0x50] sm:$0xff]
    %v79 = vld [vmem:[%s3 + $0x58] sm:$0xff]
    %v80 = vld [vmem:[%s3 + $0x60] sm:$0xff]
    %v81 = vld [vmem:[%s3 + $0x68] sm:$0xff]
    %v82 = vld [vmem:[%s3 + $0x70] sm:$0xff]
    %v83 = vld [vmem:[%s3 + $0x78] sm:$0xff]
    %v84 = vld [vmem:[%s3 + $0x80] sm:$0xff]
    %v85 = vld [vmem:[%s3 + $0x88] sm:$0xff]
    %v86 = vld [vmem:[%s3 + $0x90] sm:$0xff]
    %v87 = vld [vmem:[%s3 + $0x98] sm:$0xff]
    %v88 = vld [vmem:[%s3 + $0xa0] sm:$0xff]
    %v89 = vld [vmem:[%s3 + $0xa8] sm:$0xff]
    %v90 = vld [vmem:[%s3 + $0xb0] sm:$0xff]
    %v91 = vld [vmem:[%s3 + $0xb8] sm:$0xff]
    %v92 = vld [vmem:[%s3 + $0xc0] sm:$0xff]
    %v93 = vld [vmem:[%s3 + $0xc8] sm:$0xff]
    %v94 = vld [vmem:[%s3 + $0xd0] sm:$0xff]
    %v95 = vld [vmem:[%s3 + $0xd8] sm:$0xff]
    %v96 = vld [vmem:[%s3 + $0xe0] sm:$0xff]
    %v97 = vld [vmem:[%s3 + $0xe8] sm:$0xff]
    %v98 = vld [vmem:[%s3 + $0xf0] sm:$0xff]
    %v99 = vld [vmem:[%s3 + $0xf8] sm:$0xff]
    %v100 = vld [vmem:[%s3 + $0x100] sm:$0xff]
    %v101 = vld [vmem:[%s3 + $0x108] sm:$0xff]
    %v102 = vld [vmem:[%s3 + $0x110] sm:$0xff]
    %v103 = vld [vmem:[%s3 + $0x118] sm:$0xff]
    %v104 = vld [vmem:[%s3 + $0x120] sm:$0xff]
    %v105 = vld [vmem:[%s3 + $0x128] sm:$0xff]
    %v106 = vld [vmem:[%s3 + $0x130] sm:$0xff]
    %v107 = vld [vmem:[%s3 + $0x138] sm:$0xff]
    %v108 = vld [vmem:[%s3 + $0x140] sm:$0xff]
    %v109 = vld [vmem:[%s3 + $0x148] sm:$0xff]
    %v110 = vld [vmem:[%s3 + $0x150] sm:$0xff]
    %v111 = vld [vmem:[%s3 + $0x158] sm:$0xff]
    %v112 = vld [vmem:[%s3 + $0x160] sm:$0xff]
    %v113 = vld [vmem:[%s3 + $0x168] sm:$0xff]
    %v114 = vld [vmem:[%s3 + $0x170] sm:$0xff]
    %v115 = vld [vmem:[%s3 + $0x178] sm:$0xff]
    %v116 = vld [vmem:[%s3 + $0x180] sm:$0xff]
    %v117 = vld [vmem:[%s3 + $0x188] sm:$0xff]
    %v118 = vld [vmem:[%s3 + $0x190] sm:$0xff]
    %v119 = vld [vmem:[%s3 + $0x198] sm:$0xff]
    %v120 = vld [vmem:[%s3 + $0x1a0] sm:$0xff]
    %v121 = vld [vmem:[%s3 + $0x1a8] sm:$0xff]
    %v122 = vld [vmem:[%s3 + $0x1b0] sm:$0xff]
    %v123 = vld [vmem:[%s3 + $0x1b8] sm:$0xff]
    %v124 = vld [vmem:[%s3 + $0x1c0] sm:$0xff]
    %v125 = vld [vmem:[%s3 + $0x1c8] sm:$0xff]
    %v126 = vld [vmem:[%s3 + $0x1d0] sm:$0xff]
    %v127 = vld [vmem:[%s3 + $0x1d8] sm:$0xff]
    %v128 = vld [vmem:[%s3 + $0x1e0] sm:$0xff]
    %v129 = vld [vmem:[%s3 + $0x1e8] sm:$0xff]
    %v130 = vld [vmem:[%s3 + $0x1f0] sm:$0xff]
    %v131 = vld [vmem:[%s3 + $0x1f8] sm:$0xff]
    %v132 = vld [vmem:[%s8] sm:$0x1]
    %v134 = vlaneseq
    %v135 = vshrl.u32 %v134, 7
    %v136 = vsub.s32 0, %v135
    %v137 = vrot.slane %v132, %v136
    %139 = vmatprep.subr.mxu0 0.0
    %140 = vmatpush1.msra.mxu0 %v68
    %141 = vmatprep.subr.mxu0 0.0
    %142 = vmatpush1.msra.mxu0 %v69
    %143 = vmatprep.subr.mxu0 0.0
    %144 = vmatpush1.msra.mxu0 %v70
    %145 = vmatprep.subr.mxu0 0.0
    %146 = vmatpush1.msra.mxu0 %v71
    %147 = vmatprep.subr.mxu0 0.0
    %148 = vmatpush1.msra.mxu0 %v72
    %149 = vmatprep.subr.mxu0 0.0
    %150 = vmatpush1.msra.mxu0 %v73
    %151 = vmatprep.subr.mxu0 0.0
    %152 = vmatpush1.msra.mxu0 %v74
    %153 = vmatprep.subr.mxu0 0.0
    %154 = vmatpush1.msra.mxu0 %v75
    %155 = vmatprep.subr.mxu0 0.0
    %156 = vmatpush1.msra.mxu0 %v76
    %157 = vmatprep.subr.mxu0 0.0
    %158 = vmatpush1.msra.mxu0 %v77
    %159 = vmatprep.subr.mxu0 0.0
    %160 = vmatpush1.msra.mxu0 %v78
    %161 = vmatprep.subr.mxu0 0.0
    %162 = vmatpush1.msra.mxu0 %v79
    %163 = vmatprep.subr.mxu0 0.0
    %164 = vmatpush1.msra.mxu0 %v80
    %165 = vmatprep.subr.mxu0 0.0
    %166 = vmatpush1.msra.mxu0 %v81
    %167 = vmatprep.subr.mxu0 0.0
    %168 = vmatpush1.msra.mxu0 %v82
    %169 = vmatprep.subr.mxu0 0.0
    %170 = vmatpush1.msra.mxu0 %v83
    %171 = vmatprep.subr.mxu0 0.0
    %172 = vmatpush1.msra.mxu0 %v84
    %173 = vmatprep.subr.mxu0 0.0
    %174 = vmatpush1.msra.mxu0 %v85
    %175 = vmatprep.subr.mxu0 0.0
    %176 = vmatpush1.msra.mxu0 %v86
    %177 = vmatprep.subr.mxu0 0.0
    %178 = vmatpush1.msra.mxu0 %v87
    %179 = vmatprep.subr.mxu0 0.0
    %180 = vmatpush1.msra.mxu0 %v88
    %181 = vmatprep.subr.mxu0 0.0
    %182 = vmatpush1.msra.mxu0 %v89
    %183 = vmatprep.subr.mxu0 0.0
    %184 = vmatpush1.msra.mxu0 %v90
    %185 = vmatprep.subr.mxu0 0.0
    %186 = vmatpush1.msra.mxu0 %v91
    %187 = vmatprep.subr.mxu0 0.0
    %188 = vmatpush1.msra.mxu0 %v92
    %189 = vmatprep.subr.mxu0 0.0
    %190 = vmatpush1.msra.mxu0 %v93
    %191 = vmatprep.subr.mxu0 0.0
    %192 = vmatpush1.msra.mxu0 %v94
    %193 = vmatprep.subr.mxu0 0.0
    %194 = vmatpush1.msra.mxu0 %v95
    %195 = vmatprep.subr.mxu0 0.0
    %196 = vmatpush1.msra.mxu0 %v96
    %197 = vmatprep.subr.mxu0 0.0
    %198 = vmatpush1.msra.mxu0 %v97
    %199 = vmatprep.subr.mxu0 0.0
    %200 = vmatpush1.msra.mxu0 %v98
    %201 = vmatprep.subr.mxu0 0.0
    %202 = vmatpush1.msra.mxu0 %v99
    %203 = vmatprep.mubr.f32.mxu0 %v65
    %204 = vmatmul.mubr.f32.gmra.mrb[0].mxu0 %v64
    %v205 = vpop.f32.mrb[0].mxu0
    %v206 = vadd.f32 %v137, %v205
    %v207 = vpop.f32.mrb[0].mxu0
    %208 = vdwg.mxu0
    %209 = vmatprep.subr.mxu0 0.0
    %210 = vmatpush1.msra.mxu0 %v100
    %211 = vmatprep.subr.mxu0 0.0
    %212 = vmatpush1.msra.mxu0 %v101
    %213 = vmatprep.subr.mxu0 0.0
    %214 = vmatpush1.msra.mxu0 %v102
    %215 = vmatprep.subr.mxu0 0.0
    %216 = vmatpush1.msra.mxu0 %v103
    %217 = vmatprep.subr.mxu0 0.0
    %218 = vmatpush1.msra.mxu0 %v104
    %219 = vmatprep.subr.mxu0 0.0
    %220 = vmatpush1.msra.mxu0 %v105
    %221 = vmatprep.subr.mxu0 0.0
    %222 = vmatpush1.msra.mxu0 %v106
    %223 = vmatprep.subr.mxu0 0.0
    %224 = vmatpush1.msra.mxu0 %v107
    %225 = vmatprep.subr.mxu0 0.0
    %226 = vmatpush1.msra.mxu0 %v108
    %227 = vmatprep.subr.mxu0 0.0
    %228 = vmatpush1.msra.mxu0 %v109
    %229 = vmatprep.subr.mxu0 0.0
    %230 = vmatpush1.msra.mxu0 %v110
    %231 = vmatprep.subr.mxu0 0.0
    %232 = vmatpush1.msra.mxu0 %v111
    %233 = vmatprep.subr.mxu0 0.0
    %234 = vmatpush1.msra.mxu0 %v112
    %235 = vmatprep.subr.mxu0 0.0
    %236 = vmatpush1.msra.mxu0 %v113
    %237 = vmatprep.subr.mxu0 0.0
    %238 = vmatpush1.msra.mxu0 %v114
    %239 = vmatprep.subr.mxu0 0.0
    %240 = vmatpush1.msra.mxu0 %v115
    %241 = vmatprep.subr.mxu0 0.0
    %242 = vmatpush1.msra.mxu0 %v116
    %243 = vmatprep.subr.mxu0 0.0
    %244 = vmatpush1.msra.mxu0 %v117
    %245 = vmatprep.subr.mxu0 0.0
    %246 = vmatpush1.msra.mxu0 %v118
    %247 = vmatprep.subr.mxu0 0.0
    %248 = vmatpush1.msra.mxu0 %v119
    %249 = vmatprep.subr.mxu0 0.0
    %250 = vmatpush1.msra.mxu0 %v120
    %251 = vmatprep.subr.mxu0 0.0
    %252 = vmatpush1.msra.mxu0 %v121
    %253 = vmatprep.subr.mxu0 0.0
    %254 = vmatpush1.msra.mxu0 %v122
    %255 = vmatprep.subr.mxu0 0.0
    %256 = vmatpush1.msra.mxu0 %v123
    %257 = vmatprep.subr.mxu0 0.0
    %258 = vmatpush1.msra.mxu0 %v124
    %259 = vmatprep.subr.mxu0 0.0
    %260 = vmatpush1.msra.mxu0 %v125
    %261 = vmatprep.subr.mxu0 0.0
    %262 = vmatpush1.msra.mxu0 %v126
    %263 = vmatprep.subr.mxu0 0.0
    %264 = vmatpush1.msra.mxu0 %v127
    %265 = vmatprep.subr.mxu0 0.0
    %266 = vmatpush1.msra.mxu0 %v128
    %267 = vmatprep.subr.mxu0 0.0
    %268 = vmatpush1.msra.mxu0 %v129
    %269 = vmatprep.subr.mxu0 0.0
    %270 = vmatpush1.msra.mxu0 %v130
    %271 = vmatprep.subr.mxu0 0.0
    %272 = vmatpush1.msra.mxu0 %v131
    %273 = vmatprep.mubr.f32.mxu0 %v67
    %274 = vmatmul.mubr.f32.gmra.mrb[0].mxu0 %v66
    %v275 = vpop.f32.mrb[0].mxu0
    %v276 = vadd.f32 %v206, %v275
    %v277 = vpop.f32.mrb[0].mxu0
    %278 = vdwg.mxu0
    %s279 = sld [smem:[#allocation2 + $0x9]]
    %s280 = sld [smem:[#allocation2 + $0xa]]
    %s281 = sadd.f32 %s279, %s280
    %v282 = vstv %s281
    %v283 = vadd.f32 %v282, 0.0
    %s284 = sld [smem:[#allocation2]]
    %v285 = vld [vmem:[%s1] sm:$0xff]
    %v286 = vld [vmem:[%s1 + $0x8] sm:$0xff]
    %v287 = vld [vmem:[%s1 + $0x10] sm:$0xff]
    %v288 = vld [vmem:[%s1 + $0x18] sm:$0xff]
    %v289 = vstv %s284
    %v290 = vmul.f32 %v289, %v285
    %v291 = vmul.f32 %v289, %v286
    %v292 = vmul.f32 %v289, %v287
    %v293 = vmul.f32 %v289, %v288
    %v294 = vadd.f32 %v283, %v290
    %v295 = vadd.f32 %v283, %v291
    %v296 = vadd.f32 %v283, %v292
    %v297 = vadd.f32 %v283, %v293
    %s298 = sld [smem:[#allocation2 + $0x1]]
    %s299 = scalar_lea.vmem %s1, 32
    %v300 = vld [vmem:[%s299] sm:$0xff]
    %v301 = vld [vmem:[%s299 + $0x8] sm:$0xff]
    %v302 = vld [vmem:[%s299 + $0x10] sm:$0xff]
    %v303 = vld [vmem:[%s299 + $0x18] sm:$0xff]
    %v304 = vstv %s298
    %v305 = vmul.f32 %v304, %v300
    %v306 = vmul.f32 %v304, %v301
    %v307 = vmul.f32 %v304, %v302
    %v308 = vmul.f32 %v304, %v303
    %v309 = vadd.f32 %v294, %v305
    %v310 = vadd.f32 %v295, %v306
    %v311 = vadd.f32 %v296, %v307
    %v312 = vadd.f32 %v297, %v308
    %s313 = sld [smem:[#allocation2 + $0x2]]
    %s314 = scalar_lea.vmem %s1, 64
    %v315 = vld [vmem:[%s314] sm:$0xff]
    %v316 = vld [vmem:[%s314 + $0x8] sm:$0xff]
    %v317 = vld [vmem:[%s314 + $0x10] sm:$0xff]
    %v318 = vld [vmem:[%s314 + $0x18] sm:$0xff]
    %v319 = vstv %s313
    %v320 = vmul.f32 %v319, %v315
    %v321 = vmul.f32 %v319, %v316
    %v322 = vmul.f32 %v319, %v317
    %v323 = vmul.f32 %v319, %v318
    %v324 = vadd.f32 %v309, %v320
    %v325 = vadd.f32 %v310, %v321
    %v326 = vadd.f32 %v311, %v322
    %v327 = vadd.f32 %v312, %v323
    %s328 = sld [smem:[#allocation2 + $0x3]]
    %s329 = scalar_lea.vmem %s1, 96
    %v330 = vld [vmem:[%s329] sm:$0xff]
    %v331 = vld [vmem:[%s329 + $0x8] sm:$0xff]
    %v332 = vld [vmem:[%s329 + $0x10] sm:$0xff]
    %v333 = vld [vmem:[%s329 + $0x18] sm:$0xff]
    %v334 = vstv %s328
    %v335 = vmul.f32 %v334, %v330
    %v336 = vmul.f32 %v334, %v331
    %v337 = vmul.f32 %v334, %v332
    %v338 = vmul.f32 %v334, %v333
    %v339 = vadd.f32 %v324, %v335
    %v340 = vadd.f32 %v325, %v336
    %v341 = vadd.f32 %v326, %v337
    %v342 = vadd.f32 %v327, %v338
    %s343 = sld [smem:[#allocation2 + $0x4]]
    %s344 = scalar_lea.vmem %s1, 128
    %v345 = vld [vmem:[%s344] sm:$0xff]
    %v346 = vld [vmem:[%s344 + $0x8] sm:$0xff]
    %v347 = vld [vmem:[%s344 + $0x10] sm:$0xff]
    %v348 = vld [vmem:[%s344 + $0x18] sm:$0xff]
    %v349 = vstv %s343
    %v350 = vmul.f32 %v349, %v345
    %v351 = vmul.f32 %v349, %v346
    %v352 = vmul.f32 %v349, %v347
    %v353 = vmul.f32 %v349, %v348
    %v354 = vadd.f32 %v339, %v350
    %v355 = vadd.f32 %v340, %v351
    %v356 = vadd.f32 %v341, %v352
    %v357 = vadd.f32 %v342, %v353
    %s358 = sld [smem:[#allocation2 + $0x5]]
    %s359 = scalar_lea.vmem %s1, 160
    %v360 = vld [vmem:[%s359] sm:$0xff]
    %v361 = vld [vmem:[%s359 + $0x8] sm:$0xff]
    %v362 = vld [vmem:[%s359 + $0x10] sm:$0xff]
    %v363 = vld [vmem:[%s359 + $0x18] sm:$0xff]
    %v364 = vstv %s358
    %v365 = vmul.f32 %v364, %v360
    %v366 = vmul.f32 %v364, %v361
    %v367 = vmul.f32 %v364, %v362
    %v368 = vmul.f32 %v364, %v363
    %v369 = vadd.f32 %v354, %v365
    %v370 = vadd.f32 %v355, %v366
    %v371 = vadd.f32 %v356, %v367
    %v372 = vadd.f32 %v357, %v368
    %s373 = sld [smem:[#allocation2 + $0x6]]
    %s374 = scalar_lea.vmem %s1, 192
    %v375 = vld [vmem:[%s374] sm:$0xff]
    %v376 = vld [vmem:[%s374 + $0x8] sm:$0xff]
    %v377 = vld [vmem:[%s374 + $0x10] sm:$0xff]
    %v378 = vld [vmem:[%s374 + $0x18] sm:$0xff]
    %v379 = vstv %s373
    %v380 = vmul.f32 %v379, %v375
    %v381 = vmul.f32 %v379, %v376
    %v382 = vmul.f32 %v379, %v377
    %v383 = vmul.f32 %v379, %v378
    %v384 = vadd.f32 %v369, %v380
    %v385 = vadd.f32 %v370, %v381
    %v386 = vadd.f32 %v371, %v382
    %v387 = vadd.f32 %v372, %v383
    %s388 = sld [smem:[#allocation2 + $0x7]]
    %s389 = scalar_lea.vmem %s1, 224
    %v390 = vld [vmem:[%s389] sm:$0xff]
    %v391 = vld [vmem:[%s389 + $0x8] sm:$0xff]
    %v392 = vld [vmem:[%s389 + $0x10] sm:$0xff]
    %v393 = vld [vmem:[%s389 + $0x18] sm:$0xff]
    %v394 = vstv %s388
    %v395 = vmul.f32 %v394, %v390
    %v396 = vmul.f32 %v394, %v391
    %v397 = vmul.f32 %v394, %v392
    %v398 = vmul.f32 %v394, %v393
    %v399 = vadd.f32 %v384, %v395
    %v400 = vadd.f32 %v385, %v396
    %v401 = vadd.f32 %v386, %v397
    %v402 = vadd.f32 %v387, %v398
    %s403 = sld [smem:[#allocation2 + $0x8]]
    %s404 = scalar_lea.vmem %s1, 256
    %v405 = vld [vmem:[%s404] sm:$0xff]
    %v406 = vld [vmem:[%s404 + $0x8] sm:$0xff]
    %v407 = vld [vmem:[%s404 + $0x10] sm:$0xff]
    %v408 = vld [vmem:[%s404 + $0x18] sm:$0xff]
    %v409 = vstv %s403
    %v410 = vmul.f32 %v409, %v405
    %v411 = vmul.f32 %v409, %v406
    %v412 = vmul.f32 %v409, %v407
    %v413 = vmul.f32 %v409, %v408
    %v414 = vadd.f32 %v399, %v410
    %v415 = vadd.f32 %v400, %v411
    %v416 = vadd.f32 %v401, %v412
    %v417 = vadd.f32 %v402, %v413
    %vm418 = vcmask 261120
    %v419 = vsel %vm418, %v276, 0.0
    %420 = vadd.xlane.f32.xlu0 %v419
    %v421 = vpop.xlane.xlu0 %420
    %v422 = vsel %vm418, %v414, 0.0
    %423 = vadd.xlane.f32.xlu0 %v422
    %v424 = vpop.xlane.xlu0 %423
    %v425 = vsel %vm418, %v415, 0.0
    %426 = vadd.xlane.f32.xlu0 %v425
    %v427 = vpop.xlane.xlu0 %426
    %v428 = vsel %vm418, %v416, 0.0
    %429 = vadd.xlane.f32.xlu0 %v428
    %v430 = vpop.xlane.xlu0 %429
    %v431 = vsel %vm418, %v417, 0.0
    %432 = vadd.xlane.f32.xlu0 %v431
    %v433 = vpop.xlane.xlu0 %432
    %v434 = vrcp.pop 32.0
    %v435 = vmul.f32 %v421, %v434
    %v436 = vmul.f32 %v424, %v434
    %v437 = vmul.f32 %v427, %v434
    %v438 = vmul.f32 %v430, %v434
    %v439 = vmul.f32 %v433, %v434
    %v440 = vsub.f32 %v276, %v435
    %v441 = vsub.f32 %v414, %v436
    %v442 = vsub.f32 %v415, %v437
    %v443 = vsub.f32 %v416, %v438
    %v444 = vsub.f32 %v417, %v439
    %v445 = vmul.f32 %v440, %v440
    %v446 = vmul.f32 %v441, %v441
    %v447 = vmul.f32 %v442, %v442
    %v448 = vmul.f32 %v443, %v443
    %v449 = vmul.f32 %v444, %v444
    %v450 = vsel %vm418, %v445, 0.0
    %451 = vadd.xlane.f32.xlu0 %v450
    %v452 = vpop.xlane.xlu0 %451
    %v453 = vsel %vm418, %v446, 0.0
    %454 = vadd.xlane.f32.xlu0 %v453
    %v455 = vpop.xlane.xlu0 %454
    %v456 = vsel %vm418, %v447, 0.0
    %457 = vadd.xlane.f32.xlu0 %v456
    %v458 = vpop.xlane.xlu0 %457
    %v459 = vsel %vm418, %v448, 0.0
    %460 = vadd.xlane.f32.xlu0 %v459
    %v461 = vpop.xlane.xlu0 %460
    %v462 = vsel %vm418, %v449, 0.0
    %463 = vadd.xlane.f32.xlu0 %v462
    %v464 = vpop.xlane.xlu0 %463
    %v465 = vmul.f32 %v452, %v434
    %v466 = vmul.f32 %v455, %v434
    %v467 = vmul.f32 %v458, %v434
    %v468 = vmul.f32 %v461, %v434
    %v469 = vmul.f32 %v464, %v434
    %v470 = vadd.f32 %v465, 1e-06
    %v471 = vadd.f32 %v466, 1e-06
    %v472 = vadd.f32 %v467, 1e-06
    %v473 = vadd.f32 %v468, 1e-06
    %v474 = vadd.f32 %v469, 1e-06
    %v475 = vrsqrt.pop %v470
    %v476 = vrsqrt.pop %v471
    %v477 = vrsqrt.pop %v472
    %v478 = vrsqrt.pop %v473
    %v479 = vrsqrt.pop %v474
    %v480 = vmul.f32 %v440, %v475
    %v481 = vmul.f32 %v441, %v476
    %v482 = vmul.f32 %v442, %v477
    %v483 = vmul.f32 %v443, %v478
    %v484 = vmul.f32 %v444, %v479
    %v485 = vld [vmem:[%s7] sm:$0x1]
    %v487 = vlaneseq
    %v488 = vshrl.u32 %v487, 7
    %v489 = vsub.s32 0, %v488
    %v490 = vrot.slane %v485, %v489
    %v492 = vmul.f32 %v480, %v490
    %v493 = vmul.f32 %v481, %v490
    %v494 = vmul.f32 %v482, %v490
    %v495 = vmul.f32 %v483, %v490
    %v496 = vmul.f32 %v484, %v490
    %s497 = scalar_lea.vmem %s7, 1
    %v498 = vld [vmem:[%s497] sm:$0x1]
    %v500 = vlaneseq
    %v501 = vshrl.u32 %v500, 7
    %v502 = vsub.s32 0, %v501
    %v503 = vrot.slane %v498, %v502
    %v505 = vadd.f32 %v492, %v503
    %v506 = vadd.f32 %v493, %v503
    %v507 = vadd.f32 %v494, %v503
    %v508 = vadd.f32 %v495, %v503
    %v509 = vadd.f32 %v496, %v503
    %v510 = vld [vmem:[%s4] sm:$0xff]
    %v511 = vld [vmem:[%s4 + $0x8] sm:$0xff]
    %v512 = vld [vmem:[%s4 + $0x10] sm:$0xff]
    %v513 = vld [vmem:[%s4 + $0x18] sm:$0xff]
    %v514 = vld [vmem:[%s5] sm:$0x1]
    %v516 = vlaneseq
    %v517 = vshrl.u32 %v516, 7
    %v518 = vsub.s32 0, %v517
    %v519 = vrot.slane %v514, %v518
    %v522 = vsel %vm418, %v505, 0
    %v525 = vsel %vm418, %v506, 0
    %v528 = vsel %vm418, %v507, 0
    %v531 = vsel %vm418, %v508, 0
    %v534 = vsel %vm418, %v509, 0
    %536 = vmatprep.subr.mxu0 0.0
    %537 = vmatpush1.msra.mxu0 %v510
    %538 = vmatprep.subr.mxu0 0.0
    %539 = vmatpush1.msra.mxu0 %v511
    %540 = vmatprep.subr.mxu0 0.0
    %541 = vmatpush1.msra.mxu0 %v512
    %542 = vmatprep.subr.mxu0 0.0
    %543 = vmatpush1.msra.mxu0 %v513
    %544 = vmatprep.subr.mxu0 0.0
    %545 = vmatpush1.msra.mxu0 0.0
    %546 = vmatprep.subr.mxu0 0.0
    %547 = vmatpush1.msra.mxu0 0.0
    %548 = vmatprep.subr.mxu0 0.0
    %549 = vmatpush1.msra.mxu0 0.0
    %550 = vmatprep.subr.mxu0 0.0
    %551 = vmatpush1.msra.mxu0 0.0
    %552 = vmatprep.subr.mxu0 0.0
    %553 = vmatpush1.msra.mxu0 0.0
    %554 = vmatprep.subr.mxu0 0.0
    %555 = vmatpush1.msra.mxu0 0.0
    %556 = vmatprep.subr.mxu0 0.0
    %557 = vmatpush1.msra.mxu0 0.0
    %558 = vmatprep.subr.mxu0 0.0
    %559 = vmatpush1.msra.mxu0 0.0
    %560 = vmatprep.subr.mxu0 0.0
    %561 = vmatpush1.msra.mxu0 0.0
    %562 = vmatprep.subr.mxu0 0.0
    %563 = vmatpush1.msra.mxu0 0.0
    %564 = vmatprep.subr.mxu0 0.0
    %565 = vmatpush1.msra.mxu0 0.0
    %566 = vmatprep.subr.mxu0 0.0
    %567 = vmatpush1.msra.mxu0 0.0
    %568 = vmatprep.subr.mxu0 0.0
    %569 = vmatpush1.msra.mxu0 0.0
    %570 = vmatprep.subr.mxu0 0.0
    %571 = vmatpush1.msra.mxu0 0.0
    %572 = vmatprep.subr.mxu0 0.0
    %573 = vmatpush1.msra.mxu0 0.0
    %574 = vmatprep.subr.mxu0 0.0
    %575 = vmatpush1.msra.mxu0 0.0
    %576 = vmatprep.subr.mxu0 0.0
    %577 = vmatpush1.msra.mxu0 0.0
    %578 = vmatprep.subr.mxu0 0.0
    %579 = vmatpush1.msra.mxu0 0.0
    %580 = vmatprep.subr.mxu0 0.0
    %581 = vmatpush1.msra.mxu0 0.0
    %582 = vmatprep.subr.mxu0 0.0
    %583 = vmatpush1.msra.mxu0 0.0
    %584 = vmatprep.subr.mxu0 0.0
    %585 = vmatpush1.msra.mxu0 0.0
    %586 = vmatprep.subr.mxu0 0.0
    %587 = vmatpush1.msra.mxu0 0.0
    %588 = vmatprep.subr.mxu0 0.0
    %589 = vmatpush1.msra.mxu0 0.0
    %590 = vmatprep.subr.mxu0 0.0
    %591 = vmatpush1.msra.mxu0 0.0
    %592 = vmatprep.subr.mxu0 0.0
    %593 = vmatpush1.msra.mxu0 0.0
    %594 = vmatprep.subr.mxu0 0.0
    %595 = vmatpush1.msra.mxu0 0.0
    %596 = vmatprep.subr.mxu0 0.0
    %597 = vmatpush1.msra.mxu0 0.0
    %598 = vmatprep.subr.mxu0 0.0
    %599 = vmatpush1.msra.mxu0 0.0
    %600 = vmatprep.mubr.f32.mxu0 0.0
    %601 = vmatmul.mubr.f32.gmra.mrb[0].mxu0 %v522
    %v602 = vpop.f32.mrb[0].mxu0
    %v603 = vadd.f32 %v519, %v602
    %v604 = vpop.f32.mrb[0].mxu0
    %605 = vmatprep.mubr.f32.mxu0 0.0
    %606 = vmatmul.mubr.f32.gmra.mrb[0].mxu0 %v525
    %v607 = vpop.f32.mrb[0].mxu0
    %v608 = vadd.f32 %v519, %v607
    %v609 = vpop.f32.mrb[0].mxu0
    %610 = vmatprep.mubr.f32.mxu0 0.0
    %611 = vmatmul.mubr.f32.gmra.mrb[0].mxu0 %v528
    %v612 = vpop.f32.mrb[0].mxu0
    %v613 = vadd.f32 %v519, %v612
    %v614 = vpop.f32.mrb[0].mxu0
    %615 = vmatprep.mubr.f32.mxu0 0.0
    %616 = vmatmul.mubr.f32.gmra.mrb[0].mxu0 %v522
    %v617 = vpop.f32.mrb[0].mxu0
    %v618 = vadd.f32 %v519, %v617
    %v619 = vpop.f32.mrb[0].mxu0
    %620 = vmatprep.mubr.f32.mxu0 0.0
    %621 = vmatmul.mubr.f32.gmra.mrb[0].mxu0 %v531
    %v622 = vpop.f32.mrb[0].mxu0
    %v623 = vadd.f32 %v519, %v622
    %v624 = vpop.f32.mrb[0].mxu0
    %625 = vmatprep.mubr.f32.mxu0 0.0
    %626 = vmatmul.mubr.f32.gmra.mrb[0].mxu0 %v534
    %v627 = vpop.f32.mrb[0].mxu0
    %v628 = vadd.f32 %v519, %v627
    %v629 = vpop.f32.mrb[0].mxu0
    %630 = vdwg.mxu0
    %s631 = scalar_lea.vmem %s4, 128
    %v632 = vld [vmem:[%s631] sm:$0xff]
    %v633 = vld [vmem:[%s631 + $0x8] sm:$0xff]
    %v634 = vld [vmem:[%s631 + $0x10] sm:$0xff]
    %v635 = vld [vmem:[%s631 + $0x18] sm:$0xff]
    %s636 = scalar_lea.vmem %s5, 4
    %v637 = vld [vmem:[%s636] sm:$0x1]
    %v639 = vlaneseq
    %v640 = vshrl.u32 %v639, 7
    %v641 = vsub.s32 0, %v640
    %v642 = vrot.slane %v637, %v641
    %644 = vmatprep.subr.mxu0 0.0
    %645 = vmatpush1.msra.mxu0 %v632
    %646 = vmatprep.subr.mxu0 0.0
    %647 = vmatpush1.msra.mxu0 %v633
    %648 = vmatprep.subr.mxu0 0.0
    %649 = vmatpush1.msra.mxu0 %v634
    %650 = vmatprep.subr.mxu0 0.0
    %651 = vmatpush1.msra.mxu0 %v635
    %652 = vmatprep.subr.mxu0 0.0
    %653 = vmatpush1.msra.mxu0 0.0
    %654 = vmatprep.subr.mxu0 0.0
    %655 = vmatpush1.msra.mxu0 0.0
    %656 = vmatprep.subr.mxu0 0.0
    %657 = vmatpush1.msra.mxu0 0.0
    %658 = vmatprep.subr.mxu0 0.0
    %659 = vmatpush1.msra.mxu0 0.0
    %660 = vmatprep.subr.mxu0 0.0
    %661 = vmatpush1.msra.mxu0 0.0
    %662 = vmatprep.subr.mxu0 0.0
    %663 = vmatpush1.msra.mxu0 0.0
    %664 = vmatprep.subr.mxu0 0.0
    %665 = vmatpush1.msra.mxu0 0.0
    %666 = vmatprep.subr.mxu0 0.0
    %667 = vmatpush1.msra.mxu0 0.0
    %668 = vmatprep.subr.mxu0 0.0
    %669 = vmatpush1.msra.mxu0 0.0
    %670 = vmatprep.subr.mxu0 0.0
    %671 = vmatpush1.msra.mxu0 0.0
    %672 = vmatprep.subr.mxu0 0.0
    %673 = vmatpush1.msra.mxu0 0.0
    %674 = vmatprep.subr.mxu0 0.0
    %675 = vmatpush1.msra.mxu0 0.0
    %676 = vmatprep.subr.mxu0 0.0
    %677 = vmatpush1.msra.mxu0 0.0
    %678 = vmatprep.subr.mxu0 0.0
    %679 = vmatpush1.msra.mxu0 0.0
    %680 = vmatprep.subr.mxu0 0.0
    %681 = vmatpush1.msra.mxu0 0.0
    %682 = vmatprep.subr.mxu0 0.0
    %683 = vmatpush1.msra.mxu0 0.0
    %684 = vmatprep.subr.mxu0 0.0
    %685 = vmatpush1.msra.mxu0 0.0
    %686 = vmatprep.subr.mxu0 0.0
    %687 = vmatpush1.msra.mxu0 0.0
    %688 = vmatprep.subr.mxu0 0.0
    %689 = vmatpush1.msra.mxu0 0.0
    %690 = vmatprep.subr.mxu0 0.0
    %691 = vmatpush1.msra.mxu0 0.0
    %692 = vmatprep.subr.mxu0 0.0
    %693 = vmatpush1.msra.mxu0 0.0
    %694 = vmatprep.subr.mxu0 0.0
    %695 = vmatpush1.msra.mxu0 0.0
    %696 = vmatprep.subr.mxu0 0.0
    %697 = vmatpush1.msra.mxu0 0.0
    %698 = vmatprep.subr.mxu0 0.0
    %699 = vmatpush1.msra.mxu0 0.0
    %700 = vmatprep.subr.mxu0 0.0
    %701 = vmatpush1.msra.mxu0 0.0
    %702 = vmatprep.subr.mxu0 0.0
    %703 = vmatpush1.msra.mxu0 0.0
    %704 = vmatprep.subr.mxu0 0.0
    %705 = vmatpush1.msra.mxu0 0.0
    %706 = vmatprep.subr.mxu0 0.0
    %707 = vmatpush1.msra.mxu0 0.0
    %708 = vmatprep.mubr.f32.mxu0 0.0
    %709 = vmatmul.mubr.f32.gmra.mrb[0].mxu0 %v522
    %v710 = vpop.f32.mrb[0].mxu0
    %v711 = vadd.f32 %v642, %v710
    %v712 = vpop.f32.mrb[0].mxu0
    %713 = vmatprep.mubr.f32.mxu0 0.0
    %714 = vmatmul.mubr.f32.gmra.mrb[0].mxu0 %v525
    %v715 = vpop.f32.mrb[0].mxu0
    %v716 = vadd.f32 %v642, %v715
    %v717 = vpop.f32.mrb[0].mxu0
    %718 = vmatprep.mubr.f32.mxu0 0.0
    %719 = vmatmul.mubr.f32.gmra.mrb[0].mxu0 %v528
    %v720 = vpop.f32.mrb[0].mxu0
    %v721 = vadd.f32 %v642, %v720
    %v722 = vpop.f32.mrb[0].mxu0
    %723 = vmatprep.mubr.f32.mxu0 0.0
    %724 = vmatmul.mubr.f32.gmra.mrb[0].mxu0 %v522
    %v725 = vpop.f32.mrb[0].mxu0
    %v726 = vadd.f32 %v642, %v725
    %v727 = vpop.f32.mrb[0].mxu0
    %728 = vmatprep.mubr.f32.mxu0 0.0
    %729 = vmatmul.mubr.f32.gmra.mrb[0].mxu0 %v531
    %v730 = vpop.f32.mrb[0].mxu0
    %v731 = vadd.f32 %v642, %v730
    %v732 = vpop.f32.mrb[0].mxu0
    %733 = vmatprep.mubr.f32.mxu0 0.0
    %734 = vmatmul.mubr.f32.gmra.mrb[0].mxu0 %v534
    %v735 = vpop.f32.mrb[0].mxu0
    %v736 = vadd.f32 %v642, %v735
    %v737 = vpop.f32.mrb[0].mxu0
    %738 = vdwg.mxu0
    %s739 = scalar_lea.vmem %s4, 256
    %v740 = vld [vmem:[%s739] sm:$0xff]
    %v741 = vld [vmem:[%s739 + $0x8] sm:$0xff]
    %v742 = vld [vmem:[%s739 + $0x10] sm:$0xff]
    %v743 = vld [vmem:[%s739 + $0x18] sm:$0xff]
    %s744 = scalar_lea.vmem %s5, 8
    %v745 = vld [vmem:[%s744] sm:$0x1]
    %v747 = vlaneseq
    %v748 = vshrl.u32 %v747, 7
    %v749 = vsub.s32 0, %v748
    %v750 = vrot.slane %v745, %v749
    %752 = vmatprep.subr.mxu0 0.0
    %753 = vmatpush1.msra.mxu0 %v740
    %754 = vmatprep.subr.mxu0 0.0
    %755 = vmatpush1.msra.mxu0 %v741
    %756 = vmatprep.subr.mxu0 0.0
    %757 = vmatpush1.msra.mxu0 %v742
    %758 = vmatprep.subr.mxu0 0.0
    %759 = vmatpush1.msra.mxu0 %v743
    %760 = vmatprep.subr.mxu0 0.0
    %761 = vmatpush1.msra.mxu0 0.0
    %762 = vmatprep.subr.mxu0 0.0
    %763 = vmatpush1.msra.mxu0 0.0
    %764 = vmatprep.subr.mxu0 0.0
    %765 = vmatpush1.msra.mxu0 0.0
    %766 = vmatprep.subr.mxu0 0.0
    %767 = vmatpush1.msra.mxu0 0.0
    %768 = vmatprep.subr.mxu0 0.0
    %769 = vmatpush1.msra.mxu0 0.0
    %770 = vmatprep.subr.mxu0 0.0
    %771 = vmatpush1.msra.mxu0 0.0
    %772 = vmatprep.subr.mxu0 0.0
    %773 = vmatpush1.msra.mxu0 0.0
    %774 = vmatprep.subr.mxu0 0.0
    %775 = vmatpush1.msra.mxu0 0.0
    %776 = vmatprep.subr.mxu0 0.0
    %777 = vmatpush1.msra.mxu0 0.0
    %778 = vmatprep.subr.mxu0 0.0
    %779 = vmatpush1.msra.mxu0 0.0
    %780 = vmatprep.subr.mxu0 0.0
    %781 = vmatpush1.msra.mxu0 0.0
    %782 = vmatprep.subr.mxu0 0.0
    %783 = vmatpush1.msra.mxu0 0.0
    %784 = vmatprep.subr.mxu0 0.0
    %785 = vmatpush1.msra.mxu0 0.0
    %786 = vmatprep.subr.mxu0 0.0
    %787 = vmatpush1.msra.mxu0 0.0
    %788 = vmatprep.subr.mxu0 0.0
    %789 = vmatpush1.msra.mxu0 0.0
    %790 = vmatprep.subr.mxu0 0.0
    %791 = vmatpush1.msra.mxu0 0.0
    %792 = vmatprep.subr.mxu0 0.0
    %793 = vmatpush1.msra.mxu0 0.0
    %794 = vmatprep.subr.mxu0 0.0
    %795 = vmatpush1.msra.mxu0 0.0
    %796 = vmatprep.subr.mxu0 0.0
    %797 = vmatpush1.msra.mxu0 0.0
    %798 = vmatprep.subr.mxu0 0.0
    %799 = vmatpush1.msra.mxu0 0.0
    %800 = vmatprep.subr.mxu0 0.0
    %801 = vmatpush1.msra.mxu0 0.0
    %802 = vmatprep.subr.mxu0 0.0
    %803 = vmatpush1.msra.mxu0 0.0
    %804 = vmatprep.subr.mxu0 0.0
    %805 = vmatpush1.msra.mxu0 0.0
    %806 = vmatprep.subr.mxu0 0.0
    %807 = vmatpush1.msra.mxu0 0.0
    %808 = vmatprep.subr.mxu0 0.0
    %809 = vmatpush1.msra.mxu0 0.0
    %810 = vmatprep.subr.mxu0 0.0
    %811 = vmatpush1.msra.mxu0 0.0
    %812 = vmatprep.subr.mxu0 0.0
    %813 = vmatpush1.msra.mxu0 0.0
    %814 = vmatprep.subr.mxu0 0.0
    %815 = vmatpush1.msra.mxu0 0.0
    %816 = vmatprep.mubr.f32.mxu0 0.0
    %817 = vmatmul.mubr.f32.gmra.mrb[0].mxu0 %v522
    %v818 = vpop.f32.mrb[0].mxu0
    %v819 = vadd.f32 %v750, %v818
    %v820 = vpop.f32.mrb[0].mxu0
    %821 = vmatprep.mubr.f32.mxu0 0.0
    %822 = vmatmul.mubr.f32.gmra.mrb[0].mxu0 %v525
    %v823 = vpop.f32.mrb[0].mxu0
    %v824 = vadd.f32 %v750, %v823
    %v825 = vpop.f32.mrb[0].mxu0
    %826 = vmatprep.mubr.f32.mxu0 0.0
    %827 = vmatmul.mubr.f32.gmra.mrb[0].mxu0 %v528
    %v828 = vpop.f32.mrb[0].mxu0
    %v829 = vadd.f32 %v750, %v828
    %v830 = vpop.f32.mrb[0].mxu0
    %831 = vmatprep.mubr.f32.mxu0 0.0
    %832 = vmatmul.mubr.f32.gmra.mrb[0].mxu0 %v522
    %v833 = vpop.f32.mrb[0].mxu0
    %v834 = vadd.f32 %v750, %v833
    %v835 = vpop.f32.mrb[0].mxu0
    %836 = vmatprep.mubr.f32.mxu0 0.0
    %837 = vmatmul.mubr.f32.gmra.mrb[0].mxu0 %v531
    %v838 = vpop.f32.mrb[0].mxu0
    %v839 = vadd.f32 %v750, %v838
    %v840 = vpop.f32.mrb[0].mxu0
    %841 = vmatprep.mubr.f32.mxu0 0.0
    %842 = vmatmul.mubr.f32.gmra.mrb[0].mxu0 %v534
    %v843 = vpop.f32.mrb[0].mxu0
    %v844 = vadd.f32 %v750, %v843
    %v845 = vpop.f32.mrb[0].mxu0
    %846 = vdwg.mxu0
    %vm847 = vcmask 64512
    %v849 = vsel %vm847, %v603, 0
    %v852 = vsel %vm847, %v608, 0
    %v855 = vsel %vm847, %v613, 0
    %v858 = vsel %vm847, %v711, 0
    %v861 = vsel %vm847, %v716, 0
    %v864 = vsel %vm847, %v721, 0
    %866 = vmatprep.subr.mxu0 0.0
    %867 = vmatpush1.xpose.msra.mxu0 %v858
    %868 = vmatprep.subr.mxu0 0.0
    %869 = vmatpush1.xpose.msra.mxu0 %v861
    %870 = vmatprep.subr.mxu0 0.0
    %871 = vmatpush1.xpose.msra.mxu0 %v864
    %872 = vmatprep.subr.mxu0 0.0
    %873 = vmatpush1.xpose.msra.mxu0 0.0
    %874 = vmatprep.subr.mxu0 0.0
    %875 = vmatpush1.xpose.msra.mxu0 0.0
    %876 = vmatprep.subr.mxu0 0.0
    %877 = vmatpush1.xpose.msra.mxu0 0.0
    %878 = vmatprep.subr.mxu0 0.0
    %879 = vmatpush1.xpose.msra.mxu0 0.0
    %880 = vmatprep.subr.mxu0 0.0
    %881 = vmatpush1.xpose.msra.mxu0 0.0
    %882 = vmatprep.subr.mxu0 0.0
    %883 = vmatpush1.xpose.msra.mxu0 0.0
    %884 = vmatprep.subr.mxu0 0.0
    %885 = vmatpush1.xpose.msra.mxu0 0.0
    %886 = vmatprep.subr.mxu0 0.0
    %887 = vmatpush1.xpose.msra.mxu0 0.0
    %888 = vmatprep.subr.mxu0 0.0
    %889 = vmatpush1.xpose.msra.mxu0 0.0
    %890 = vmatprep.subr.mxu0 0.0
    %891 = vmatpush1.xpose.msra.mxu0 0.0
    %892 = vmatprep.subr.mxu0 0.0
    %893 = vmatpush1.xpose.msra.mxu0 0.0
    %894 = vmatprep.subr.mxu0 0.0
    %895 = vmatpush1.xpose.msra.mxu0 0.0
    %896 = vmatprep.subr.mxu0 0.0
    %897 = vmatpush1.xpose.msra.mxu0 0.0
    %898 = vmatprep.subr.mxu0 0.0
    %899 = vmatpush1.xpose.msra.mxu0 0.0
    %900 = vmatprep.subr.mxu0 0.0
    %901 = vmatpush1.xpose.msra.mxu0 0.0
    %902 = vmatprep.subr.mxu0 0.0
    %903 = vmatpush1.xpose.msra.mxu0 0.0
    %904 = vmatprep.subr.mxu0 0.0
    %905 = vmatpush1.xpose.msra.mxu0 0.0
    %906 = vmatprep.subr.mxu0 0.0
    %907 = vmatpush1.xpose.msra.mxu0 0.0
    %908 = vmatprep.subr.mxu0 0.0
    %909 = vmatpush1.xpose.msra.mxu0 0.0
    %910 = vmatprep.subr.mxu0 0.0
    %911 = vmatpush1.xpose.msra.mxu0 0.0
    %912 = vmatprep.subr.mxu0 0.0
    %913 = vmatpush1.xpose.msra.mxu0 0.0
    %914 = vmatprep.subr.mxu0 0.0
    %915 = vmatpush1.xpose.msra.mxu0 0.0
    %916 = vmatprep.subr.mxu0 0.0
    %917 = vmatpush1.xpose.msra.mxu0 0.0
    %918 = vmatprep.subr.mxu0 0.0
    %919 = vmatpush1.xpose.msra.mxu0 0.0
    %920 = vmatprep.subr.mxu0 0.0
    %921 = vmatpush1.xpose.msra.mxu0 0.0
    %922 = vmatprep.subr.mxu0 0.0
    %923 = vmatpush1.xpose.msra.mxu0 0.0
    %924 = vmatprep.subr.mxu0 0.0
    %925 = vmatpush1.xpose.msra.mxu0 0.0
    %926 = vmatprep.subr.mxu0 0.0
    %927 = vmatpush1.xpose.msra.mxu0 0.0
    %928 = vmatprep.subr.mxu0 0.0
    %929 = vmatpush1.xpose.msra.mxu0 0.0
    %930 = vmatprep.mubr.f32.mxu0 0.0
    %931 = vmatmul.mubr.f32.gmra.mrb[0].mxu0 %v849
    %v932 = vpop.f32.mrb[0].mxu0
    %v933 = vadd.f32 0.0, %v932
    %v934 = vpop.f32.mrb[0].mxu0
    %935 = vmatprep.mubr.f32.mxu0 0.0
    %936 = vmatmul.mubr.f32.gmra.mrb[0].mxu0 %v852
    %v937 = vpop.f32.mrb[0].mxu0
    %v938 = vadd.f32 0.0, %v937
    %v939 = vpop.f32.mrb[0].mxu0
    %940 = vmatprep.mubr.f32.mxu0 0.0
    %941 = vmatmul.mubr.f32.gmra.mrb[0].mxu0 %v855
    %v942 = vpop.f32.mrb[0].mxu0
    %v943 = vadd.f32 0.0, %v942
    %v944 = vpop.f32.mrb[0].mxu0
    %945 = vdwg.mxu0
    %v947 = vsel %vm847, %v618, 0
    %v950 = vsel %vm847, %v623, 0
    %v953 = vsel %vm847, %v628, 0
    %v956 = vsel %vm847, %v726, 0
    %v959 = vsel %vm847, %v731, 0
    %v962 = vsel %vm847, %v736, 0
    %964 = vmatprep.subr.mxu0 0.0
    %965 = vmatpush1.xpose.msra.mxu0 %v956
    %966 = vmatprep.subr.mxu0 0.0
    %967 = vmatpush1.xpose.msra.mxu0 %v959
    %968 = vmatprep.subr.mxu0 0.0
    %969 = vmatpush1.xpose.msra.mxu0 %v962
    %970 = vmatprep.subr.mxu0 0.0
    %971 = vmatpush1.xpose.msra.mxu0 0.0
    %972 = vmatprep.subr.mxu0 0.0
    %973 = vmatpush1.xpose.msra.mxu0 0.0
    %974 = vmatprep.subr.mxu0 0.0
    %975 = vmatpush1.xpose.msra.mxu0 0.0
    %976 = vmatprep.subr.mxu0 0.0
    %977 = vmatpush1.xpose.msra.mxu0 0.0
    %978 = vmatprep.subr.mxu0 0.0
    %979 = vmatpush1.xpose.msra.mxu0 0.0
    %980 = vmatprep.subr.mxu0 0.0
    %981 = vmatpush1.xpose.msra.mxu0 0.0
    %982 = vmatprep.subr.mxu0 0.0
    %983 = vmatpush1.xpose.msra.mxu0 0.0
    %984 = vmatprep.subr.mxu0 0.0
    %985 = vmatpush1.xpose.msra.mxu0 0.0
    %986 = vmatprep.subr.mxu0 0.0
    %987 = vmatpush1.xpose.msra.mxu0 0.0
    %988 = vmatprep.subr.mxu0 0.0
    %989 = vmatpush1.xpose.msra.mxu0 0.0
    %990 = vmatprep.subr.mxu0 0.0
    %991 = vmatpush1.xpose.msra.mxu0 0.0
    %992 = vmatprep.subr.mxu0 0.0
    %993 = vmatpush1.xpose.msra.mxu0 0.0
    %994 = vmatprep.subr.mxu0 0.0
    %995 = vmatpush1.xpose.msra.mxu0 0.0
    %996 = vmatprep.subr.mxu0 0.0
    %997 = vmatpush1.xpose.msra.mxu0 0.0
    %998 = vmatprep.subr.mxu0 0.0
    %999 = vmatpush1.xpose.msra.mxu0 0.0
    %1000 = vmatprep.subr.mxu0 0.0
    %1001 = vmatpush1.xpose.msra.mxu0 0.0
    %1002 = vmatprep.subr.mxu0 0.0
    %1003 = vmatpush1.xpose.msra.mxu0 0.0
    %1004 = vmatprep.subr.mxu0 0.0
    %1005 = vmatpush1.xpose.msra.mxu0 0.0
    %1006 = vmatprep.subr.mxu0 0.0
    %1007 = vmatpush1.xpose.msra.mxu0 0.0
    %1008 = vmatprep.subr.mxu0 0.0
    %1009 = vmatpush1.xpose.msra.mxu0 0.0
    %1010 = vmatprep.subr.mxu0 0.0
    %1011 = vmatpush1.xpose.msra.mxu0 0.0
    %1012 = vmatprep.subr.mxu0 0.0
    %1013 = vmatpush1.xpose.msra.mxu0 0.0
    %1014 = vmatprep.subr.mxu0 0.0
    %1015 = vmatpush1.xpose.msra.mxu0 0.0
    %1016 = vmatprep.subr.mxu0 0.0
    %1017 = vmatpush1.xpose.msra.mxu0 0.0
    %1018 = vmatprep.subr.mxu0 0.0
    %1019 = vmatpush1.xpose.msra.mxu0 0.0
    %1020 = vmatprep.subr.mxu0 0.0
    %1021 = vmatpush1.xpose.msra.mxu0 0.0
    %1022 = vmatprep.subr.mxu0 0.0
    %1023 = vmatpush1.xpose.msra.mxu0 0.0
    %1024 = vmatprep.subr.mxu0 0.0
    %1025 = vmatpush1.xpose.msra.mxu0 0.0
    %1026 = vmatprep.subr.mxu0 0.0
    %1027 = vmatpush1.xpose.msra.mxu0 0.0
    %1028 = vmatprep.mubr.f32.mxu0 0.0
    %1029 = vmatmul.mubr.f32.gmra.mrb[0].mxu0 %v947
    %v1030 = vpop.f32.mrb[0].mxu0
    %v1031 = vadd.f32 0.0, %v1030
    %v1032 = vpop.f32.mrb[0].mxu0
    %1033 = vmatprep.mubr.f32.mxu0 0.0
    %1034 = vmatmul.mubr.f32.gmra.mrb[0].mxu0 %v950
    %v1035 = vpop.f32.mrb[0].mxu0
    %v1036 = vadd.f32 0.0, %v1035
    %v1037 = vpop.f32.mrb[0].mxu0
    %1038 = vmatprep.mubr.f32.mxu0 0.0
    %1039 = vmatmul.mubr.f32.gmra.mrb[0].mxu0 %v953
    %v1040 = vpop.f32.mrb[0].mxu0
    %v1041 = vadd.f32 0.0, %v1040
    %v1042 = vpop.f32.mrb[0].mxu0
    %1043 = vdwg.mxu0
    %v1044 = vmul.f32 %v933, 0.35355338
    %v1045 = vmul.f32 %v938, 0.35355338
    %v1046 = vmul.f32 %v943, 0.35355338
    %v1047 = vmul.f32 %v1031, 0.35355338
    %v1048 = vmul.f32 %v1036, 0.35355338
    %v1049 = vmul.f32 %v1041, 0.35355338
    %vm1050 = vcmask 195584
    %v1051 = vsel %vm1050, %v1044, -inf
    %1052 = vmax.xlane.f32.xlu0 %v1051
    %v1053 = vpop.xlane.xlu0 %1052
    %v1054 = vsel %vm1050, %v1045, -inf
    %1055 = vmax.xlane.f32.xlu0 %v1054
    %v1056 = vpop.xlane.xlu0 %1055
    %v1057 = vsel %vm1050, %v1046, -inf
    %1058 = vmax.xlane.f32.xlu0 %v1057
    %v1059 = vpop.xlane.xlu0 %1058
    %v1060 = vsel %vm1050, %v1047, -inf
    %1061 = vmax.xlane.f32.xlu0 %v1060
    %v1062 = vpop.xlane.xlu0 %1061
    %v1063 = vsel %vm1050, %v1048, -inf
    %1064 = vmax.xlane.f32.xlu0 %v1063
    %v1065 = vpop.xlane.xlu0 %1064
    %v1066 = vsel %vm1050, %v1049, -inf
    %1067 = vmax.xlane.f32.xlu0 %v1066
    %v1068 = vpop.xlane.xlu0 %1067
    %v1069 = vsub.f32 %v1044, %v1053
    %v1070 = vsub.f32 %v1045, %v1056
    %v1071 = vsub.f32 %v1046, %v1059
    %v1072 = vsub.f32 %v1047, %v1062
    %v1073 = vsub.f32 %v1048, %v1065
    %v1074 = vsub.f32 %v1049, %v1068
    %v1075 = vmul.f32 %v1069, 1.442695
    %v1076 = vpow.pop %v1075
    %v1077 = vmul.f32 %v1070, 1.442695
    %v1078 = vpow.pop %v1077
    %v1079 = vmul.f32 %v1071, 1.442695
    %v1080 = vpow.pop %v1079
    %v1081 = vmul.f32 %v1072, 1.442695
    %v1082 = vpow.pop %v1081
    %v1083 = vmul.f32 %v1073, 1.442695
    %v1084 = vpow.pop %v1083
    %v1085 = vmul.f32 %v1074, 1.442695
    %v1086 = vpow.pop %v1085
    %v1087 = vsel %vm1050, %v1076, 0.0
    %1088 = vadd.xlane.f32.xlu0 %v1087
    %v1089 = vpop.xlane.xlu0 %1088
    %v1090 = vsel %vm1050, %v1078, 0.0
    %1091 = vadd.xlane.f32.xlu0 %v1090
    %v1092 = vpop.xlane.xlu0 %1091
    %v1093 = vsel %vm1050, %v1080, 0.0
    %1094 = vadd.xlane.f32.xlu0 %v1093
    %v1095 = vpop.xlane.xlu0 %1094
    %v1096 = vsel %vm1050, %v1082, 0.0
    %1097 = vadd.xlane.f32.xlu0 %v1096
    %v1098 = vpop.xlane.xlu0 %1097
    %v1099 = vsel %vm1050, %v1084, 0.0
    %1100 = vadd.xlane.f32.xlu0 %v1099
    %v1101 = vpop.xlane.xlu0 %1100
    %v1102 = vsel %vm1050, %v1086, 0.0
    %1103 = vadd.xlane.f32.xlu0 %v1102
    %v1104 = vpop.xlane.xlu0 %1103
    %v1105 = vrcp.pop %v1089
    %v1106 = vrcp.pop %v1092
    %v1107 = vrcp.pop %v1095
    %v1108 = vrcp.pop %v1098
    %v1109 = vrcp.pop %v1101
    %v1110 = vrcp.pop %v1104
    %v1111 = vmul.f32 %v1076, %v1105
    %v1112 = vmul.f32 %v1078, %v1106
    %v1113 = vmul.f32 %v1080, %v1107
    %v1114 = vmul.f32 %v1082, %v1108
    %v1115 = vmul.f32 %v1084, %v1109
    %v1116 = vmul.f32 %v1086, %v1110
    %v1118 = vsel %vm1050, %v1111, 0
    %v1121 = vsel %vm1050, %v1112, 0
    %v1124 = vsel %vm1050, %v1113, 0
    %1126 = vmatprep.subr.mxu0 0.0
    %1127 = vmatpush1.msra.mxu0 %v819
    %1128 = vmatprep.subr.mxu0 0.0
    %1129 = vmatpush1.msra.mxu0 %v824
    %1130 = vmatprep.subr.mxu0 0.0
    %1131 = vmatpush1.msra.mxu0 %v829
    %1132 = vmatprep.subr.mxu0 0.0
    %1133 = vmatpush1.msra.mxu0 0.0
    %1134 = vmatprep.subr.mxu0 0.0
    %1135 = vmatpush1.msra.mxu0 0.0
    %1136 = vmatprep.subr.mxu0 0.0
    %1137 = vmatpush1.msra.mxu0 0.0
    %1138 = vmatprep.subr.mxu0 0.0
    %1139 = vmatpush1.msra.mxu0 0.0
    %1140 = vmatprep.subr.mxu0 0.0
    %1141 = vmatpush1.msra.mxu0 0.0
    %1142 = vmatprep.subr.mxu0 0.0
    %1143 = vmatpush1.msra.mxu0 0.0
    %1144 = vmatprep.subr.mxu0 0.0
    %1145 = vmatpush1.msra.mxu0 0.0
    %1146 = vmatprep.subr.mxu0 0.0
    %1147 = vmatpush1.msra.mxu0 0.0
    %1148 = vmatprep.subr.mxu0 0.0
    %1149 = vmatpush1.msra.mxu0 0.0
    %1150 = vmatprep.subr.mxu0 0.0
    %1151 = vmatpush1.msra.mxu0 0.0
    %1152 = vmatprep.subr.mxu0 0.0
    %1153 = vmatpush1.msra.mxu0 0.0
    %1154 = vmatprep.subr.mxu0 0.0
    %1155 = vmatpush1.msra.mxu0 0.0
    %1156 = vmatprep.subr.mxu0 0.0
    %1157 = vmatpush1.msra.mxu0 0.0
    %1158 = vmatprep.subr.mxu0 0.0
    %1159 = vmatpush1.msra.mxu0 0.0
    %1160 = vmatprep.subr.mxu0 0.0
    %1161 = vmatpush1.msra.mxu0 0.0
    %1162 = vmatprep.subr.mxu0 0.0
    %1163 = vmatpush1.msra.mxu0 0.0
    %1164 = vmatprep.subr.mxu0 0.0
    %1165 = vmatpush1.msra.mxu0 0.0
    %1166 = vmatprep.subr.mxu0 0.0
    %1167 = vmatpush1.msra.mxu0 0.0
    %1168 = vmatprep.subr.mxu0 0.0
    %1169 = vmatpush1.msra.mxu0 0.0
    %1170 = vmatprep.subr.mxu0 0.0
    %1171 = vmatpush1.msra.mxu0 0.0
    %1172 = vmatprep.subr.mxu0 0.0
    %1173 = vmatpush1.msra.mxu0 0.0
    %1174 = vmatprep.subr.mxu0 0.0
    %1175 = vmatpush1.msra.mxu0 0.0
    %1176 = vmatprep.subr.mxu0 0.0
    %1177 = vmatpush1.msra.mxu0 0.0
    %1178 = vmatprep.subr.mxu0 0.0
    %1179 = vmatpush1.msra.mxu0 0.0
    %1180 = vmatprep.subr.mxu0 0.0
    %1181 = vmatpush1.msra.mxu0 0.0
    %1182 = vmatprep.subr.mxu0 0.0
    %1183 = vmatpush1.msra.mxu0 0.0
    %1184 = vmatprep.subr.mxu0 0.0
    %1185 = vmatpush1.msra.mxu0 0.0
    %1186 = vmatprep.subr.mxu0 0.0
    %1187 = vmatpush1.msra.mxu0 0.0
    %1188 = vmatprep.subr.mxu0 0.0
    %1189 = vmatpush1.msra.mxu0 0.0
    %1190 = vmatprep.mubr.f32.mxu0 0.0
    %1191 = vmatmul.mubr.f32.gmra.mrb[0].mxu0 %v1118
    %v1192 = vpop.f32.mrb[0].mxu0
    %v1193 = vadd.f32 0.0, %v1192
    %v1194 = vpop.f32.mrb[0].mxu0
    %1195 = vmatprep.mubr.f32.mxu0 0.0
    %1196 = vmatmul.mubr.f32.gmra.mrb[0].mxu0 %v1121
    %v1197 = vpop.f32.mrb[0].mxu0
    %v1198 = vadd.f32 0.0, %v1197
    %v1199 = vpop.f32.mrb[0].mxu0
    %1200 = vmatprep.mubr.f32.mxu0 0.0
    %1201 = vmatmul.mubr.f32.gmra.mrb[0].mxu0 %v1124
    %v1202 = vpop.f32.mrb[0].mxu0
    %v1203 = vadd.f32 0.0, %v1202
    %v1204 = vpop.f32.mrb[0].mxu0
    %1205 = vdwg.mxu0
    %v1207 = vsel %vm1050, %v1114, 0
    %v1210 = vsel %vm1050, %v1115, 0
    %v1213 = vsel %vm1050, %v1116, 0
    %1215 = vmatprep.subr.mxu0 0.0
    %1216 = vmatpush1.msra.mxu0 %v834
    %1217 = vmatprep.subr.mxu0 0.0
    %1218 = vmatpush1.msra.mxu0 %v839
    %1219 = vmatprep.subr.mxu0 0.0
    %1220 = vmatpush1.msra.mxu0 %v844
    %1221 = vmatprep.subr.mxu0 0.0
    %1222 = vmatpush1.msra.mxu0 0.0
    %1223 = vmatprep.subr.mxu0 0.0
    %1224 = vmatpush1.msra.mxu0 0.0
    %1225 = vmatprep.subr.mxu0 0.0
    %1226 = vmatpush1.msra.mxu0 0.0
    %1227 = vmatprep.subr.mxu0 0.0
    %1228 = vmatpush1.msra.mxu0 0.0
    %1229 = vmatprep.subr.mxu0 0.0
    %1230 = vmatpush1.msra.mxu0 0.0
    %1231 = vmatprep.subr.mxu0 0.0
    %1232 = vmatpush1.msra.mxu0 0.0
    %1233 = vmatprep.subr.mxu0 0.0
    %1234 = vmatpush1.msra.mxu0 0.0
    %1235 = vmatprep.subr.mxu0 0.0
    %1236 = vmatpush1.msra.mxu0 0.0
    %1237 = vmatprep.subr.mxu0 0.0
    %1238 = vmatpush1.msra.mxu0 0.0
    %1239 = vmatprep.subr.mxu0 0.0
    %1240 = vmatpush1.msra.mxu0 0.0
    %1241 = vmatprep.subr.mxu0 0.0
    %1242 = vmatpush1.msra.mxu0 0.0
    %1243 = vmatprep.subr.mxu0 0.0
    %1244 = vmatpush1.msra.mxu0 0.0
    %1245 = vmatprep.subr.mxu0 0.0
    %1246 = vmatpush1.msra.mxu0 0.0
    %1247 = vmatprep.subr.mxu0 0.0
    %1248 = vmatpush1.msra.mxu0 0.0
    %1249 = vmatprep.subr.mxu0 0.0
    %1250 = vmatpush1.msra.mxu0 0.0
    %1251 = vmatprep.subr.mxu0 0.0
    %1252 = vmatpush1.msra.mxu0 0.0
    %1253 = vmatprep.subr.mxu0 0.0
    %1254 = vmatpush1.msra.mxu0 0.0
    %1255 = vmatprep.subr.mxu0 0.0
    %1256 = vmatpush1.msra.mxu0 0.0
    %1257 = vmatprep.subr.mxu0 0.0
    %1258 = vmatpush1.msra.mxu0 0.0
    %1259 = vmatprep.subr.mxu0 0.0
    %1260 = vmatpush1.msra.mxu0 0.0
    %1261 = vmatprep.subr.mxu0 0.0
    %1262 = vmatpush1.msra.mxu0 0.0
    %1263 = vmatprep.subr.mxu0 0.0
    %1264 = vmatpush1.msra.mxu0 0.0
    %1265 = vmatprep.subr.mxu0 0.0
    %1266 = vmatpush1.msra.mxu0 0.0
    %1267 = vmatprep.subr.mxu0 0.0
    %1268 = vmatpush1.msra.mxu0 0.0
    %1269 = vmatprep.subr.mxu0 0.0
    %1270 = vmatpush1.msra.mxu0 0.0
    %1271 = vmatprep.subr.mxu0 0.0
    %1272 = vmatpush1.msra.mxu0 0.0
    %1273 = vmatprep.subr.mxu0 0.0
    %1274 = vmatpush1.msra.mxu0 0.0
    %1275 = vmatprep.subr.mxu0 0.0
    %1276 = vmatpush1.msra.mxu0 0.0
    %1277 = vmatprep.subr.mxu0 0.0
    %1278 = vmatpush1.msra.mxu0 0.0
    %1279 = vmatprep.mubr.f32.mxu0 0.0
    %1280 = vmatmul.mubr.f32.gmra.mrb[0].mxu0 %v1207
    %v1281 = vpop.f32.mrb[0].mxu0
    %v1282 = vadd.f32 0.0, %v1281
    %v1283 = vpop.f32.mrb[0].mxu0
    %1284 = vmatprep.mubr.f32.mxu0 0.0
    %1285 = vmatmul.mubr.f32.gmra.mrb[0].mxu0 %v1210
    %v1286 = vpop.f32.mrb[0].mxu0
    %v1287 = vadd.f32 0.0, %v1286
    %v1288 = vpop.f32.mrb[0].mxu0
    %1289 = vmatprep.mubr.f32.mxu0 0.0
    %1290 = vmatmul.mubr.f32.gmra.mrb[0].mxu0 %v1213
    %v1291 = vpop.f32.mrb[0].mxu0
    %v1292 = vadd.f32 0.0, %v1291
    %v1293 = vpop.f32.mrb[0].mxu0
    %1294 = vdwg.mxu0
    %v1295 = vld [vmem:[%s6] sm:$0xff]
    %s1296 = scalar_lea.vmem %s4, 32
    %v1297 = vld [vmem:[%s1296] sm:$0xff]
    %v1298 = vld [vmem:[%s1296 + $0x8] sm:$0xff]
    %v1299 = vld [vmem:[%s1296 + $0x10] sm:$0xff]
    %v1300 = vld [vmem:[%s1296 + $0x18] sm:$0xff]
    %s1301 = scalar_lea.vmem %s5, 1
    %v1302 = vld [vmem:[%s1301] sm:$0x1]
    %v1304 = vlaneseq
    %v1305 = vshrl.u32 %v1304, 7
    %v1306 = vsub.s32 0, %v1305
    %v1307 = vrot.slane %v1302, %v1306
    %1309 = vmatprep.subr.mxu0 0.0
    %1310 = vmatpush1.msra.mxu0 %v1297
    %1311 = vmatprep.subr.mxu0 0.0
    %1312 = vmatpush1.msra.mxu0 %v1298
    %1313 = vmatprep.subr.mxu0 0.0
    %1314 = vmatpush1.msra.mxu0 %v1299
    %1315 = vmatprep.subr.mxu0 0.0
    %1316 = vmatpush1.msra.mxu0 %v1300
    %1317 = vmatprep.subr.mxu0 0.0
    %1318 = vmatpush1.msra.mxu0 0.0
    %1319 = vmatprep.subr.mxu0 0.0
    %1320 = vmatpush1.msra.mxu0 0.0
    %1321 = vmatprep.subr.mxu0 0.0
    %1322 = vmatpush1.msra.mxu0 0.0
    %1323 = vmatprep.subr.mxu0 0.0
    %1324 = vmatpush1.msra.mxu0 0.0
    %1325 = vmatprep.subr.mxu0 0.0
    %1326 = vmatpush1.msra.mxu0 0.0
    %1327 = vmatprep.subr.mxu0 0.0
    %1328 = vmatpush1.msra.mxu0 0.0
    %1329 = vmatprep.subr.mxu0 0.0
    %1330 = vmatpush1.msra.mxu0 0.0
    %1331 = vmatprep.subr.mxu0 0.0
    %1332 = vmatpush1.msra.mxu0 0.0
    %1333 = vmatprep.subr.mxu0 0.0
    %1334 = vmatpush1.msra.mxu0 0.0
    %1335 = vmatprep.subr.mxu0 0.0
    %1336 = vmatpush1.msra.mxu0 0.0
    %1337 = vmatprep.subr.mxu0 0.0
    %1338 = vmatpush1.msra.mxu0 0.0
    %1339 = vmatprep.subr.mxu0 0.0
    %1340 = vmatpush1.msra.mxu0 0.0
    %1341 = vmatprep.subr.mxu0 0.0
    %1342 = vmatpush1.msra.mxu0 0.0
    %1343 = vmatprep.subr.mxu0 0.0
    %1344 = vmatpush1.msra.mxu0 0.0
    %1345 = vmatprep.subr.mxu0 0.0
    %1346 = vmatpush1.msra.mxu0 0.0
    %1347 = vmatprep.subr.mxu0 0.0
    %1348 = vmatpush1.msra.mxu0 0.0
    %1349 = vmatprep.subr.mxu0 0.0
    %1350 = vmatpush1.msra.mxu0 0.0
    %1351 = vmatprep.subr.mxu0 0.0
    %1352 = vmatpush1.msra.mxu0 0.0
    %1353 = vmatprep.subr.mxu0 0.0
    %1354 = vmatpush1.msra.mxu0 0.0
    %1355 = vmatprep.subr.mxu0 0.0
    %1356 = vmatpush1.msra.mxu0 0.0
    %1357 = vmatprep.subr.mxu0 0.0
    %1358 = vmatpush1.msra.mxu0 0.0
    %1359 = vmatprep.subr.mxu0 0.0
    %1360 = vmatpush1.msra.mxu0 0.0
    %1361 = vmatprep.subr.mxu0 0.0
    %1362 = vmatpush1.msra.mxu0 0.0
    %1363 = vmatprep.subr.mxu0 0.0
    %1364 = vmatpush1.msra.mxu0 0.0
    %1365 = vmatprep.subr.mxu0 0.0
    %1366 = vmatpush1.msra.mxu0 0.0
    %1367 = vmatprep.subr.mxu0 0.0
    %1368 = vmatpush1.msra.mxu0 0.0
    %1369 = vmatprep.subr.mxu0 0.0
    %1370 = vmatpush1.msra.mxu0 0.0
    %1371 = vmatprep.subr.mxu0 0.0
    %1372 = vmatpush1.msra.mxu0 0.0
    %1373 = vmatprep.mubr.f32.mxu0 0.0
    %1374 = vmatmul.mubr.f32.gmra.mrb[0].mxu0 %v522
    %v1375 = vpop.f32.mrb[0].mxu0
    %v1376 = vadd.f32 %v1307, %v1375
    %v1377 = vpop.f32.mrb[0].mxu0
    %1378 = vmatprep.mubr.f32.mxu0 0.0
    %1379 = vmatmul.mubr.f32.gmra.mrb[0].mxu0 %v525
    %v1380 = vpop.f32.mrb[0].mxu0
    %v1381 = vadd.f32 %v1307, %v1380
    %v1382 = vpop.f32.mrb[0].mxu0
    %1383 = vmatprep.mubr.f32.mxu0 0.0
    %1384 = vmatmul.mubr.f32.gmra.mrb[0].mxu0 %v528
    %v1385 = vpop.f32.mrb[0].mxu0
    %v1386 = vadd.f32 %v1307, %v1385
    %v1387 = vpop.f32.mrb[0].mxu0
    %1388 = vmatprep.mubr.f32.mxu0 0.0
    %1389 = vmatmul.mubr.f32.gmra.mrb[0].mxu0 %v522
    %v1390 = vpop.f32.mrb[0].mxu0
    %v1391 = vadd.f32 %v1307, %v1390
    %v1392 = vpop.f32.mrb[0].mxu0
    %1393 = vmatprep.mubr.f32.mxu0 0.0
    %1394 = vmatmul.mubr.f32.gmra.mrb[0].mxu0 %v531
    %v1395 = vpop.f32.mrb[0].mxu0
    %v1396 = vadd.f32 %v1307, %v1395
    %v1397 = vpop.f32.mrb[0].mxu0
    %1398 = vmatprep.mubr.f32.mxu0 0.0
    %1399 = vmatmul.mubr.f32.gmra.mrb[0].mxu0 %v534
    %v1400 = vpop.f32.mrb[0].mxu0
    %v1401 = vadd.f32 %v1307, %v1400
    %v1402 = vpop.f32.mrb[0].mxu0
    %1403 = vdwg.mxu0
    %s1404 = scalar_lea.vmem %s4, 160
    %v1405 = vld [vmem:[%s1404] sm:$0xff]
    %v1406 = vld [vmem:[%s1404 + $0x8] sm:$0xff]
    %v1407 = vld [vmem:[%s1404 + $0x10] sm:$0xff]
    %v1408 = vld [vmem:[%s1404 + $0x18] sm:$0xff]
    %s1409 = scalar_lea.vmem %s5, 5
    %v1410 = vld [vmem:[%s1409] sm:$0x1]
    %v1412 = vlaneseq
    %v1413 = vshrl.u32 %v1412, 7
    %v1414 = vsub.s32 0, %v1413
    %v1415 = vrot.slane %v1410, %v1414
    %1417 = vmatprep.subr.mxu0 0.0
    %1418 = vmatpush1.msra.mxu0 %v1405
    %1419 = vmatprep.subr.mxu0 0.0
    %1420 = vmatpush1.msra.mxu0 %v1406
    %1421 = vmatprep.subr.mxu0 0.0
    %1422 = vmatpush1.msra.mxu0 %v1407
    %1423 = vmatprep.subr.mxu0 0.0
    %1424 = vmatpush1.msra.mxu0 %v1408
    %1425 = vmatprep.subr.mxu0 0.0
    %1426 = vmatpush1.msra.mxu0 0.0
    %1427 = vmatprep.subr.mxu0 0.0
    %1428 = vmatpush1.msra.mxu0 0.0
    %1429 = vmatprep.subr.mxu0 0.0
    %1430 = vmatpush1.msra.mxu0 0.0
    %1431 = vmatprep.subr.mxu0 0.0
    %1432 = vmatpush1.msra.mxu0 0.0
    %1433 = vmatprep.subr.mxu0 0.0
    %1434 = vmatpush1.msra.mxu0 0.0
    %1435 = vmatprep.subr.mxu0 0.0
    %1436 = vmatpush1.msra.mxu0 0.0
    %1437 = vmatprep.subr.mxu0 0.0
    %1438 = vmatpush1.msra.mxu0 0.0
    %1439 = vmatprep.subr.mxu0 0.0
    %1440 = vmatpush1.msra.mxu0 0.0
    %1441 = vmatprep.subr.mxu0 0.0
    %1442 = vmatpush1.msra.mxu0 0.0
    %1443 = vmatprep.subr.mxu0 0.0
    %1444 = vmatpush1.msra.mxu0 0.0
    %1445 = vmatprep.subr.mxu0 0.0
    %1446 = vmatpush1.msra.mxu0 0.0
    %1447 = vmatprep.subr.mxu0 0.0
    %1448 = vmatpush1.msra.mxu0 0.0
    %1449 = vmatprep.subr.mxu0 0.0
    %1450 = vmatpush1.msra.mxu0 0.0
    %1451 = vmatprep.subr.mxu0 0.0
    %1452 = vmatpush1.msra.mxu0 0.0
    %1453 = vmatprep.subr.mxu0 0.0
    %1454 = vmatpush1.msra.mxu0 0.0
    %1455 = vmatprep.subr.mxu0 0.0
    %1456 = vmatpush1.msra.mxu0 0.0
    %1457 = vmatprep.subr.mxu0 0.0
    %1458 = vmatpush1.msra.mxu0 0.0
    %1459 = vmatprep.subr.mxu0 0.0
    %1460 = vmatpush1.msra.mxu0 0.0
    %1461 = vmatprep.subr.mxu0 0.0
    %1462 = vmatpush1.msra.mxu0 0.0
    %1463 = vmatprep.subr.mxu0 0.0
    %1464 = vmatpush1.msra.mxu0 0.0
    %1465 = vmatprep.subr.mxu0 0.0
    %1466 = vmatpush1.msra.mxu0 0.0
    %1467 = vmatprep.subr.mxu0 0.0
    %1468 = vmatpush1.msra.mxu0 0.0
    %1469 = vmatprep.subr.mxu0 0.0
    %1470 = vmatpush1.msra.mxu0 0.0
    %1471 = vmatprep.subr.mxu0 0.0
    %1472 = vmatpush1.msra.mxu0 0.0
    %1473 = vmatprep.subr.mxu0 0.0
    %1474 = vmatpush1.msra.mxu0 0.0
    %1475 = vmatprep.subr.mxu0 0.0
    %1476 = vmatpush1.msra.mxu0 0.0
    %1477 = vmatprep.subr.mxu0 0.0
    %1478 = vmatpush1.msra.mxu0 0.0
    %1479 = vmatprep.subr.mxu0 0.0
    %1480 = vmatpush1.msra.mxu0 0.0
    %1481 = vmatprep.mubr.f32.mxu0 0.0
    %1482 = vmatmul.mubr.f32.gmra.mrb[0].mxu0 %v522
    %v1483 = vpop.f32.mrb[0].mxu0
    %v1484 = vadd.f32 %v1415, %v1483
    %v1485 = vpop.f32.mrb[0].mxu0
    %1486 = vmatprep.mubr.f32.mxu0 0.0
    %1487 = vmatmul.mubr.f32.gmra.mrb[0].mxu0 %v525
    %v1488 = vpop.f32.mrb[0].mxu0
    %v1489 = vadd.f32 %v1415, %v1488
    %v1490 = vpop.f32.mrb[0].mxu0
    %1491 = vmatprep.mubr.f32.mxu0 0.0
    %1492 = vmatmul.mubr.f32.gmra.mrb[0].mxu0 %v528
    %v1493 = vpop.f32.mrb[0].mxu0
    %v1494 = vadd.f32 %v1415, %v1493
    %v1495 = vpop.f32.mrb[0].mxu0
    %1496 = vmatprep.mubr.f32.mxu0 0.0
    %1497 = vmatmul.mubr.f32.gmra.mrb[0].mxu0 %v522
    %v1498 = vpop.f32.mrb[0].mxu0
    %v1499 = vadd.f32 %v1415, %v1498
    %v1500 = vpop.f32.mrb[0].mxu0
    %1501 = vmatprep.mubr.f32.mxu0 0.0
    %1502 = vmatmul.mubr.f32.gmra.mrb[0].mxu0 %v531
    %v1503 = vpop.f32.mrb[0].mxu0
    %v1504 = vadd.f32 %v1415, %v1503
    %v1505 = vpop.f32.mrb[0].mxu0
    %1506 = vmatprep.mubr.f32.mxu0 0.0
    %1507 = vmatmul.mubr.f32.gmra.mrb[0].mxu0 %v534
    %v1508 = vpop.f32.mrb[0].mxu0
    %v1509 = vadd.f32 %v1415, %v1508
    %v1510 = vpop.f32.mrb[0].mxu0
    %1511 = vdwg.mxu0
    %s1512 = scalar_lea.vmem %s4, 288
    %v1513 = vld [vmem:[%s1512] sm:$0xff]
    %v1514 = vld [vmem:[%s1512 + $0x8] sm:$0xff]
    %v1515 = vld [vmem:[%s1512 + $0x10] sm:$0xff]
    %v1516 = vld [vmem:[%s1512 + $0x18] sm:$0xff]
    %s1517 = scalar_lea.vmem %s5, 9
    %v1518 = vld [vmem:[%s1517] sm:$0x1]
    %v1520 = vlaneseq
    %v1521 = vshrl.u32 %v1520, 7
    %v1522 = vsub.s32 0, %v1521
    %v1523 = vrot.slane %v1518, %v1522
    %1525 = vmatprep.subr.mxu0 0.0
    %1526 = vmatpush1.msra.mxu0 %v1513
    %1527 = vmatprep.subr.mxu0 0.0
    %1528 = vmatpush1.msra.mxu0 %v1514
    %1529 = vmatprep.subr.mxu0 0.0
    %1530 = vmatpush1.msra.mxu0 %v1515
    %1531 = vmatprep.subr.mxu0 0.0
    %1532 = vmatpush1.msra.mxu0 %v1516
    %1533 = vmatprep.subr.mxu0 0.0
    %1534 = vmatpush1.msra.mxu0 0.0
    %1535 = vmatprep.subr.mxu0 0.0
    %1536 = vmatpush1.msra.mxu0 0.0
    %1537 = vmatprep.subr.mxu0 0.0
    %1538 = vmatpush1.msra.mxu0 0.0
    %1539 = vmatprep.subr.mxu0 0.0
    %1540 = vmatpush1.msra.mxu0 0.0
    %1541 = vmatprep.subr.mxu0 0.0
    %1542 = vmatpush1.msra.mxu0 0.0
    %1543 = vmatprep.subr.mxu0 0.0
    %1544 = vmatpush1.msra.mxu0 0.0
    %1545 = vmatprep.subr.mxu0 0.0
    %1546 = vmatpush1.msra.mxu0 0.0
    %1547 = vmatprep.subr.mxu0 0.0
    %1548 = vmatpush1.msra.mxu0 0.0
    %1549 = vmatprep.subr.mxu0 0.0
    %1550 = vmatpush1.msra.mxu0 0.0
    %1551 = vmatprep.subr.mxu0 0.0
    %1552 = vmatpush1.msra.mxu0 0.0
    %1553 = vmatprep.subr.mxu0 0.0
    %1554 = vmatpush1.msra.mxu0 0.0
    %1555 = vmatprep.subr.mxu0 0.0
    %1556 = vmatpush1.msra.mxu0 0.0
    %1557 = vmatprep.subr.mxu0 0.0
    %1558 = vmatpush1.msra.mxu0 0.0
    %1559 = vmatprep.subr.mxu0 0.0
    %1560 = vmatpush1.msra.mxu0 0.0
    %1561 = vmatprep.subr.mxu0 0.0
    %1562 = vmatpush1.msra.mxu0 0.0
    %1563 = vmatprep.subr.mxu0 0.0
    %1564 = vmatpush1.msra.mxu0 0.0
    %1565 = vmatprep.subr.mxu0 0.0
    %1566 = vmatpush1.msra.mxu0 0.0
    %1567 = vmatprep.subr.mxu0 0.0
    %1568 = vmatpush1.msra.mxu0 0.0
    %1569 = vmatprep.subr.mxu0 0.0
    %1570 = vmatpush1.msra.mxu0 0.0
    %1571 = vmatprep.subr.mxu0 0.0
    %1572 = vmatpush1.msra.mxu0 0.0
    %1573 = vmatprep.subr.mxu0 0.0
    %1574 = vmatpush1.msra.mxu0 0.0
    %1575 = vmatprep.subr.mxu0 0.0
    %1576 = vmatpush1.msra.mxu0 0.0
    %1577 = vmatprep.subr.mxu0 0.0
    %1578 = vmatpush1.msra.mxu0 0.0
    %1579 = vmatprep.subr.mxu0 0.0
    %1580 = vmatpush1.msra.mxu0 0.0
    %1581 = vmatprep.subr.mxu0 0.0
    %1582 = vmatpush1.msra.mxu0 0.0
    %1583 = vmatprep.subr.mxu0 0.0
    %1584 = vmatpush1.msra.mxu0 0.0
    %1585 = vmatprep.subr.mxu0 0.0
    %1586 = vmatpush1.msra.mxu0 0.0
    %1587 = vmatprep.subr.mxu0 0.0
    %1588 = vmatpush1.msra.mxu0 0.0
    %1589 = vmatprep.mubr.f32.mxu0 0.0
    %1590 = vmatmul.mubr.f32.gmra.mrb[0].mxu0 %v522
    %v1591 = vpop.f32.mrb[0].mxu0
    %v1592 = vadd.f32 %v1523, %v1591
    %v1593 = vpop.f32.mrb[0].mxu0
    %1594 = vmatprep.mubr.f32.mxu0 0.0
    %1595 = vmatmul.mubr.f32.gmra.mrb[0].mxu0 %v525
    %v1596 = vpop.f32.mrb[0].mxu0
    %v1597 = vadd.f32 %v1523, %v1596
    %v1598 = vpop.f32.mrb[0].mxu0
    %1599 = vmatprep.mubr.f32.mxu0 0.0
    %1600 = vmatmul.mubr.f32.gmra.mrb[0].mxu0 %v528
    %v1601 = vpop.f32.mrb[0].mxu0
    %v1602 = vadd.f32 %v1523, %v1601
    %v1603 = vpop.f32.mrb[0].mxu0
    %1604 = vmatprep.mubr.f32.mxu0 0.0
    %1605 = vmatmul.mubr.f32.gmra.mrb[0].mxu0 %v522
    %v1606 = vpop.f32.mrb[0].mxu0
    %v1607 = vadd.f32 %v1523, %v1606
    %v1608 = vpop.f32.mrb[0].mxu0
    %1609 = vmatprep.mubr.f32.mxu0 0.0
    %1610 = vmatmul.mubr.f32.gmra.mrb[0].mxu0 %v531
    %v1611 = vpop.f32.mrb[0].mxu0
    %v1612 = vadd.f32 %v1523, %v1611
    %v1613 = vpop.f32.mrb[0].mxu0
    %1614 = vmatprep.mubr.f32.mxu0 0.0
    %1615 = vmatmul.mubr.f32.gmra.mrb[0].mxu0 %v534
    %v1616 = vpop.f32.mrb[0].mxu0
    %v1617 = vadd.f32 %v1523, %v1616
    %v1618 = vpop.f32.mrb[0].mxu0
    %1619 = vdwg.mxu0
    %v1621 = vsel %vm847, %v1376, 0
    %v1624 = vsel %vm847, %v1381, 0
    %v1627 = vsel %vm847, %v1386, 0
    %v1630 = vsel %vm847, %v1484, 0
    %v1633 = vsel %vm847, %v1489, 0
    %v1636 = vsel %vm847, %v1494, 0
    %1638 = vmatprep.subr.mxu0 0.0
    %1639 = vmatpush1.xpose.msra.mxu0 %v1630
    %1640 = vmatprep.subr.mxu0 0.0
    %1641 = vmatpush1.xpose.msra.mxu0 %v1633
    %1642 = vmatprep.subr.mxu0 0.0
    %1643 = vmatpush1.xpose.msra.mxu0 %v1636
    %1644 = vmatprep.subr.mxu0 0.0
    %1645 = vmatpush1.xpose.msra.mxu0 0.0
    %1646 = vmatprep.subr.mxu0 0.0
    %1647 = vmatpush1.xpose.msra.mxu0 0.0
    %1648 = vmatprep.subr.mxu0 0.0
    %1649 = vmatpush1.xpose.msra.mxu0 0.0
    %1650 = vmatprep.subr.mxu0 0.0
    %1651 = vmatpush1.xpose.msra.mxu0 0.0
    %1652 = vmatprep.subr.mxu0 0.0
    %1653 = vmatpush1.xpose.msra.mxu0 0.0
    %1654 = vmatprep.subr.mxu0 0.0
    %1655 = vmatpush1.xpose.msra.mxu0 0.0
    %1656 = vmatprep.subr.mxu0 0.0
    %1657 = vmatpush1.xpose.msra.mxu0 0.0
    %1658 = vmatprep.subr.mxu0 0.0
    %1659 = vmatpush1.xpose.msra.mxu0 0.0
    %1660 = vmatprep.subr.mxu0 0.0
    %1661 = vmatpush1.xpose.msra.mxu0 0.0
    %1662 = vmatprep.subr.mxu0 0.0
    %1663 = vmatpush1.xpose.msra.mxu0 0.0
    %1664 = vmatprep.subr.mxu0 0.0
    %1665 = vmatpush1.xpose.msra.mxu0 0.0
    %1666 = vmatprep.subr.mxu0 0.0
    %1667 = vmatpush1.xpose.msra.mxu0 0.0
    %1668 = vmatprep.subr.mxu0 0.0
    %1669 = vmatpush1.xpose.msra.mxu0 0.0
    %1670 = vmatprep.subr.mxu0 0.0
    %1671 = vmatpush1.xpose.msra.mxu0 0.0
    %1672 = vmatprep.subr.mxu0 0.0
    %1673 = vmatpush1.xpose.msra.mxu0 0.0
    %1674 = vmatprep.subr.mxu0 0.0
    %1675 = vmatpush1.xpose.msra.mxu0 0.0
    %1676 = vmatprep.subr.mxu0 0.0
    %1677 = vmatpush1.xpose.msra.mxu0 0.0
    %1678 = vmatprep.subr.mxu0 0.0
    %1679 = vmatpush1.xpose.msra.mxu0 0.0
    %1680 = vmatprep.subr.mxu0 0.0
    %1681 = vmatpush1.xpose.msra.mxu0 0.0
    %1682 = vmatprep.subr.mxu0 0.0
    %1683 = vmatpush1.xpose.msra.mxu0 0.0
    %1684 = vmatprep.subr.mxu0 0.0
    %1685 = vmatpush1.xpose.msra.mxu0 0.0
    %1686 = vmatprep.subr.mxu0 0.0
    %1687 = vmatpush1.xpose.msra.mxu0 0.0
    %1688 = vmatprep.subr.mxu0 0.0
    %1689 = vmatpush1.xpose.msra.mxu0 0.0
    %1690 = vmatprep.subr.mxu0 0.0
    %1691 = vmatpush1.xpose.msra.mxu0 0.0
    %1692 = vmatprep.subr.mxu0 0.0
    %1693 = vmatpush1.xpose.msra.mxu0 0.0
    %1694 = vmatprep.subr.mxu0 0.0
    %1695 = vmatpush1.xpose.msra.mxu0 0.0
    %1696 = vmatprep.subr.mxu0 0.0
    %1697 = vmatpush1.xpose.msra.mxu0 0.0
    %1698 = vmatprep.subr.mxu0 0.0
    %1699 = vmatpush1.xpose.msra.mxu0 0.0
    %1700 = vmatprep.subr.mxu0 0.0
    %1701 = vmatpush1.xpose.msra.mxu0 0.0
    %1702 = vmatprep.mubr.f32.mxu0 0.0
    %1703 = vmatmul.mubr.f32.gmra.mrb[0].mxu0 %v1621
    %v1704 = vpop.f32.mrb[0].mxu0
    %v1705 = vadd.f32 0.0, %v1704
    %v1706 = vpop.f32.mrb[0].mxu0
    %1707 = vmatprep.mubr.f32.mxu0 0.0
    %1708 = vmatmul.mubr.f32.gmra.mrb[0].mxu0 %v1624
    %v1709 = vpop.f32.mrb[0].mxu0
    %v1710 = vadd.f32 0.0, %v1709
    %v1711 = vpop.f32.mrb[0].mxu0
    %1712 = vmatprep.mubr.f32.mxu0 0.0
    %1713 = vmatmul.mubr.f32.gmra.mrb[0].mxu0 %v1627
    %v1714 = vpop.f32.mrb[0].mxu0
    %v1715 = vadd.f32 0.0, %v1714
    %v1716 = vpop.f32.mrb[0].mxu0
    %1717 = vdwg.mxu0
    %v1719 = vsel %vm847, %v1391, 0
    %v1722 = vsel %vm847, %v1396, 0
    %v1725 = vsel %vm847, %v1401, 0
    %v1728 = vsel %vm847, %v1499, 0
    %v1731 = vsel %vm847, %v1504, 0
    %v1734 = vsel %vm847, %v1509, 0
    %1736 = vmatprep.subr.mxu0 0.0
    %1737 = vmatpush1.xpose.msra.mxu0 %v1728
    %1738 = vmatprep.subr.mxu0 0.0
    %1739 = vmatpush1.xpose.msra.mxu0 %v1731
    %1740 = vmatprep.subr.mxu0 0.0
    %1741 = vmatpush1.xpose.msra.mxu0 %v1734
    %1742 = vmatprep.subr.mxu0 0.0
    %1743 = vmatpush1.xpose.msra.mxu0 0.0
    %1744 = vmatprep.subr.mxu0 0.0
    %1745 = vmatpush1.xpose.msra.mxu0 0.0
    %1746 = vmatprep.subr.mxu0 0.0
    %1747 = vmatpush1.xpose.msra.mxu0 0.0
    %1748 = vmatprep.subr.mxu0 0.0
    %1749 = vmatpush1.xpose.msra.mxu0 0.0
    %1750 = vmatprep.subr.mxu0 0.0
    %1751 = vmatpush1.xpose.msra.mxu0 0.0
    %1752 = vmatprep.subr.mxu0 0.0
    %1753 = vmatpush1.xpose.msra.mxu0 0.0
    %1754 = vmatprep.subr.mxu0 0.0
    %1755 = vmatpush1.xpose.msra.mxu0 0.0
    %1756 = vmatprep.subr.mxu0 0.0
    %1757 = vmatpush1.xpose.msra.mxu0 0.0
    %1758 = vmatprep.subr.mxu0 0.0
    %1759 = vmatpush1.xpose.msra.mxu0 0.0
    %1760 = vmatprep.subr.mxu0 0.0
    %1761 = vmatpush1.xpose.msra.mxu0 0.0
    %1762 = vmatprep.subr.mxu0 0.0
    %1763 = vmatpush1.xpose.msra.mxu0 0.0
    %1764 = vmatprep.subr.mxu0 0.0
    %1765 = vmatpush1.xpose.msra.mxu0 0.0
    %1766 = vmatprep.subr.mxu0 0.0
    %1767 = vmatpush1.xpose.msra.mxu0 0.0
    %1768 = vmatprep.subr.mxu0 0.0
    %1769 = vmatpush1.xpose.msra.mxu0 0.0
    %1770 = vmatprep.subr.mxu0 0.0
    %1771 = vmatpush1.xpose.msra.mxu0 0.0
    %1772 = vmatprep.subr.mxu0 0.0
    %1773 = vmatpush1.xpose.msra.mxu0 0.0
    %1774 = vmatprep.subr.mxu0 0.0
    %1775 = vmatpush1.xpose.msra.mxu0 0.0
    %1776 = vmatprep.subr.mxu0 0.0
    %1777 = vmatpush1.xpose.msra.mxu0 0.0
    %1778 = vmatprep.subr.mxu0 0.0
    %1779 = vmatpush1.xpose.msra.mxu0 0.0
    %1780 = vmatprep.subr.mxu0 0.0
    %1781 = vmatpush1.xpose.msra.mxu0 0.0
    %1782 = vmatprep.subr.mxu0 0.0
    %1783 = vmatpush1.xpose.msra.mxu0 0.0
    %1784 = vmatprep.subr.mxu0 0.0
    %1785 = vmatpush1.xpose.msra.mxu0 0.0
    %1786 = vmatprep.subr.mxu0 0.0
    %1787 = vmatpush1.xpose.msra.mxu0 0.0
    %1788 = vmatprep.subr.mxu0 0.0
    %1789 = vmatpush1.xpose.msra.mxu0 0.0
    %1790 = vmatprep.subr.mxu0 0.0
    %1791 = vmatpush1.xpose.msra.mxu0 0.0
    %1792 = vmatprep.subr.mxu0 0.0
    %1793 = vmatpush1.xpose.msra.mxu0 0.0
    %1794 = vmatprep.subr.mxu0 0.0
    %1795 = vmatpush1.xpose.msra.mxu0 0.0
    %1796 = vmatprep.subr.mxu0 0.0
    %1797 = vmatpush1.xpose.msra.mxu0 0.0
    %1798 = vmatprep.subr.mxu0 0.0
    %1799 = vmatpush1.xpose.msra.mxu0 0.0
    %1800 = vmatprep.mubr.f32.mxu0 0.0
    %1801 = vmatmul.mubr.f32.gmra.mrb[0].mxu0 %v1719
    %v1802 = vpop.f32.mrb[0].mxu0
    %v1803 = vadd.f32 0.0, %v1802
    %v1804 = vpop.f32.mrb[0].mxu0
    %1805 = vmatprep.mubr.f32.mxu0 0.0
    %1806 = vmatmul.mubr.f32.gmra.mrb[0].mxu0 %v1722
    %v1807 = vpop.f32.mrb[0].mxu0
    %v1808 = vadd.f32 0.0, %v1807
    %v1809 = vpop.f32.mrb[0].mxu0
    %1810 = vmatprep.mubr.f32.mxu0 0.0
    %1811 = vmatmul.mubr.f32.gmra.mrb[0].mxu0 %v1725
    %v1812 = vpop.f32.mrb[0].mxu0
    %v1813 = vadd.f32 0.0, %v1812
    %v1814 = vpop.f32.mrb[0].mxu0
    %1815 = vdwg.mxu0
    %v1816 = vmul.f32 %v1705, 0.35355338
    %v1817 = vmul.f32 %v1710, 0.35355338
    %v1818 = vmul.f32 %v1715, 0.35355338
    %v1819 = vmul.f32 %v1803, 0.35355338
    %v1820 = vmul.f32 %v1808, 0.35355338
    %v1821 = vmul.f32 %v1813, 0.35355338
    %v1822 = vsel %vm1050, %v1816, -inf
    %1823 = vmax.xlane.f32.xlu0 %v1822
    %v1824 = vpop.xlane.xlu0 %1823
    %v1825 = vsel %vm1050, %v1817, -inf
    %1826 = vmax.xlane.f32.xlu0 %v1825
    %v1827 = vpop.xlane.xlu0 %1826
    %v1828 = vsel %vm1050, %v1818, -inf
    %1829 = vmax.xlane.f32.xlu0 %v1828
    %v1830 = vpop.xlane.xlu0 %1829
    %v1831 = vsel %vm1050, %v1819, -inf
    %1832 = vmax.xlane.f32.xlu0 %v1831
    %v1833 = vpop.xlane.xlu0 %1832
    %v1834 = vsel %vm1050, %v1820, -inf
    %1835 = vmax.xlane.f32.xlu0 %v1834
    %v1836 = vpop.xlane.xlu0 %1835
    %v1837 = vsel %vm1050, %v1821, -inf
    %1838 = vmax.xlane.f32.xlu0 %v1837
    %v1839 = vpop.xlane.xlu0 %1838
    %v1840 = vsub.f32 %v1816, %v1824
    %v1841 = vsub.f32 %v1817, %v1827
    %v1842 = vsub.f32 %v1818, %v1830
    %v1843 = vsub.f32 %v1819, %v1833
    %v1844 = vsub.f32 %v1820, %v1836
    %v1845 = vsub.f32 %v1821, %v1839
    %v1846 = vmul.f32 %v1840, 1.442695
    %v1847 = vpow.pop %v1846
    %v1848 = vmul.f32 %v1841, 1.442695
    %v1849 = vpow.pop %v1848
    %v1850 = vmul.f32 %v1842, 1.442695
    %v1851 = vpow.pop %v1850
    %v1852 = vmul.f32 %v1843, 1.442695
    %v1853 = vpow.pop %v1852
    %v1854 = vmul.f32 %v1844, 1.442695
    %v1855 = vpow.pop %v1854
    %v1856 = vmul.f32 %v1845, 1.442695
    %v1857 = vpow.pop %v1856
    %v1858 = vsel %vm1050, %v1847, 0.0
    %1859 = vadd.xlane.f32.xlu0 %v1858
    %v1860 = vpop.xlane.xlu0 %1859
    %v1861 = vsel %vm1050, %v1849, 0.0
    %1862 = vadd.xlane.f32.xlu0 %v1861
    %v1863 = vpop.xlane.xlu0 %1862
    %v1864 = vsel %vm1050, %v1851, 0.0
    %1865 = vadd.xlane.f32.xlu0 %v1864
    %v1866 = vpop.xlane.xlu0 %1865
    %v1867 = vsel %vm1050, %v1853, 0.0
    %1868 = vadd.xlane.f32.xlu0 %v1867
    %v1869 = vpop.xlane.xlu0 %1868
    %v1870 = vsel %vm1050, %v1855, 0.0
    %1871 = vadd.xlane.f32.xlu0 %v1870
    %v1872 = vpop.xlane.xlu0 %1871
    %v1873 = vsel %vm1050, %v1857, 0.0
    %1874 = vadd.xlane.f32.xlu0 %v1873
    %v1875 = vpop.xlane.xlu0 %1874
    %v1876 = vrcp.pop %v1860
    %v1877 = vrcp.pop %v1863
    %v1878 = vrcp.pop %v1866
    %v1879 = vrcp.pop %v1869
    %v1880 = vrcp.pop %v1872
    %v1881 = vrcp.pop %v1875
    %v1882 = vmul.f32 %v1847, %v1876
    %v1883 = vmul.f32 %v1849, %v1877
    %v1884 = vmul.f32 %v1851, %v1878
    %v1885 = vmul.f32 %v1853, %v1879
    %v1886 = vmul.f32 %v1855, %v1880
    %v1887 = vmul.f32 %v1857, %v1881
    %v1889 = vsel %vm1050, %v1882, 0
    %v1892 = vsel %vm1050, %v1883, 0
    %v1895 = vsel %vm1050, %v1884, 0
    %1897 = vmatprep.subr.mxu0 0.0
    %1898 = vmatpush1.msra.mxu0 %v1592
    %1899 = vmatprep.subr.mxu0 0.0
    %1900 = vmatpush1.msra.mxu0 %v1597
    %1901 = vmatprep.subr.mxu0 0.0
    %1902 = vmatpush1.msra.mxu0 %v1602
    %1903 = vmatprep.subr.mxu0 0.0
    %1904 = vmatpush1.msra.mxu0 0.0
    %1905 = vmatprep.subr.mxu0 0.0
    %1906 = vmatpush1.msra.mxu0 0.0
    %1907 = vmatprep.subr.mxu0 0.0
    %1908 = vmatpush1.msra.mxu0 0.0
    %1909 = vmatprep.subr.mxu0 0.0
    %1910 = vmatpush1.msra.mxu0 0.0
    %1911 = vmatprep.subr.mxu0 0.0
    %1912 = vmatpush1.msra.mxu0 0.0
    %1913 = vmatprep.subr.mxu0 0.0
    %1914 = vmatpush1.msra.mxu0 0.0
    %1915 = vmatprep.subr.mxu0 0.0
    %1916 = vmatpush1.msra.mxu0 0.0
    %1917 = vmatprep.subr.mxu0 0.0
    %1918 = vmatpush1.msra.mxu0 0.0
    %1919 = vmatprep.subr.mxu0 0.0
    %1920 = vmatpush1.msra.mxu0 0.0
    %1921 = vmatprep.subr.mxu0 0.0
    %1922 = vmatpush1.msra.mxu0 0.0
    %1923 = vmatprep.subr.mxu0 0.0
    %1924 = vmatpush1.msra.mxu0 0.0
    %1925 = vmatprep.subr.mxu0 0.0
    %1926 = vmatpush1.msra.mxu0 0.0
    %1927 = vmatprep.subr.mxu0 0.0
    %1928 = vmatpush1.msra.mxu0 0.0
    %1929 = vmatprep.subr.mxu0 0.0
    %1930 = vmatpush1.msra.mxu0 0.0
    %1931 = vmatprep.subr.mxu0 0.0
    %1932 = vmatpush1.msra.mxu0 0.0
    %1933 = vmatprep.subr.mxu0 0.0
    %1934 = vmatpush1.msra.mxu0 0.0
    %1935 = vmatprep.subr.mxu0 0.0
    %1936 = vmatpush1.msra.mxu0 0.0
    %1937 = vmatprep.subr.mxu0 0.0
    %1938 = vmatpush1.msra.mxu0 0.0
    %1939 = vmatprep.subr.mxu0 0.0
    %1940 = vmatpush1.msra.mxu0 0.0
    %1941 = vmatprep.subr.mxu0 0.0
    %1942 = vmatpush1.msra.mxu0 0.0
    %1943 = vmatprep.subr.mxu0 0.0
    %1944 = vmatpush1.msra.mxu0 0.0
    %1945 = vmatprep.subr.mxu0 0.0
    %1946 = vmatpush1.msra.mxu0 0.0
    %1947 = vmatprep.subr.mxu0 0.0
    %1948 = vmatpush1.msra.mxu0 0.0
    %1949 = vmatprep.subr.mxu0 0.0
    %1950 = vmatpush1.msra.mxu0 0.0
    %1951 = vmatprep.subr.mxu0 0.0
    %1952 = vmatpush1.msra.mxu0 0.0
    %1953 = vmatprep.subr.mxu0 0.0
    %1954 = vmatpush1.msra.mxu0 0.0
    %1955 = vmatprep.subr.mxu0 0.0
    %1956 = vmatpush1.msra.mxu0 0.0
    %1957 = vmatprep.subr.mxu0 0.0
    %1958 = vmatpush1.msra.mxu0 0.0
    %1959 = vmatprep.subr.mxu0 0.0
    %1960 = vmatpush1.msra.mxu0 0.0
    %1961 = vmatprep.mubr.f32.mxu0 0.0
    %1962 = vmatmul.mubr.f32.gmra.mrb[0].mxu0 %v1889
    %v1963 = vpop.f32.mrb[0].mxu0
    %v1964 = vadd.f32 0.0, %v1963
    %v1965 = vpop.f32.mrb[0].mxu0
    %1966 = vmatprep.mubr.f32.mxu0 0.0
    %1967 = vmatmul.mubr.f32.gmra.mrb[0].mxu0 %v1892
    %v1968 = vpop.f32.mrb[0].mxu0
    %v1969 = vadd.f32 0.0, %v1968
    %v1970 = vpop.f32.mrb[0].mxu0
    %1971 = vmatprep.mubr.f32.mxu0 0.0
    %1972 = vmatmul.mubr.f32.gmra.mrb[0].mxu0 %v1895
    %v1973 = vpop.f32.mrb[0].mxu0
    %v1974 = vadd.f32 0.0, %v1973
    %v1975 = vpop.f32.mrb[0].mxu0
    %1976 = vdwg.mxu0
    %v1978 = vsel %vm1050, %v1885, 0
    %v1981 = vsel %vm1050, %v1886, 0
    %v1984 = vsel %vm1050, %v1887, 0
    %1986 = vmatprep.subr.mxu0 0.0
    %1987 = vmatpush1.msra.mxu0 %v1607
    %1988 = vmatprep.subr.mxu0 0.0
    %1989 = vmatpush1.msra.mxu0 %v1612
    %1990 = vmatprep.subr.mxu0 0.0
    %1991 = vmatpush1.msra.mxu0 %v1617
    %1992 = vmatprep.subr.mxu0 0.0
    %1993 = vmatpush1.msra.mxu0 0.0
    %1994 = vmatprep.subr.mxu0 0.0
    %1995 = vmatpush1.msra.mxu0 0.0
    %1996 = vmatprep.subr.mxu0 0.0
    %1997 = vmatpush1.msra.mxu0 0.0
    %1998 = vmatprep.subr.mxu0 0.0
    %1999 = vmatpush1.msra.mxu0 0.0
    %2000 = vmatprep.subr.mxu0 0.0
    %2001 = vmatpush1.msra.mxu0 0.0
    %2002 = vmatprep.subr.mxu0 0.0
    %2003 = vmatpush1.msra.mxu0 0.0
    %2004 = vmatprep.subr.mxu0 0.0
    %2005 = vmatpush1.msra.mxu0 0.0
    %2006 = vmatprep.subr.mxu0 0.0
    %2007 = vmatpush1.msra.mxu0 0.0
    %2008 = vmatprep.subr.mxu0 0.0
    %2009 = vmatpush1.msra.mxu0 0.0
    %2010 = vmatprep.subr.mxu0 0.0
    %2011 = vmatpush1.msra.mxu0 0.0
    %2012 = vmatprep.subr.mxu0 0.0
    %2013 = vmatpush1.msra.mxu0 0.0
    %2014 = vmatprep.subr.mxu0 0.0
    %2015 = vmatpush1.msra.mxu0 0.0
    %2016 = vmatprep.subr.mxu0 0.0
    %2017 = vmatpush1.msra.mxu0 0.0
    %2018 = vmatprep.subr.mxu0 0.0
    %2019 = vmatpush1.msra.mxu0 0.0
    %2020 = vmatprep.subr.mxu0 0.0
    %2021 = vmatpush1.msra.mxu0 0.0
    %2022 = vmatprep.subr.mxu0 0.0
    %2023 = vmatpush1.msra.mxu0 0.0
    %2024 = vmatprep.subr.mxu0 0.0
    %2025 = vmatpush1.msra.mxu0 0.0
    %2026 = vmatprep.subr.mxu0 0.0
    %2027 = vmatpush1.msra.mxu0 0.0
    %2028 = vmatprep.subr.mxu0 0.0
    %2029 = vmatpush1.msra.mxu0 0.0
    %2030 = vmatprep.subr.mxu0 0.0
    %2031 = vmatpush1.msra.mxu0 0.0
    %2032 = vmatprep.subr.mxu0 0.0
    %2033 = vmatpush1.msra.mxu0 0.0
    %2034 = vmatprep.subr.mxu0 0.0
    %2035 = vmatpush1.msra.mxu0 0.0
    %2036 = vmatprep.subr.mxu0 0.0
    %2037 = vmatpush1.msra.mxu0 0.0
    %2038 = vmatprep.subr.mxu0 0.0
    %2039 = vmatpush1.msra.mxu0 0.0
    %2040 = vmatprep.subr.mxu0 0.0
    %2041 = vmatpush1.msra.mxu0 0.0
    %2042 = vmatprep.subr.mxu0 0.0
    %2043 = vmatpush1.msra.mxu0 0.0
    %2044 = vmatprep.subr.mxu0 0.0
    %2045 = vmatpush1.msra.mxu0 0.0
    %2046 = vmatprep.subr.mxu0 0.0
    %2047 = vmatpush1.msra.mxu0 0.0
    %2048 = vmatprep.subr.mxu0 0.0
    %2049 = vmatpush1.msra.mxu0 0.0
    %2050 = vmatprep.mubr.f32.mxu0 0.0
    %2051 = vmatmul.mubr.f32.gmra.mrb[0].mxu0 %v1978
    %v2052 = vpop.f32.mrb[0].mxu0
    %v2053 = vadd.f32 0.0, %v2052
    %v2054 = vpop.f32.mrb[0].mxu0
    %2055 = vmatprep.mubr.f32.mxu0 0.0
    %2056 = vmatmul.mubr.f32.gmra.mrb[0].mxu0 %v1981
    %v2057 = vpop.f32.mrb[0].mxu0
    %v2058 = vadd.f32 0.0, %v2057
    %v2059 = vpop.f32.mrb[0].mxu0
    %2060 = vmatprep.mubr.f32.mxu0 0.0
    %2061 = vmatmul.mubr.f32.gmra.mrb[0].mxu0 %v1984
    %v2062 = vpop.f32.mrb[0].mxu0
    %v2063 = vadd.f32 0.0, %v2062
    %v2064 = vpop.f32.mrb[0].mxu0
    %2065 = vdwg.mxu0
    %s2066 = scalar_lea.vmem %s6, 8
    %v2067 = vld [vmem:[%s2066] sm:$0xff]
    %v2069 = vsel %vm847, %v1964, 0
    %v2072 = vsel %vm847, %v1969, 0
    %v2075 = vsel %vm847, %v1974, 0
    %v2078 = vsel %vm847, %v2053, 0
    %v2081 = vsel %vm847, %v2058, 0
    %v2084 = vsel %vm847, %v2063, 0
    %2086 = vmatprep.subr.mxu0 0.0
    %2087 = vmatpush1.msra.mxu0 %v2067
    %2088 = vmatprep.subr.mxu0 0.0
    %2089 = vmatpush1.msra.mxu0 0.0
    %2090 = vmatprep.subr.mxu0 0.0
    %2091 = vmatpush1.msra.mxu0 0.0
    %2092 = vmatprep.subr.mxu0 0.0
    %2093 = vmatpush1.msra.mxu0 0.0
    %2094 = vmatprep.subr.mxu0 0.0
    %2095 = vmatpush1.msra.mxu0 0.0
    %2096 = vmatprep.subr.mxu0 0.0
    %2097 = vmatpush1.msra.mxu0 0.0
    %2098 = vmatprep.subr.mxu0 0.0
    %2099 = vmatpush1.msra.mxu0 0.0
    %2100 = vmatprep.subr.mxu0 0.0
    %2101 = vmatpush1.msra.mxu0 0.0
    %2102 = vmatprep.subr.mxu0 0.0
    %2103 = vmatpush1.msra.mxu0 0.0
    %2104 = vmatprep.subr.mxu0 0.0
    %2105 = vmatpush1.msra.mxu0 0.0
    %2106 = vmatprep.subr.mxu0 0.0
    %2107 = vmatpush1.msra.mxu0 0.0
    %2108 = vmatprep.subr.mxu0 0.0
    %2109 = vmatpush1.msra.mxu0 0.0
    %2110 = vmatprep.subr.mxu0 0.0
    %2111 = vmatpush1.msra.mxu0 0.0
    %2112 = vmatprep.subr.mxu0 0.0
    %2113 = vmatpush1.msra.mxu0 0.0
    %2114 = vmatprep.subr.mxu0 0.0
    %2115 = vmatpush1.msra.mxu0 0.0
    %2116 = vmatprep.subr.mxu0 0.0
    %2117 = vmatpush1.msra.mxu0 0.0
    %2118 = vmatprep.subr.mxu0 0.0
    %2119 = vmatpush1.msra.mxu0 0.0
    %2120 = vmatprep.subr.mxu0 0.0
    %2121 = vmatpush1.msra.mxu0 0.0
    %2122 = vmatprep.subr.mxu0 0.0
    %2123 = vmatpush1.msra.mxu0 0.0
    %2124 = vmatprep.subr.mxu0 0.0
    %2125 = vmatpush1.msra.mxu0 0.0
    %2126 = vmatprep.subr.mxu0 0.0
    %2127 = vmatpush1.msra.mxu0 0.0
    %2128 = vmatprep.subr.mxu0 0.0
    %2129 = vmatpush1.msra.mxu0 0.0
    %2130 = vmatprep.subr.mxu0 0.0
    %2131 = vmatpush1.msra.mxu0 0.0
    %2132 = vmatprep.subr.mxu0 0.0
    %2133 = vmatpush1.msra.mxu0 0.0
    %2134 = vmatprep.subr.mxu0 0.0
    %2135 = vmatpush1.msra.mxu0 0.0
    %2136 = vmatprep.subr.mxu0 0.0
    %2137 = vmatpush1.msra.mxu0 0.0
    %2138 = vmatprep.subr.mxu0 0.0
    %2139 = vmatpush1.msra.mxu0 0.0
    %2140 = vmatprep.subr.mxu0 0.0
    %2141 = vmatpush1.msra.mxu0 0.0
    %2142 = vmatprep.subr.mxu0 0.0
    %2143 = vmatpush1.msra.mxu0 0.0
    %2144 = vmatprep.subr.mxu0 0.0
    %2145 = vmatpush1.msra.mxu0 0.0
    %2146 = vmatprep.subr.mxu0 0.0
    %2147 = vmatpush1.msra.mxu0 0.0
    %2148 = vmatprep.subr.mxu0 0.0
    %2149 = vmatpush1.msra.mxu0 0.0
    %2150 = vmatprep.mubr.f32.mxu0 0.0
    %2151 = vmatmul.mubr.f32.gmra.mrb[0].mxu0 %v2069
    %v2152 = vpop.f32.mrb[0].mxu0
    %v2153 = vadd.f32 0.0, %v2152
    %v2154 = vpop.f32.mrb[0].mxu0
    %2155 = vmatprep.mubr.f32.mxu0 0.0
    %2156 = vmatmul.mubr.f32.gmra.mrb[0].mxu0 %v2072
    %v2157 = vpop.f32.mrb[0].mxu0
    %v2158 = vadd.f32 0.0, %v2157
    %v2159 = vpop.f32.mrb[0].mxu0
    %2160 = vmatprep.mubr.f32.mxu0 0.0
    %2161 = vmatmul.mubr.f32.gmra.mrb[0].mxu0 %v2075
    %v2162 = vpop.f32.mrb[0].mxu0
    %v2163 = vadd.f32 0.0, %v2162
    %v2164 = vpop.f32.mrb[0].mxu0
    %2165 = vmatprep.mubr.f32.mxu0 0.0
    %2166 = vmatmul.mubr.f32.gmra.mrb[0].mxu0 %v2078
    %v2167 = vpop.f32.mrb[0].mxu0
    %v2168 = vadd.f32 0.0, %v2167
    %v2169 = vpop.f32.mrb[0].mxu0
    %2170 = vmatprep.mubr.f32.mxu0 0.0
    %2171 = vmatmul.mubr.f32.gmra.mrb[0].mxu0 %v2081
    %v2172 = vpop.f32.mrb[0].mxu0
    %v2173 = vadd.f32 0.0, %v2172
    %v2174 = vpop.f32.mrb[0].mxu0
    %2175 = vmatprep.mubr.f32.mxu0 0.0
    %2176 = vmatmul.mubr.f32.gmra.mrb[0].mxu0 %v2084
    %v2177 = vpop.f32.mrb[0].mxu0
    %v2178 = vadd.f32 0.0, %v2177
    %v2179 = vpop.f32.mrb[0].mxu0
    %2180 = vdwg.mxu0
    %v2182 = vsel %vm847, %v1193, 0
    %v2185 = vsel %vm847, %v1198, 0
    %v2188 = vsel %vm847, %v1203, 0
    %v2191 = vsel %vm847, %v1282, 0
    %v2194 = vsel %vm847, %v1287, 0
    %v2197 = vsel %vm847, %v1292, 0
    %2199 = vmatprep.subr.mxu0 0.0
    %2200 = vmatpush1.msra.mxu0 %v1295
    %2201 = vmatprep.subr.mxu0 0.0
    %2202 = vmatpush1.msra.mxu0 0.0
    %2203 = vmatprep.subr.mxu0 0.0
    %2204 = vmatpush1.msra.mxu0 0.0
    %2205 = vmatprep.subr.mxu0 0.0
    %2206 = vmatpush1.msra.mxu0 0.0
    %2207 = vmatprep.subr.mxu0 0.0
    %2208 = vmatpush1.msra.mxu0 0.0
    %2209 = vmatprep.subr.mxu0 0.0
    %2210 = vmatpush1.msra.mxu0 0.0
    %2211 = vmatprep.subr.mxu0 0.0
    %2212 = vmatpush1.msra.mxu0 0.0
    %2213 = vmatprep.subr.mxu0 0.0
    %2214 = vmatpush1.msra.mxu0 0.0
    %2215 = vmatprep.subr.mxu0 0.0
    %2216 = vmatpush1.msra.mxu0 0.0
    %2217 = vmatprep.subr.mxu0 0.0
    %2218 = vmatpush1.msra.mxu0 0.0
    %2219 = vmatprep.subr.mxu0 0.0
    %2220 = vmatpush1.msra.mxu0 0.0
    %2221 = vmatprep.subr.mxu0 0.0
    %2222 = vmatpush1.msra.mxu0 0.0
    %2223 = vmatprep.subr.mxu0 0.0
    %2224 = vmatpush1.msra.mxu0 0.0
    %2225 = vmatprep.subr.mxu0 0.0
    %2226 = vmatpush1.msra.mxu0 0.0
    %2227 = vmatprep.subr.mxu0 0.0
    %2228 = vmatpush1.msra.mxu0 0.0
    %2229 = vmatprep.subr.mxu0 0.0
    %2230 = vmatpush1.msra.mxu0 0.0
    %2231 = vmatprep.subr.mxu0 0.0
    %2232 = vmatpush1.msra.mxu0 0.0
    %2233 = vmatprep.subr.mxu0 0.0
    %2234 = vmatpush1.msra.mxu0 0.0
    %2235 = vmatprep.subr.mxu0 0.0
    %2236 = vmatpush1.msra.mxu0 0.0
    %2237 = vmatprep.subr.mxu0 0.0
    %2238 = vmatpush1.msra.mxu0 0.0
    %2239 = vmatprep.subr.mxu0 0.0
    %2240 = vmatpush1.msra.mxu0 0.0
    %2241 = vmatprep.subr.mxu0 0.0
    %2242 = vmatpush1.msra.mxu0 0.0
    %2243 = vmatprep.subr.mxu0 0.0
    %2244 = vmatpush1.msra.mxu0 0.0
    %2245 = vmatprep.subr.mxu0 0.0
    %2246 = vmatpush1.msra.mxu0 0.0
    %2247 = vmatprep.subr.mxu0 0.0
    %2248 = vmatpush1.msra.mxu0 0.0
    %2249 = vmatprep.subr.mxu0 0.0
    %2250 = vmatpush1.msra.mxu0 0.0
    %2251 = vmatprep.subr.mxu0 0.0
    %2252 = vmatpush1.msra.mxu0 0.0
    %2253 = vmatprep.subr.mxu0 0.0
    %2254 = vmatpush1.msra.mxu0 0.0
    %2255 = vmatprep.subr.mxu0 0.0
    %2256 = vmatpush1.msra.mxu0 0.0
    %2257 = vmatprep.subr.mxu0 0.0
    %2258 = vmatpush1.msra.mxu0 0.0
    %2259 = vmatprep.subr.mxu0 0.0
    %2260 = vmatpush1.msra.mxu0 0.0
    %2261 = vmatprep.subr.mxu0 0.0
    %2262 = vmatpush1.msra.mxu0 0.0
    %2263 = vmatprep.mubr.f32.mxu0 0.0
    %2264 = vmatmul.mubr.f32.gmra.mrb[0].mxu0 %v2182
    %v2265 = vpop.f32.mrb[0].mxu0
    %v2266 = vadd.f32 %v2153, %v2265
    %v2267 = vpop.f32.mrb[0].mxu0
    %2268 = vmatprep.mubr.f32.mxu0 0.0
    %2269 = vmatmul.mubr.f32.gmra.mrb[0].mxu0 %v2185
    %v2270 = vpop.f32.mrb[0].mxu0
    %v2271 = vadd.f32 %v2158, %v2270
    %v2272 = vpop.f32.mrb[0].mxu0
    %2273 = vmatprep.mubr.f32.mxu0 0.0
    %2274 = vmatmul.mubr.f32.gmra.mrb[0].mxu0 %v2188
    %v2275 = vpop.f32.mrb[0].mxu0
    %v2276 = vadd.f32 %v2163, %v2275
    %v2277 = vpop.f32.mrb[0].mxu0
    %2278 = vmatprep.mubr.f32.mxu0 0.0
    %2279 = vmatmul.mubr.f32.gmra.mrb[0].mxu0 %v2191
    %v2280 = vpop.f32.mrb[0].mxu0
    %v2281 = vadd.f32 %v2168, %v2280
    %v2282 = vpop.f32.mrb[0].mxu0
    %2283 = vmatprep.mubr.f32.mxu0 0.0
    %2284 = vmatmul.mubr.f32.gmra.mrb[0].mxu0 %v2194
    %v2285 = vpop.f32.mrb[0].mxu0
    %v2286 = vadd.f32 %v2173, %v2285
    %v2287 = vpop.f32.mrb[0].mxu0
    %2288 = vmatprep.mubr.f32.mxu0 0.0
    %2289 = vmatmul.mubr.f32.gmra.mrb[0].mxu0 %v2197
    %v2290 = vpop.f32.mrb[0].mxu0
    %v2291 = vadd.f32 %v2178, %v2290
    %v2292 = vpop.f32.mrb[0].mxu0
    %2293 = vdwg.mxu0
    %s2294 = scalar_lea.vmem %s4, 64
    %v2295 = vld [vmem:[%s2294] sm:$0xff]
    %v2296 = vld [vmem:[%s2294 + $0x8] sm:$0xff]
    %v2297 = vld [vmem:[%s2294 + $0x10] sm:$0xff]
    %v2298 = vld [vmem:[%s2294 + $0x18] sm:$0xff]
    %s2299 = scalar_lea.vmem %s5, 2
    %v2300 = vld [vmem:[%s2299] sm:$0x1]
    %v2302 = vlaneseq
    %v2303 = vshrl.u32 %v2302, 7
    %v2304 = vsub.s32 0, %v2303
    %v2305 = vrot.slane %v2300, %v2304
    %2307 = vmatprep.subr.mxu0 0.0
    %2308 = vmatpush1.msra.mxu0 %v2295
    %2309 = vmatprep.subr.mxu0 0.0
    %2310 = vmatpush1.msra.mxu0 %v2296
    %2311 = vmatprep.subr.mxu0 0.0
    %2312 = vmatpush1.msra.mxu0 %v2297
    %2313 = vmatprep.subr.mxu0 0.0
    %2314 = vmatpush1.msra.mxu0 %v2298
    %2315 = vmatprep.subr.mxu0 0.0
    %2316 = vmatpush1.msra.mxu0 0.0
    %2317 = vmatprep.subr.mxu0 0.0
    %2318 = vmatpush1.msra.mxu0 0.0
    %2319 = vmatprep.subr.mxu0 0.0
    %2320 = vmatpush1.msra.mxu0 0.0
    %2321 = vmatprep.subr.mxu0 0.0
    %2322 = vmatpush1.msra.mxu0 0.0
    %2323 = vmatprep.subr.mxu0 0.0
    %2324 = vmatpush1.msra.mxu0 0.0
    %2325 = vmatprep.subr.mxu0 0.0
    %2326 = vmatpush1.msra.mxu0 0.0
    %2327 = vmatprep.subr.mxu0 0.0
    %2328 = vmatpush1.msra.mxu0 0.0
    %2329 = vmatprep.subr.mxu0 0.0
    %2330 = vmatpush1.msra.mxu0 0.0
    %2331 = vmatprep.subr.mxu0 0.0
    %2332 = vmatpush1.msra.mxu0 0.0
    %2333 = vmatprep.subr.mxu0 0.0
    %2334 = vmatpush1.msra.mxu0 0.0
    %2335 = vmatprep.subr.mxu0 0.0
    %2336 = vmatpush1.msra.mxu0 0.0
    %2337 = vmatprep.subr.mxu0 0.0
    %2338 = vmatpush1.msra.mxu0 0.0
    %2339 = vmatprep.subr.mxu0 0.0
    %2340 = vmatpush1.msra.mxu0 0.0
    %2341 = vmatprep.subr.mxu0 0.0
    %2342 = vmatpush1.msra.mxu0 0.0
    %2343 = vmatprep.subr.mxu0 0.0
    %2344 = vmatpush1.msra.mxu0 0.0
    %2345 = vmatprep.subr.mxu0 0.0
    %2346 = vmatpush1.msra.mxu0 0.0
    %2347 = vmatprep.subr.mxu0 0.0
    %2348 = vmatpush1.msra.mxu0 0.0
    %2349 = vmatprep.subr.mxu0 0.0
    %2350 = vmatpush1.msra.mxu0 0.0
    %2351 = vmatprep.subr.mxu0 0.0
    %2352 = vmatpush1.msra.mxu0 0.0
    %2353 = vmatprep.subr.mxu0 0.0
    %2354 = vmatpush1.msra.mxu0 0.0
    %2355 = vmatprep.subr.mxu0 0.0
    %2356 = vmatpush1.msra.mxu0 0.0
    %2357 = vmatprep.subr.mxu0 0.0
    %2358 = vmatpush1.msra.mxu0 0.0
    %2359 = vmatprep.subr.mxu0 0.0
    %2360 = vmatpush1.msra.mxu0 0.0
    %2361 = vmatprep.subr.mxu0 0.0
    %2362 = vmatpush1.msra.mxu0 0.0
    %2363 = vmatprep.subr.mxu0 0.0
    %2364 = vmatpush1.msra.mxu0 0.0
    %2365 = vmatprep.subr.mxu0 0.0
    %2366 = vmatpush1.msra.mxu0 0.0
    %2367 = vmatprep.subr.mxu0 0.0
    %2368 = vmatpush1.msra.mxu0 0.0
    %2369 = vmatprep.subr.mxu0 0.0
    %2370 = vmatpush1.msra.mxu0 0.0
    %2371 = vmatprep.mubr.f32.mxu0 0.0
    %2372 = vmatmul.mubr.f32.gmra.mrb[0].mxu0 %v522
    %v2373 = vpop.f32.mrb[0].mxu0
    %v2374 = vadd.f32 %v2305, %v2373
    %v2375 = vpop.f32.mrb[0].mxu0
    %2376 = vmatprep.mubr.f32.mxu0 0.0
    %2377 = vmatmul.mubr.f32.gmra.mrb[0].mxu0 %v525
    %v2378 = vpop.f32.mrb[0].mxu0
    %v2379 = vadd.f32 %v2305, %v2378
    %v2380 = vpop.f32.mrb[0].mxu0
    %2381 = vmatprep.mubr.f32.mxu0 0.0
    %2382 = vmatmul.mubr.f32.gmra.mrb[0].mxu0 %v528
    %v2383 = vpop.f32.mrb[0].mxu0
    %v2384 = vadd.f32 %v2305, %v2383
    %v2385 = vpop.f32.mrb[0].mxu0
    %2386 = vmatprep.mubr.f32.mxu0 0.0
    %2387 = vmatmul.mubr.f32.gmra.mrb[0].mxu0 %v522
    %v2388 = vpop.f32.mrb[0].mxu0
    %v2389 = vadd.f32 %v2305, %v2388
    %v2390 = vpop.f32.mrb[0].mxu0
    %2391 = vmatprep.mubr.f32.mxu0 0.0
    %2392 = vmatmul.mubr.f32.gmra.mrb[0].mxu0 %v531
    %v2393 = vpop.f32.mrb[0].mxu0
    %v2394 = vadd.f32 %v2305, %v2393
    %v2395 = vpop.f32.mrb[0].mxu0
    %2396 = vmatprep.mubr.f32.mxu0 0.0
    %2397 = vmatmul.mubr.f32.gmra.mrb[0].mxu0 %v534
    %v2398 = vpop.f32.mrb[0].mxu0
    %v2399 = vadd.f32 %v2305, %v2398
    %v2400 = vpop.f32.mrb[0].mxu0
    %2401 = vdwg.mxu0
    %s2402 = scalar_lea.vmem %s4, 192
    %v2403 = vld [vmem:[%s2402] sm:$0xff]
    %v2404 = vld [vmem:[%s2402 + $0x8] sm:$0xff]
    %v2405 = vld [vmem:[%s2402 + $0x10] sm:$0xff]
    %v2406 = vld [vmem:[%s2402 + $0x18] sm:$0xff]
    %s2407 = scalar_lea.vmem %s5, 6
    %v2408 = vld [vmem:[%s2407] sm:$0x1]
    %v2410 = vlaneseq
    %v2411 = vshrl.u32 %v2410, 7
    %v2412 = vsub.s32 0, %v2411
    %v2413 = vrot.slane %v2408, %v2412
    %2415 = vmatprep.subr.mxu0 0.0
    %2416 = vmatpush1.msra.mxu0 %v2403
    %2417 = vmatprep.subr.mxu0 0.0
    %2418 = vmatpush1.msra.mxu0 %v2404
    %2419 = vmatprep.subr.mxu0 0.0
    %2420 = vmatpush1.msra.mxu0 %v2405
    %2421 = vmatprep.subr.mxu0 0.0
    %2422 = vmatpush1.msra.mxu0 %v2406
    %2423 = vmatprep.subr.mxu0 0.0
    %2424 = vmatpush1.msra.mxu0 0.0
    %2425 = vmatprep.subr.mxu0 0.0
    %2426 = vmatpush1.msra.mxu0 0.0
    %2427 = vmatprep.subr.mxu0 0.0
    %2428 = vmatpush1.msra.mxu0 0.0
    %2429 = vmatprep.subr.mxu0 0.0
    %2430 = vmatpush1.msra.mxu0 0.0
    %2431 = vmatprep.subr.mxu0 0.0
    %2432 = vmatpush1.msra.mxu0 0.0
    %2433 = vmatprep.subr.mxu0 0.0
    %2434 = vmatpush1.msra.mxu0 0.0
    %2435 = vmatprep.subr.mxu0 0.0
    %2436 = vmatpush1.msra.mxu0 0.0
    %2437 = vmatprep.subr.mxu0 0.0
    %2438 = vmatpush1.msra.mxu0 0.0
    %2439 = vmatprep.subr.mxu0 0.0
    %2440 = vmatpush1.msra.mxu0 0.0
    %2441 = vmatprep.subr.mxu0 0.0
    %2442 = vmatpush1.msra.mxu0 0.0
    %2443 = vmatprep.subr.mxu0 0.0
    %2444 = vmatpush1.msra.mxu0 0.0
    %2445 = vmatprep.subr.mxu0 0.0
    %2446 = vmatpush1.msra.mxu0 0.0
    %2447 = vmatprep.subr.mxu0 0.0
    %2448 = vmatpush1.msra.mxu0 0.0
    %2449 = vmatprep.subr.mxu0 0.0
    %2450 = vmatpush1.msra.mxu0 0.0
    %2451 = vmatprep.subr.mxu0 0.0
    %2452 = vmatpush1.msra.mxu0 0.0
    %2453 = vmatprep.subr.mxu0 0.0
    %2454 = vmatpush1.msra.mxu0 0.0
    %2455 = vmatprep.subr.mxu0 0.0
    %2456 = vmatpush1.msra.mxu0 0.0
    %2457 = vmatprep.subr.mxu0 0.0
    %2458 = vmatpush1.msra.mxu0 0.0
    %2459 = vmatprep.subr.mxu0 0.0
    %2460 = vmatpush1.msra.mxu0 0.0
    %2461 = vmatprep.subr.mxu0 0.0
    %2462 = vmatpush1.msra.mxu0 0.0
    %2463 = vmatprep.subr.mxu0 0.0
    %2464 = vmatpush1.msra.mxu0 0.0
    %2465 = vmatprep.subr.mxu0 0.0
    %2466 = vmatpush1.msra.mxu0 0.0
    %2467 = vmatprep.subr.mxu0 0.0
    %2468 = vmatpush1.msra.mxu0 0.0
    %2469 = vmatprep.subr.mxu0 0.0
    %2470 = vmatpush1.msra.mxu0 0.0
    %2471 = vmatprep.subr.mxu0 0.0
    %2472 = vmatpush1.msra.mxu0 0.0
    %2473 = vmatprep.subr.mxu0 0.0
    %2474 = vmatpush1.msra.mxu0 0.0
    %2475 = vmatprep.subr.mxu0 0.0
    %2476 = vmatpush1.msra.mxu0 0.0
    %2477 = vmatprep.subr.mxu0 0.0
    %2478 = vmatpush1.msra.mxu0 0.0
    %2479 = vmatprep.mubr.f32.mxu0 0.0
    %2480 = vmatmul.mubr.f32.gmra.mrb[0].mxu0 %v522
    %v2481 = vpop.f32.mrb[0].mxu0
    %v2482 = vadd.f32 %v2413, %v2481
    %v2483 = vpop.f32.mrb[0].mxu0
    %2484 = vmatprep.mubr.f32.mxu0 0.0
    %2485 = vmatmul.mubr.f32.gmra.mrb[0].mxu0 %v525
    %v2486 = vpop.f32.mrb[0].mxu0
    %v2487 = vadd.f32 %v2413, %v2486
    %v2488 = vpop.f32.mrb[0].mxu0
    %2489 = vmatprep.mubr.f32.mxu0 0.0
    %2490 = vmatmul.mubr.f32.gmra.mrb[0].mxu0 %v528
    %v2491 = vpop.f32.mrb[0].mxu0
    %v2492 = vadd.f32 %v2413, %v2491
    %v2493 = vpop.f32.mrb[0].mxu0
    %2494 = vmatprep.mubr.f32.mxu0 0.0
    %2495 = vmatmul.mubr.f32.gmra.mrb[0].mxu0 %v522
    %v2496 = vpop.f32.mrb[0].mxu0
    %v2497 = vadd.f32 %v2413, %v2496
    %v2498 = vpop.f32.mrb[0].mxu0
    %2499 = vmatprep.mubr.f32.mxu0 0.0
    %2500 = vmatmul.mubr.f32.gmra.mrb[0].mxu0 %v531
    %v2501 = vpop.f32.mrb[0].mxu0
    %v2502 = vadd.f32 %v2413, %v2501
    %v2503 = vpop.f32.mrb[0].mxu0
    %2504 = vmatprep.mubr.f32.mxu0 0.0
    %2505 = vmatmul.mubr.f32.gmra.mrb[0].mxu0 %v534
    %v2506 = vpop.f32.mrb[0].mxu0
    %v2507 = vadd.f32 %v2413, %v2506
    %v2508 = vpop.f32.mrb[0].mxu0
    %2509 = vdwg.mxu0
    %s2510 = scalar_lea.vmem %s4, 320
    %v2511 = vld [vmem:[%s2510] sm:$0xff]
    %v2512 = vld [vmem:[%s2510 + $0x8] sm:$0xff]
    %v2513 = vld [vmem:[%s2510 + $0x10] sm:$0xff]
    %v2514 = vld [vmem:[%s2510 + $0x18] sm:$0xff]
    %s2515 = scalar_lea.vmem %s5, 10
    %v2516 = vld [vmem:[%s2515] sm:$0x1]
    %v2518 = vlaneseq
    %v2519 = vshrl.u32 %v2518, 7
    %v2520 = vsub.s32 0, %v2519
    %v2521 = vrot.slane %v2516, %v2520
    %2523 = vmatprep.subr.mxu0 0.0
    %2524 = vmatpush1.msra.mxu0 %v2511
    %2525 = vmatprep.subr.mxu0 0.0
    %2526 = vmatpush1.msra.mxu0 %v2512
    %2527 = vmatprep.subr.mxu0 0.0
    %2528 = vmatpush1.msra.mxu0 %v2513
    %2529 = vmatprep.subr.mxu0 0.0
    %2530 = vmatpush1.msra.mxu0 %v2514
    %2531 = vmatprep.subr.mxu0 0.0
    %2532 = vmatpush1.msra.mxu0 0.0
    %2533 = vmatprep.subr.mxu0 0.0
    %2534 = vmatpush1.msra.mxu0 0.0
    %2535 = vmatprep.subr.mxu0 0.0
    %2536 = vmatpush1.msra.mxu0 0.0
    %2537 = vmatprep.subr.mxu0 0.0
    %2538 = vmatpush1.msra.mxu0 0.0
    %2539 = vmatprep.subr.mxu0 0.0
    %2540 = vmatpush1.msra.mxu0 0.0
    %2541 = vmatprep.subr.mxu0 0.0
    %2542 = vmatpush1.msra.mxu0 0.0
    %2543 = vmatprep.subr.mxu0 0.0
    %2544 = vmatpush1.msra.mxu0 0.0
    %2545 = vmatprep.subr.mxu0 0.0
    %2546 = vmatpush1.msra.mxu0 0.0
    %2547 = vmatprep.subr.mxu0 0.0
    %2548 = vmatpush1.msra.mxu0 0.0
    %2549 = vmatprep.subr.mxu0 0.0
    %2550 = vmatpush1.msra.mxu0 0.0
    %2551 = vmatprep.subr.mxu0 0.0
    %2552 = vmatpush1.msra.mxu0 0.0
    %2553 = vmatprep.subr.mxu0 0.0
    %2554 = vmatpush1.msra.mxu0 0.0
    %2555 = vmatprep.subr.mxu0 0.0
    %2556 = vmatpush1.msra.mxu0 0.0
    %2557 = vmatprep.subr.mxu0 0.0
    %2558 = vmatpush1.msra.mxu0 0.0
    %2559 = vmatprep.subr.mxu0 0.0
    %2560 = vmatpush1.msra.mxu0 0.0
    %2561 = vmatprep.subr.mxu0 0.0
    %2562 = vmatpush1.msra.mxu0 0.0
    %2563 = vmatprep.subr.mxu0 0.0
    %2564 = vmatpush1.msra.mxu0 0.0
    %2565 = vmatprep.subr.mxu0 0.0
    %2566 = vmatpush1.msra.mxu0 0.0
    %2567 = vmatprep.subr.mxu0 0.0
    %2568 = vmatpush1.msra.mxu0 0.0
    %2569 = vmatprep.subr.mxu0 0.0
    %2570 = vmatpush1.msra.mxu0 0.0
    %2571 = vmatprep.subr.mxu0 0.0
    %2572 = vmatpush1.msra.mxu0 0.0
    %2573 = vmatprep.subr.mxu0 0.0
    %2574 = vmatpush1.msra.mxu0 0.0
    %2575 = vmatprep.subr.mxu0 0.0
    %2576 = vmatpush1.msra.mxu0 0.0
    %2577 = vmatprep.subr.mxu0 0.0
    %2578 = vmatpush1.msra.mxu0 0.0
    %2579 = vmatprep.subr.mxu0 0.0
    %2580 = vmatpush1.msra.mxu0 0.0
    %2581 = vmatprep.subr.mxu0 0.0
    %2582 = vmatpush1.msra.mxu0 0.0
    %2583 = vmatprep.subr.mxu0 0.0
    %2584 = vmatpush1.msra.mxu0 0.0
    %2585 = vmatprep.subr.mxu0 0.0
    %2586 = vmatpush1.msra.mxu0 0.0
    %2587 = vmatprep.mubr.f32.mxu0 0.0
    %2588 = vmatmul.mubr.f32.gmra.mrb[0].mxu0 %v522
    %v2589 = vpop.f32.mrb[0].mxu0
    %v2590 = vadd.f32 %v2521, %v2589
    %v2591 = vpop.f32.mrb[0].mxu0
    %2592 = vmatprep.mubr.f32.mxu0 0.0
    %2593 = vmatmul.mubr.f32.gmra.mrb[0].mxu0 %v525
    %v2594 = vpop.f32.mrb[0].mxu0
    %v2595 = vadd.f32 %v2521, %v2594
    %v2596 = vpop.f32.mrb[0].mxu0
    %2597 = vmatprep.mubr.f32.mxu0 0.0
    %2598 = vmatmul.mubr.f32.gmra.mrb[0].mxu0 %v528
    %v2599 = vpop.f32.mrb[0].mxu0
    %v2600 = vadd.f32 %v2521, %v2599
    %v2601 = vpop.f32.mrb[0].mxu0
    %2602 = vmatprep.mubr.f32.mxu0 0.0
    %2603 = vmatmul.mubr.f32.gmra.mrb[0].mxu0 %v522
    %v2604 = vpop.f32.mrb[0].mxu0
    %v2605 = vadd.f32 %v2521, %v2604
    %v2606 = vpop.f32.mrb[0].mxu0
    %2607 = vmatprep.mubr.f32.mxu0 0.0
    %2608 = vmatmul.mubr.f32.gmra.mrb[0].mxu0 %v531
    %v2609 = vpop.f32.mrb[0].mxu0
    %v2610 = vadd.f32 %v2521, %v2609
    %v2611 = vpop.f32.mrb[0].mxu0
    %2612 = vmatprep.mubr.f32.mxu0 0.0
    %2613 = vmatmul.mubr.f32.gmra.mrb[0].mxu0 %v534
    %v2614 = vpop.f32.mrb[0].mxu0
    %v2615 = vadd.f32 %v2521, %v2614
    %v2616 = vpop.f32.mrb[0].mxu0
    %2617 = vdwg.mxu0
    %v2619 = vsel %vm847, %v2374, 0
    %v2622 = vsel %vm847, %v2379, 0
    %v2625 = vsel %vm847, %v2384, 0
    %v2628 = vsel %vm847, %v2482, 0
    %v2631 = vsel %vm847, %v2487, 0
    %v2634 = vsel %vm847, %v2492, 0
    %2636 = vmatprep.subr.mxu0 0.0
    %2637 = vmatpush1.xpose.msra.mxu0 %v2628
    %2638 = vmatprep.subr.mxu0 0.0
    %2639 = vmatpush1.xpose.msra.mxu0 %v2631
    %2640 = vmatprep.subr.mxu0 0.0
    %2641 = vmatpush1.xpose.msra.mxu0 %v2634
    %2642 = vmatprep.subr.mxu0 0.0
    %2643 = vmatpush1.xpose.msra.mxu0 0.0
    %2644 = vmatprep.subr.mxu0 0.0
    %2645 = vmatpush1.xpose.msra.mxu0 0.0
    %2646 = vmatprep.subr.mxu0 0.0
    %2647 = vmatpush1.xpose.msra.mxu0 0.0
    %2648 = vmatprep.subr.mxu0 0.0
    %2649 = vmatpush1.xpose.msra.mxu0 0.0
    %2650 = vmatprep.subr.mxu0 0.0
    %2651 = vmatpush1.xpose.msra.mxu0 0.0
    %2652 = vmatprep.subr.mxu0 0.0
    %2653 = vmatpush1.xpose.msra.mxu0 0.0
    %2654 = vmatprep.subr.mxu0 0.0
    %2655 = vmatpush1.xpose.msra.mxu0 0.0
    %2656 = vmatprep.subr.mxu0 0.0
    %2657 = vmatpush1.xpose.msra.mxu0 0.0
    %2658 = vmatprep.subr.mxu0 0.0
    %2659 = vmatpush1.xpose.msra.mxu0 0.0
    %2660 = vmatprep.subr.mxu0 0.0
    %2661 = vmatpush1.xpose.msra.mxu0 0.0
    %2662 = vmatprep.subr.mxu0 0.0
    %2663 = vmatpush1.xpose.msra.mxu0 0.0
    %2664 = vmatprep.subr.mxu0 0.0
    %2665 = vmatpush1.xpose.msra.mxu0 0.0
    %2666 = vmatprep.subr.mxu0 0.0
    %2667 = vmatpush1.xpose.msra.mxu0 0.0
    %2668 = vmatprep.subr.mxu0 0.0
    %2669 = vmatpush1.xpose.msra.mxu0 0.0
    %2670 = vmatprep.subr.mxu0 0.0
    %2671 = vmatpush1.xpose.msra.mxu0 0.0
    %2672 = vmatprep.subr.mxu0 0.0
    %2673 = vmatpush1.xpose.msra.mxu0 0.0
    %2674 = vmatprep.subr.mxu0 0.0
    %2675 = vmatpush1.xpose.msra.mxu0 0.0
    %2676 = vmatprep.subr.mxu0 0.0
    %2677 = vmatpush1.xpose.msra.mxu0 0.0
    %2678 = vmatprep.subr.mxu0 0.0
    %2679 = vmatpush1.xpose.msra.mxu0 0.0
    %2680 = vmatprep.subr.mxu0 0.0
    %2681 = vmatpush1.xpose.msra.mxu0 0.0
    %2682 = vmatprep.subr.mxu0 0.0
    %2683 = vmatpush1.xpose.msra.mxu0 0.0
    %2684 = vmatprep.subr.mxu0 0.0
    %2685 = vmatpush1.xpose.msra.mxu0 0.0
    %2686 = vmatprep.subr.mxu0 0.0
    %2687 = vmatpush1.xpose.msra.mxu0 0.0
    %2688 = vmatprep.subr.mxu0 0.0
    %2689 = vmatpush1.xpose.msra.mxu0 0.0
    %2690 = vmatprep.subr.mxu0 0.0
    %2691 = vmatpush1.xpose.msra.mxu0 0.0
    %2692 = vmatprep.subr.mxu0 0.0
    %2693 = vmatpush1.xpose.msra.mxu0 0.0
    %2694 = vmatprep.subr.mxu0 0.0
    %2695 = vmatpush1.xpose.msra.mxu0 0.0
    %2696 = vmatprep.subr.mxu0 0.0
    %2697 = vmatpush1.xpose.msra.mxu0 0.0
    %2698 = vmatprep.subr.mxu0 0.0
    %2699 = vmatpush1.xpose.msra.mxu0 0.0
    %2700 = vmatprep.mubr.f32.mxu0 0.0
    %2701 = vmatmul.mubr.f32.gmra.mrb[0].mxu0 %v2619
    %v2702 = vpop.f32.mrb[0].mxu0
    %v2703 = vadd.f32 0.0, %v2702
    %v2704 = vpop.f32.mrb[0].mxu0
    %2705 = vmatprep.mubr.f32.mxu0 0.0
    %2706 = vmatmul.mubr.f32.gmra.mrb[0].mxu0 %v2622
    %v2707 = vpop.f32.mrb[0].mxu0
    %v2708 = vadd.f32 0.0, %v2707
    %v2709 = vpop.f32.mrb[0].mxu0
    %2710 = vmatprep.mubr.f32.mxu0 0.0
    %2711 = vmatmul.mubr.f32.gmra.mrb[0].mxu0 %v2625
    %v2712 = vpop.f32.mrb[0].mxu0
    %v2713 = vadd.f32 0.0, %v2712
    %v2714 = vpop.f32.mrb[0].mxu0
    %2715 = vdwg.mxu0
    %v2717 = vsel %vm847, %v2389, 0
    %v2720 = vsel %vm847, %v2394, 0
    %v2723 = vsel %vm847, %v2399, 0
    %v2726 = vsel %vm847, %v2497, 0
    %v2729 = vsel %vm847, %v2502, 0
    %v2732 = vsel %vm847, %v2507, 0
    %2734 = vmatprep.subr.mxu0 0.0
    %2735 = vmatpush1.xpose.msra.mxu0 %v2726
    %2736 = vmatprep.subr.mxu0 0.0
    %2737 = vmatpush1.xpose.msra.mxu0 %v2729
    %2738 = vmatprep.subr.mxu0 0.0
    %2739 = vmatpush1.xpose.msra.mxu0 %v2732
    %2740 = vmatprep.subr.mxu0 0.0
    %2741 = vmatpush1.xpose.msra.mxu0 0.0
    %2742 = vmatprep.subr.mxu0 0.0
    %2743 = vmatpush1.xpose.msra.mxu0 0.0
    %2744 = vmatprep.subr.mxu0 0.0
    %2745 = vmatpush1.xpose.msra.mxu0 0.0
    %2746 = vmatprep.subr.mxu0 0.0
    %2747 = vmatpush1.xpose.msra.mxu0 0.0
    %2748 = vmatprep.subr.mxu0 0.0
    %2749 = vmatpush1.xpose.msra.mxu0 0.0
    %2750 = vmatprep.subr.mxu0 0.0
    %2751 = vmatpush1.xpose.msra.mxu0 0.0
    %2752 = vmatprep.subr.mxu0 0.0
    %2753 = vmatpush1.xpose.msra.mxu0 0.0
    %2754 = vmatprep.subr.mxu0 0.0
    %2755 = vmatpush1.xpose.msra.mxu0 0.0
    %2756 = vmatprep.subr.mxu0 0.0
    %2757 = vmatpush1.xpose.msra.mxu0 0.0
    %2758 = vmatprep.subr.mxu0 0.0
    %2759 = vmatpush1.xpose.msra.mxu0 0.0
    %2760 = vmatprep.subr.mxu0 0.0
    %2761 = vmatpush1.xpose.msra.mxu0 0.0
    %2762 = vmatprep.subr.mxu0 0.0
    %2763 = vmatpush1.xpose.msra.mxu0 0.0
    %2764 = vmatprep.subr.mxu0 0.0
    %2765 = vmatpush1.xpose.msra.mxu0 0.0
    %2766 = vmatprep.subr.mxu0 0.0
    %2767 = vmatpush1.xpose.msra.mxu0 0.0
    %2768 = vmatprep.subr.mxu0 0.0
    %2769 = vmatpush1.xpose.msra.mxu0 0.0
    %2770 = vmatprep.subr.mxu0 0.0
    %2771 = vmatpush1.xpose.msra.mxu0 0.0
    %2772 = vmatprep.subr.mxu0 0.0
    %2773 = vmatpush1.xpose.msra.mxu0 0.0
    %2774 = vmatprep.subr.mxu0 0.0
    %2775 = vmatpush1.xpose.msra.mxu0 0.0
    %2776 = vmatprep.subr.mxu0 0.0
    %2777 = vmatpush1.xpose.msra.mxu0 0.0
    %2778 = vmatprep.subr.mxu0 0.0
    %2779 = vmatpush1.xpose.msra.mxu0 0.0
    %2780 = vmatprep.subr.mxu0 0.0
    %2781 = vmatpush1.xpose.msra.mxu0 0.0
    %2782 = vmatprep.subr.mxu0 0.0
    %2783 = vmatpush1.xpose.msra.mxu0 0.0
    %2784 = vmatprep.subr.mxu0 0.0
    %2785 = vmatpush1.xpose.msra.mxu0 0.0
    %2786 = vmatprep.subr.mxu0 0.0
    %2787 = vmatpush1.xpose.msra.mxu0 0.0
    %2788 = vmatprep.subr.mxu0 0.0
    %2789 = vmatpush1.xpose.msra.mxu0 0.0
    %2790 = vmatprep.subr.mxu0 0.0
    %2791 = vmatpush1.xpose.msra.mxu0 0.0
    %2792 = vmatprep.subr.mxu0 0.0
    %2793 = vmatpush1.xpose.msra.mxu0 0.0
    %2794 = vmatprep.subr.mxu0 0.0
    %2795 = vmatpush1.xpose.msra.mxu0 0.0
    %2796 = vmatprep.subr.mxu0 0.0
    %2797 = vmatpush1.xpose.msra.mxu0 0.0
    %2798 = vmatprep.mubr.f32.mxu0 0.0
    %2799 = vmatmul.mubr.f32.gmra.mrb[0].mxu0 %v2717
    %v2800 = vpop.f32.mrb[0].mxu0
    %v2801 = vadd.f32 0.0, %v2800
    %v2802 = vpop.f32.mrb[0].mxu0
    %2803 = vmatprep.mubr.f32.mxu0 0.0
    %2804 = vmatmul.mubr.f32.gmra.mrb[0].mxu0 %v2720
    %v2805 = vpop.f32.mrb[0].mxu0
    %v2806 = vadd.f32 0.0, %v2805
    %v2807 = vpop.f32.mrb[0].mxu0
    %2808 = vmatprep.mubr.f32.mxu0 0.0
    %2809 = vmatmul.mubr.f32.gmra.mrb[0].mxu0 %v2723
    %v2810 = vpop.f32.mrb[0].mxu0
    %v2811 = vadd.f32 0.0, %v2810
    %v2812 = vpop.f32.mrb[0].mxu0
    %2813 = vdwg.mxu0
    %v2814 = vmul.f32 %v2703, 0.35355338
    %v2815 = vmul.f32 %v2708, 0.35355338
    %v2816 = vmul.f32 %v2713, 0.35355338
    %v2817 = vmul.f32 %v2801, 0.35355338
    %v2818 = vmul.f32 %v2806, 0.35355338
    %v2819 = vmul.f32 %v2811, 0.35355338
    %v2820 = vsel %vm1050, %v2814, -inf
    %2821 = vmax.xlane.f32.xlu0 %v2820
    %v2822 = vpop.xlane.xlu0 %2821
    %v2823 = vsel %vm1050, %v2815, -inf
    %2824 = vmax.xlane.f32.xlu0 %v2823
    %v2825 = vpop.xlane.xlu0 %2824
    %v2826 = vsel %vm1050, %v2816, -inf
    %2827 = vmax.xlane.f32.xlu0 %v2826
    %v2828 = vpop.xlane.xlu0 %2827
    %v2829 = vsel %vm1050, %v2817, -inf
    %2830 = vmax.xlane.f32.xlu0 %v2829
    %v2831 = vpop.xlane.xlu0 %2830
    %v2832 = vsel %vm1050, %v2818, -inf
    %2833 = vmax.xlane.f32.xlu0 %v2832
    %v2834 = vpop.xlane.xlu0 %2833
    %v2835 = vsel %vm1050, %v2819, -inf
    %2836 = vmax.xlane.f32.xlu0 %v2835
    %v2837 = vpop.xlane.xlu0 %2836
    %v2838 = vsub.f32 %v2814, %v2822
    %v2839 = vsub.f32 %v2815, %v2825
    %v2840 = vsub.f32 %v2816, %v2828
    %v2841 = vsub.f32 %v2817, %v2831
    %v2842 = vsub.f32 %v2818, %v2834
    %v2843 = vsub.f32 %v2819, %v2837
    %v2844 = vmul.f32 %v2838, 1.442695
    %v2845 = vpow.pop %v2844
    %v2846 = vmul.f32 %v2839, 1.442695
    %v2847 = vpow.pop %v2846
    %v2848 = vmul.f32 %v2840, 1.442695
    %v2849 = vpow.pop %v2848
    %v2850 = vmul.f32 %v2841, 1.442695
    %v2851 = vpow.pop %v2850
    %v2852 = vmul.f32 %v2842, 1.442695
    %v2853 = vpow.pop %v2852
    %v2854 = vmul.f32 %v2843, 1.442695
    %v2855 = vpow.pop %v2854
    %v2856 = vsel %vm1050, %v2845, 0.0
    %2857 = vadd.xlane.f32.xlu0 %v2856
    %v2858 = vpop.xlane.xlu0 %2857
    %v2859 = vsel %vm1050, %v2847, 0.0
    %2860 = vadd.xlane.f32.xlu0 %v2859
    %v2861 = vpop.xlane.xlu0 %2860
    %v2862 = vsel %vm1050, %v2849, 0.0
    %2863 = vadd.xlane.f32.xlu0 %v2862
    %v2864 = vpop.xlane.xlu0 %2863
    %v2865 = vsel %vm1050, %v2851, 0.0
    %2866 = vadd.xlane.f32.xlu0 %v2865
    %v2867 = vpop.xlane.xlu0 %2866
    %v2868 = vsel %vm1050, %v2853, 0.0
    %2869 = vadd.xlane.f32.xlu0 %v2868
    %v2870 = vpop.xlane.xlu0 %2869
    %v2871 = vsel %vm1050, %v2855, 0.0
    %2872 = vadd.xlane.f32.xlu0 %v2871
    %v2873 = vpop.xlane.xlu0 %2872
    %v2874 = vrcp.pop %v2858
    %v2875 = vrcp.pop %v2861
    %v2876 = vrcp.pop %v2864
    %v2877 = vrcp.pop %v2867
    %v2878 = vrcp.pop %v2870
    %v2879 = vrcp.pop %v2873
    %v2880 = vmul.f32 %v2845, %v2874
    %v2881 = vmul.f32 %v2847, %v2875
    %v2882 = vmul.f32 %v2849, %v2876
    %v2883 = vmul.f32 %v2851, %v2877
    %v2884 = vmul.f32 %v2853, %v2878
    %v2885 = vmul.f32 %v2855, %v2879
    %v2887 = vsel %vm1050, %v2880, 0
    %v2890 = vsel %vm1050, %v2881, 0
    %v2893 = vsel %vm1050, %v2882, 0
    %2895 = vmatprep.subr.mxu0 0.0
    %2896 = vmatpush1.msra.mxu0 %v2590
    %2897 = vmatprep.subr.mxu0 0.0
    %2898 = vmatpush1.msra.mxu0 %v2595
    %2899 = vmatprep.subr.mxu0 0.0
    %2900 = vmatpush1.msra.mxu0 %v2600
    %2901 = vmatprep.subr.mxu0 0.0
    %2902 = vmatpush1.msra.mxu0 0.0
    %2903 = vmatprep.subr.mxu0 0.0
    %2904 = vmatpush1.msra.mxu0 0.0
    %2905 = vmatprep.subr.mxu0 0.0
    %2906 = vmatpush1.msra.mxu0 0.0
    %2907 = vmatprep.subr.mxu0 0.0
    %2908 = vmatpush1.msra.mxu0 0.0
    %2909 = vmatprep.subr.mxu0 0.0
    %2910 = vmatpush1.msra.mxu0 0.0
    %2911 = vmatprep.subr.mxu0 0.0
    %2912 = vmatpush1.msra.mxu0 0.0
    %2913 = vmatprep.subr.mxu0 0.0
    %2914 = vmatpush1.msra.mxu0 0.0
    %2915 = vmatprep.subr.mxu0 0.0
    %2916 = vmatpush1.msra.mxu0 0.0
    %2917 = vmatprep.subr.mxu0 0.0
    %2918 = vmatpush1.msra.mxu0 0.0
    %2919 = vmatprep.subr.mxu0 0.0
    %2920 = vmatpush1.msra.mxu0 0.0
    %2921 = vmatprep.subr.mxu0 0.0
    %2922 = vmatpush1.msra.mxu0 0.0
    %2923 = vmatprep.subr.mxu0 0.0
    %2924 = vmatpush1.msra.mxu0 0.0
    %2925 = vmatprep.subr.mxu0 0.0
    %2926 = vmatpush1.msra.mxu0 0.0
    %2927 = vmatprep.subr.mxu0 0.0
    %2928 = vmatpush1.msra.mxu0 0.0
    %2929 = vmatprep.subr.mxu0 0.0
    %2930 = vmatpush1.msra.mxu0 0.0
    %2931 = vmatprep.subr.mxu0 0.0
    %2932 = vmatpush1.msra.mxu0 0.0
    %2933 = vmatprep.subr.mxu0 0.0
    %2934 = vmatpush1.msra.mxu0 0.0
    %2935 = vmatprep.subr.mxu0 0.0
    %2936 = vmatpush1.msra.mxu0 0.0
    %2937 = vmatprep.subr.mxu0 0.0
    %2938 = vmatpush1.msra.mxu0 0.0
    %2939 = vmatprep.subr.mxu0 0.0
    %2940 = vmatpush1.msra.mxu0 0.0
    %2941 = vmatprep.subr.mxu0 0.0
    %2942 = vmatpush1.msra.mxu0 0.0
    %2943 = vmatprep.subr.mxu0 0.0
    %2944 = vmatpush1.msra.mxu0 0.0
    %2945 = vmatprep.subr.mxu0 0.0
    %2946 = vmatpush1.msra.mxu0 0.0
    %2947 = vmatprep.subr.mxu0 0.0
    %2948 = vmatpush1.msra.mxu0 0.0
    %2949 = vmatprep.subr.mxu0 0.0
    %2950 = vmatpush1.msra.mxu0 0.0
    %2951 = vmatprep.subr.mxu0 0.0
    %2952 = vmatpush1.msra.mxu0 0.0
    %2953 = vmatprep.subr.mxu0 0.0
    %2954 = vmatpush1.msra.mxu0 0.0
    %2955 = vmatprep.subr.mxu0 0.0
    %2956 = vmatpush1.msra.mxu0 0.0
    %2957 = vmatprep.subr.mxu0 0.0
    %2958 = vmatpush1.msra.mxu0 0.0
    %2959 = vmatprep.mubr.f32.mxu0 0.0
    %2960 = vmatmul.mubr.f32.gmra.mrb[0].mxu0 %v2887
    %v2961 = vpop.f32.mrb[0].mxu0
    %v2962 = vadd.f32 0.0, %v2961
    %v2963 = vpop.f32.mrb[0].mxu0
    %2964 = vmatprep.mubr.f32.mxu0 0.0
    %2965 = vmatmul.mubr.f32.gmra.mrb[0].mxu0 %v2890
    %v2966 = vpop.f32.mrb[0].mxu0
    %v2967 = vadd.f32 0.0, %v2966
    %v2968 = vpop.f32.mrb[0].mxu0
    %2969 = vmatprep.mubr.f32.mxu0 0.0
    %2970 = vmatmul.mubr.f32.gmra.mrb[0].mxu0 %v2893
    %v2971 = vpop.f32.mrb[0].mxu0
    %v2972 = vadd.f32 0.0, %v2971
    %v2973 = vpop.f32.mrb[0].mxu0
    %2974 = vdwg.mxu0
    %v2976 = vsel %vm1050, %v2883, 0
    %v2979 = vsel %vm1050, %v2884, 0
    %v2982 = vsel %vm1050, %v2885, 0
    %2984 = vmatprep.subr.mxu0 0.0
    %2985 = vmatpush1.msra.mxu0 %v2605
    %2986 = vmatprep.subr.mxu0 0.0
    %2987 = vmatpush1.msra.mxu0 %v2610
    %2988 = vmatprep.subr.mxu0 0.0
    %2989 = vmatpush1.msra.mxu0 %v2615
    %2990 = vmatprep.subr.mxu0 0.0
    %2991 = vmatpush1.msra.mxu0 0.0
    %2992 = vmatprep.subr.mxu0 0.0
    %2993 = vmatpush1.msra.mxu0 0.0
    %2994 = vmatprep.subr.mxu0 0.0
    %2995 = vmatpush1.msra.mxu0 0.0
    %2996 = vmatprep.subr.mxu0 0.0
    %2997 = vmatpush1.msra.mxu0 0.0
    %2998 = vmatprep.subr.mxu0 0.0
    %2999 = vmatpush1.msra.mxu0 0.0
    %3000 = vmatprep.subr.mxu0 0.0
    %3001 = vmatpush1.msra.mxu0 0.0
    %3002 = vmatprep.subr.mxu0 0.0
    %3003 = vmatpush1.msra.mxu0 0.0
    %3004 = vmatprep.subr.mxu0 0.0
    %3005 = vmatpush1.msra.mxu0 0.0
    %3006 = vmatprep.subr.mxu0 0.0
    %3007 = vmatpush1.msra.mxu0 0.0
    %3008 = vmatprep.subr.mxu0 0.0
    %3009 = vmatpush1.msra.mxu0 0.0
    %3010 = vmatprep.subr.mxu0 0.0
    %3011 = vmatpush1.msra.mxu0 0.0
    %3012 = vmatprep.subr.mxu0 0.0
    %3013 = vmatpush1.msra.mxu0 0.0
    %3014 = vmatprep.subr.mxu0 0.0
    %3015 = vmatpush1.msra.mxu0 0.0
    %3016 = vmatprep.subr.mxu0 0.0
    %3017 = vmatpush1.msra.mxu0 0.0
    %3018 = vmatprep.subr.mxu0 0.0
    %3019 = vmatpush1.msra.mxu0 0.0
    %3020 = vmatprep.subr.mxu0 0.0
    %3021 = vmatpush1.msra.mxu0 0.0
    %3022 = vmatprep.subr.mxu0 0.0
    %3023 = vmatpush1.msra.mxu0 0.0
    %3024 = vmatprep.subr.mxu0 0.0
    %3025 = vmatpush1.msra.mxu0 0.0
    %3026 = vmatprep.subr.mxu0 0.0
    %3027 = vmatpush1.msra.mxu0 0.0
    %3028 = vmatprep.subr.mxu0 0.0
    %3029 = vmatpush1.msra.mxu0 0.0
    %3030 = vmatprep.subr.mxu0 0.0
    %3031 = vmatpush1.msra.mxu0 0.0
    %3032 = vmatprep.subr.mxu0 0.0
    %3033 = vmatpush1.msra.mxu0 0.0
    %3034 = vmatprep.subr.mxu0 0.0
    %3035 = vmatpush1.msra.mxu0 0.0
    %3036 = vmatprep.subr.mxu0 0.0
    %3037 = vmatpush1.msra.mxu0 0.0
    %3038 = vmatprep.subr.mxu0 0.0
    %3039 = vmatpush1.msra.mxu0 0.0
    %3040 = vmatprep.subr.mxu0 0.0
    %3041 = vmatpush1.msra.mxu0 0.0
    %3042 = vmatprep.subr.mxu0 0.0
    %3043 = vmatpush1.msra.mxu0 0.0
    %3044 = vmatprep.subr.mxu0 0.0
    %3045 = vmatpush1.msra.mxu0 0.0
    %3046 = vmatprep.subr.mxu0 0.0
    %3047 = vmatpush1.msra.mxu0 0.0
    %3048 = vmatprep.mubr.f32.mxu0 0.0
    %3049 = vmatmul.mubr.f32.gmra.mrb[0].mxu0 %v2976
    %v3050 = vpop.f32.mrb[0].mxu0
    %v3051 = vadd.f32 0.0, %v3050
    %v3052 = vpop.f32.mrb[0].mxu0
    %3053 = vmatprep.mubr.f32.mxu0 0.0
    %3054 = vmatmul.mubr.f32.gmra.mrb[0].mxu0 %v2979
    %v3055 = vpop.f32.mrb[0].mxu0
    %v3056 = vadd.f32 0.0, %v3055
    %v3057 = vpop.f32.mrb[0].mxu0
    %3058 = vmatprep.mubr.f32.mxu0 0.0
    %3059 = vmatmul.mubr.f32.gmra.mrb[0].mxu0 %v2982
    %v3060 = vpop.f32.mrb[0].mxu0
    %v3061 = vadd.f32 0.0, %v3060
    %v3062 = vpop.f32.mrb[0].mxu0
    %3063 = vdwg.mxu0
    %s3064 = scalar_lea.vmem %s6, 16
    %v3065 = vld [vmem:[%s3064] sm:$0xff]
    %v3067 = vsel %vm847, %v2962, 0
    %v3070 = vsel %vm847, %v2967, 0
    %v3073 = vsel %vm847, %v2972, 0
    %v3076 = vsel %vm847, %v3051, 0
    %v3079 = vsel %vm847, %v3056, 0
    %v3082 = vsel %vm847, %v3061, 0
    %3084 = vmatprep.subr.mxu0 0.0
    %3085 = vmatpush1.msra.mxu0 %v3065
    %3086 = vmatprep.subr.mxu0 0.0
    %3087 = vmatpush1.msra.mxu0 0.0
    %3088 = vmatprep.subr.mxu0 0.0
    %3089 = vmatpush1.msra.mxu0 0.0
    %3090 = vmatprep.subr.mxu0 0.0
    %3091 = vmatpush1.msra.mxu0 0.0
    %3092 = vmatprep.subr.mxu0 0.0
    %3093 = vmatpush1.msra.mxu0 0.0
    %3094 = vmatprep.subr.mxu0 0.0
    %3095 = vmatpush1.msra.mxu0 0.0
    %3096 = vmatprep.subr.mxu0 0.0
    %3097 = vmatpush1.msra.mxu0 0.0
    %3098 = vmatprep.subr.mxu0 0.0
    %3099 = vmatpush1.msra.mxu0 0.0
    %3100 = vmatprep.subr.mxu0 0.0
    %3101 = vmatpush1.msra.mxu0 0.0
    %3102 = vmatprep.subr.mxu0 0.0
    %3103 = vmatpush1.msra.mxu0 0.0
    %3104 = vmatprep.subr.mxu0 0.0
    %3105 = vmatpush1.msra.mxu0 0.0
    %3106 = vmatprep.subr.mxu0 0.0
    %3107 = vmatpush1.msra.mxu0 0.0
    %3108 = vmatprep.subr.mxu0 0.0
    %3109 = vmatpush1.msra.mxu0 0.0
    %3110 = vmatprep.subr.mxu0 0.0
    %3111 = vmatpush1.msra.mxu0 0.0
    %3112 = vmatprep.subr.mxu0 0.0
    %3113 = vmatpush1.msra.mxu0 0.0
    %3114 = vmatprep.subr.mxu0 0.0
    %3115 = vmatpush1.msra.mxu0 0.0
    %3116 = vmatprep.subr.mxu0 0.0
    %3117 = vmatpush1.msra.mxu0 0.0
    %3118 = vmatprep.subr.mxu0 0.0
    %3119 = vmatpush1.msra.mxu0 0.0
    %3120 = vmatprep.subr.mxu0 0.0
    %3121 = vmatpush1.msra.mxu0 0.0
    %3122 = vmatprep.subr.mxu0 0.0
    %3123 = vmatpush1.msra.mxu0 0.0
    %3124 = vmatprep.subr.mxu0 0.0
    %3125 = vmatpush1.msra.mxu0 0.0
    %3126 = vmatprep.subr.mxu0 0.0
    %3127 = vmatpush1.msra.mxu0 0.0
    %3128 = vmatprep.subr.mxu0 0.0
    %3129 = vmatpush1.msra.mxu0 0.0
    %3130 = vmatprep.subr.mxu0 0.0
    %3131 = vmatpush1.msra.mxu0 0.0
    %3132 = vmatprep.subr.mxu0 0.0
    %3133 = vmatpush1.msra.mxu0 0.0
    %3134 = vmatprep.subr.mxu0 0.0
    %3135 = vmatpush1.msra.mxu0 0.0
    %3136 = vmatprep.subr.mxu0 0.0
    %3137 = vmatpush1.msra.mxu0 0.0
    %3138 = vmatprep.subr.mxu0 0.0
    %3139 = vmatpush1.msra.mxu0 0.0
    %3140 = vmatprep.subr.mxu0 0.0
    %3141 = vmatpush1.msra.mxu0 0.0
    %3142 = vmatprep.subr.mxu0 0.0
    %3143 = vmatpush1.msra.mxu0 0.0
    %3144 = vmatprep.subr.mxu0 0.0
    %3145 = vmatpush1.msra.mxu0 0.0
    %3146 = vmatprep.subr.mxu0 0.0
    %3147 = vmatpush1.msra.mxu0 0.0
    %3148 = vmatprep.mubr.f32.mxu0 0.0
    %3149 = vmatmul.mubr.f32.gmra.mrb[0].mxu0 %v3067
    %v3150 = vpop.f32.mrb[0].mxu0
    %v3151 = vadd.f32 0.0, %v3150
    %v3152 = vpop.f32.mrb[0].mxu0
    %3153 = vmatprep.mubr.f32.mxu0 0.0
    %3154 = vmatmul.mubr.f32.gmra.mrb[0].mxu0 %v3070
    %v3155 = vpop.f32.mrb[0].mxu0
    %v3156 = vadd.f32 0.0, %v3155
    %v3157 = vpop.f32.mrb[0].mxu0
    %3158 = vmatprep.mubr.f32.mxu0 0.0
    %3159 = vmatmul.mubr.f32.gmra.mrb[0].mxu0 %v3073
    %v3160 = vpop.f32.mrb[0].mxu0
    %v3161 = vadd.f32 0.0, %v3160
    %v3162 = vpop.f32.mrb[0].mxu0
    %3163 = vmatprep.mubr.f32.mxu0 0.0
    %3164 = vmatmul.mubr.f32.gmra.mrb[0].mxu0 %v3076
    %v3165 = vpop.f32.mrb[0].mxu0
    %v3166 = vadd.f32 0.0, %v3165
    %v3167 = vpop.f32.mrb[0].mxu0
    %3168 = vmatprep.mubr.f32.mxu0 0.0
    %3169 = vmatmul.mubr.f32.gmra.mrb[0].mxu0 %v3079
    %v3170 = vpop.f32.mrb[0].mxu0
    %v3171 = vadd.f32 0.0, %v3170
    %v3172 = vpop.f32.mrb[0].mxu0
    %3173 = vmatprep.mubr.f32.mxu0 0.0
    %3174 = vmatmul.mubr.f32.gmra.mrb[0].mxu0 %v3082
    %v3175 = vpop.f32.mrb[0].mxu0
    %v3176 = vadd.f32 0.0, %v3175
    %v3177 = vpop.f32.mrb[0].mxu0
    %3178 = vdwg.mxu0
    %v3179 = vadd.f32 %v2266, %v3151
    %v3180 = vadd.f32 %v2271, %v3156
    %v3181 = vadd.f32 %v2276, %v3161
    %v3182 = vadd.f32 %v2281, %v3166
    %v3183 = vadd.f32 %v2286, %v3171
    %v3184 = vadd.f32 %v2291, %v3176
    %s3185 = scalar_lea.vmem %s4, 96
    %v3186 = vld [vmem:[%s3185] sm:$0xff]
    %v3187 = vld [vmem:[%s3185 + $0x8] sm:$0xff]
    %v3188 = vld [vmem:[%s3185 + $0x10] sm:$0xff]
    %v3189 = vld [vmem:[%s3185 + $0x18] sm:$0xff]
    %s3190 = scalar_lea.vmem %s5, 3
    %v3191 = vld [vmem:[%s3190] sm:$0x1]
    %v3193 = vlaneseq
    %v3194 = vshrl.u32 %v3193, 7
    %v3195 = vsub.s32 0, %v3194
    %v3196 = vrot.slane %v3191, %v3195
    %3198 = vmatprep.subr.mxu0 0.0
    %3199 = vmatpush1.msra.mxu0 %v3186
    %3200 = vmatprep.subr.mxu0 0.0
    %3201 = vmatpush1.msra.mxu0 %v3187
    %3202 = vmatprep.subr.mxu0 0.0
    %3203 = vmatpush1.msra.mxu0 %v3188
    %3204 = vmatprep.subr.mxu0 0.0
    %3205 = vmatpush1.msra.mxu0 %v3189
    %3206 = vmatprep.subr.mxu0 0.0
    %3207 = vmatpush1.msra.mxu0 0.0
    %3208 = vmatprep.subr.mxu0 0.0
    %3209 = vmatpush1.msra.mxu0 0.0
    %3210 = vmatprep.subr.mxu0 0.0
    %3211 = vmatpush1.msra.mxu0 0.0
    %3212 = vmatprep.subr.mxu0 0.0
    %3213 = vmatpush1.msra.mxu0 0.0
    %3214 = vmatprep.subr.mxu0 0.0
    %3215 = vmatpush1.msra.mxu0 0.0
    %3216 = vmatprep.subr.mxu0 0.0
    %3217 = vmatpush1.msra.mxu0 0.0
    %3218 = vmatprep.subr.mxu0 0.0
    %3219 = vmatpush1.msra.mxu0 0.0
    %3220 = vmatprep.subr.mxu0 0.0
    %3221 = vmatpush1.msra.mxu0 0.0
    %3222 = vmatprep.subr.mxu0 0.0
    %3223 = vmatpush1.msra.mxu0 0.0
    %3224 = vmatprep.subr.mxu0 0.0
    %3225 = vmatpush1.msra.mxu0 0.0
    %3226 = vmatprep.subr.mxu0 0.0
    %3227 = vmatpush1.msra.mxu0 0.0
    %3228 = vmatprep.subr.mxu0 0.0
    %3229 = vmatpush1.msra.mxu0 0.0
    %3230 = vmatprep.subr.mxu0 0.0
    %3231 = vmatpush1.msra.mxu0 0.0
    %3232 = vmatprep.subr.mxu0 0.0
    %3233 = vmatpush1.msra.mxu0 0.0
    %3234 = vmatprep.subr.mxu0 0.0
    %3235 = vmatpush1.msra.mxu0 0.0
    %3236 = vmatprep.subr.mxu0 0.0
    %3237 = vmatpush1.msra.mxu0 0.0
    %3238 = vmatprep.subr.mxu0 0.0
    %3239 = vmatpush1.msra.mxu0 0.0
    %3240 = vmatprep.subr.mxu0 0.0
    %3241 = vmatpush1.msra.mxu0 0.0
    %3242 = vmatprep.subr.mxu0 0.0
    %3243 = vmatpush1.msra.mxu0 0.0
    %3244 = vmatprep.subr.mxu0 0.0
    %3245 = vmatpush1.msra.mxu0 0.0
    %3246 = vmatprep.subr.mxu0 0.0
    %3247 = vmatpush1.msra.mxu0 0.0
    %3248 = vmatprep.subr.mxu0 0.0
    %3249 = vmatpush1.msra.mxu0 0.0
    %3250 = vmatprep.subr.mxu0 0.0
    %3251 = vmatpush1.msra.mxu0 0.0
    %3252 = vmatprep.subr.mxu0 0.0
    %3253 = vmatpush1.msra.mxu0 0.0
    %3254 = vmatprep.subr.mxu0 0.0
    %3255 = vmatpush1.msra.mxu0 0.0
    %3256 = vmatprep.subr.mxu0 0.0
    %3257 = vmatpush1.msra.mxu0 0.0
    %3258 = vmatprep.subr.mxu0 0.0
    %3259 = vmatpush1.msra.mxu0 0.0
    %3260 = vmatprep.subr.mxu0 0.0
    %3261 = vmatpush1.msra.mxu0 0.0
    %3262 = vmatprep.mubr.f32.mxu0 0.0
    %3263 = vmatmul.mubr.f32.gmra.mrb[0].mxu0 %v522
    %v3264 = vpop.f32.mrb[0].mxu0
    %v3265 = vadd.f32 %v3196, %v3264
    %v3266 = vpop.f32.mrb[0].mxu0
    %3267 = vmatprep.mubr.f32.mxu0 0.0
    %3268 = vmatmul.mubr.f32.gmra.mrb[0].mxu0 %v525
    %v3269 = vpop.f32.mrb[0].mxu0
    %v3270 = vadd.f32 %v3196, %v3269
    %v3271 = vpop.f32.mrb[0].mxu0
    %3272 = vmatprep.mubr.f32.mxu0 0.0
    %3273 = vmatmul.mubr.f32.gmra.mrb[0].mxu0 %v528
    %v3274 = vpop.f32.mrb[0].mxu0
    %v3275 = vadd.f32 %v3196, %v3274
    %v3276 = vpop.f32.mrb[0].mxu0
    %3277 = vmatprep.mubr.f32.mxu0 0.0
    %3278 = vmatmul.mubr.f32.gmra.mrb[0].mxu0 %v522
    %v3279 = vpop.f32.mrb[0].mxu0
    %v3280 = vadd.f32 %v3196, %v3279
    %v3281 = vpop.f32.mrb[0].mxu0
    %3282 = vmatprep.mubr.f32.mxu0 0.0
    %3283 = vmatmul.mubr.f32.gmra.mrb[0].mxu0 %v531
    %v3284 = vpop.f32.mrb[0].mxu0
    %v3285 = vadd.f32 %v3196, %v3284
    %v3286 = vpop.f32.mrb[0].mxu0
    %3287 = vmatprep.mubr.f32.mxu0 0.0
    %3288 = vmatmul.mubr.f32.gmra.mrb[0].mxu0 %v534
    %v3289 = vpop.f32.mrb[0].mxu0
    %v3290 = vadd.f32 %v3196, %v3289
    %v3291 = vpop.f32.mrb[0].mxu0
    %3292 = vdwg.mxu0
    %s3293 = scalar_lea.vmem %s4, 224
    %v3294 = vld [vmem:[%s3293] sm:$0xff]
    %v3295 = vld [vmem:[%s3293 + $0x8] sm:$0xff]
    %v3296 = vld [vmem:[%s3293 + $0x10] sm:$0xff]
    %v3297 = vld [vmem:[%s3293 + $0x18] sm:$0xff]
    %s3298 = scalar_lea.vmem %s5, 7
    %v3299 = vld [vmem:[%s3298] sm:$0x1]
    %v3301 = vlaneseq
    %v3302 = vshrl.u32 %v3301, 7
    %v3303 = vsub.s32 0, %v3302
    %v3304 = vrot.slane %v3299, %v3303
    %3306 = vmatprep.subr.mxu0 0.0
    %3307 = vmatpush1.msra.mxu0 %v3294
    %3308 = vmatprep.subr.mxu0 0.0
    %3309 = vmatpush1.msra.mxu0 %v3295
    %3310 = vmatprep.subr.mxu0 0.0
    %3311 = vmatpush1.msra.mxu0 %v3296
    %3312 = vmatprep.subr.mxu0 0.0
    %3313 = vmatpush1.msra.mxu0 %v3297
    %3314 = vmatprep.subr.mxu0 0.0
    %3315 = vmatpush1.msra.mxu0 0.0
    %3316 = vmatprep.subr.mxu0 0.0
    %3317 = vmatpush1.msra.mxu0 0.0
    %3318 = vmatprep.subr.mxu0 0.0
    %3319 = vmatpush1.msra.mxu0 0.0
    %3320 = vmatprep.subr.mxu0 0.0
    %3321 = vmatpush1.msra.mxu0 0.0
    %3322 = vmatprep.subr.mxu0 0.0
    %3323 = vmatpush1.msra.mxu0 0.0
    %3324 = vmatprep.subr.mxu0 0.0
    %3325 = vmatpush1.msra.mxu0 0.0
    %3326 = vmatprep.subr.mxu0 0.0
    %3327 = vmatpush1.msra.mxu0 0.0
    %3328 = vmatprep.subr.mxu0 0.0
    %3329 = vmatpush1.msra.mxu0 0.0
    %3330 = vmatprep.subr.mxu0 0.0
    %3331 = vmatpush1.msra.mxu0 0.0
    %3332 = vmatprep.subr.mxu0 0.0
    %3333 = vmatpush1.msra.mxu0 0.0
    %3334 = vmatprep.subr.mxu0 0.0
    %3335 = vmatpush1.msra.mxu0 0.0
    %3336 = vmatprep.subr.mxu0 0.0
    %3337 = vmatpush1.msra.mxu0 0.0
    %3338 = vmatprep.subr.mxu0 0.0
    %3339 = vmatpush1.msra.mxu0 0.0
    %3340 = vmatprep.subr.mxu0 0.0
    %3341 = vmatpush1.msra.mxu0 0.0
    %3342 = vmatprep.subr.mxu0 0.0
    %3343 = vmatpush1.msra.mxu0 0.0
    %3344 = vmatprep.subr.mxu0 0.0
    %3345 = vmatpush1.msra.mxu0 0.0
    %3346 = vmatprep.subr.mxu0 0.0
    %3347 = vmatpush1.msra.mxu0 0.0
    %3348 = vmatprep.subr.mxu0 0.0
    %3349 = vmatpush1.msra.mxu0 0.0
    %3350 = vmatprep.subr.mxu0 0.0
    %3351 = vmatpush1.msra.mxu0 0.0
    %3352 = vmatprep.subr.mxu0 0.0
    %3353 = vmatpush1.msra.mxu0 0.0
    %3354 = vmatprep.subr.mxu0 0.0
    %3355 = vmatpush1.msra.mxu0 0.0
    %3356 = vmatprep.subr.mxu0 0.0
    %3357 = vmatpush1.msra.mxu0 0.0
    %3358 = vmatprep.subr.mxu0 0.0
    %3359 = vmatpush1.msra.mxu0 0.0
    %3360 = vmatprep.subr.mxu0 0.0
    %3361 = vmatpush1.msra.mxu0 0.0
    %3362 = vmatprep.subr.mxu0 0.0
    %3363 = vmatpush1.msra.mxu0 0.0
    %3364 = vmatprep.subr.mxu0 0.0
    %3365 = vmatpush1.msra.mxu0 0.0
    %3366 = vmatprep.subr.mxu0 0.0
    %3367 = vmatpush1.msra.mxu0 0.0
    %3368 = vmatprep.subr.mxu0 0.0
    %3369 = vmatpush1.msra.mxu0 0.0
    %3370 = vmatprep.mubr.f32.mxu0 0.0
    %3371 = vmatmul.mubr.f32.gmra.mrb[0].mxu0 %v522
    %v3372 = vpop.f32.mrb[0].mxu0
    %v3373 = vadd.f32 %v3304, %v3372
    %v3374 = vpop.f32.mrb[0].mxu0
    %3375 = vmatprep.mubr.f32.mxu0 0.0
    %3376 = vmatmul.mubr.f32.gmra.mrb[0].mxu0 %v525
    %v3377 = vpop.f32.mrb[0].mxu0
    %v3378 = vadd.f32 %v3304, %v3377
    %v3379 = vpop.f32.mrb[0].mxu0
    %3380 = vmatprep.mubr.f32.mxu0 0.0
    %3381 = vmatmul.mubr.f32.gmra.mrb[0].mxu0 %v528
    %v3382 = vpop.f32.mrb[0].mxu0
    %v3383 = vadd.f32 %v3304, %v3382
    %v3384 = vpop.f32.mrb[0].mxu0
    %3385 = vmatprep.mubr.f32.mxu0 0.0
    %3386 = vmatmul.mubr.f32.gmra.mrb[0].mxu0 %v522
    %v3387 = vpop.f32.mrb[0].mxu0
    %v3388 = vadd.f32 %v3304, %v3387
    %v3389 = vpop.f32.mrb[0].mxu0
    %3390 = vmatprep.mubr.f32.mxu0 0.0
    %3391 = vmatmul.mubr.f32.gmra.mrb[0].mxu0 %v531
    %v3392 = vpop.f32.mrb[0].mxu0
    %v3393 = vadd.f32 %v3304, %v3392
    %v3394 = vpop.f32.mrb[0].mxu0
    %3395 = vmatprep.mubr.f32.mxu0 0.0
    %3396 = vmatmul.mubr.f32.gmra.mrb[0].mxu0 %v534
    %v3397 = vpop.f32.mrb[0].mxu0
    %v3398 = vadd.f32 %v3304, %v3397
    %v3399 = vpop.f32.mrb[0].mxu0
    %3400 = vdwg.mxu0
    %s3401 = scalar_lea.vmem %s4, 352
    %v3402 = vld [vmem:[%s3401] sm:$0xff]
    %v3403 = vld [vmem:[%s3401 + $0x8] sm:$0xff]
    %v3404 = vld [vmem:[%s3401 + $0x10] sm:$0xff]
    %v3405 = vld [vmem:[%s3401 + $0x18] sm:$0xff]
    %s3406 = scalar_lea.vmem %s5, 11
    %v3407 = vld [vmem:[%s3406] sm:$0x1]
    %v3409 = vlaneseq
    %v3410 = vshrl.u32 %v3409, 7
    %v3411 = vsub.s32 0, %v3410
    %v3412 = vrot.slane %v3407, %v3411
    %3414 = vmatprep.subr.mxu0 0.0
    %3415 = vmatpush1.msra.mxu0 %v3402
    %3416 = vmatprep.subr.mxu0 0.0
    %3417 = vmatpush1.msra.mxu0 %v3403
    %3418 = vmatprep.subr.mxu0 0.0
    %3419 = vmatpush1.msra.mxu0 %v3404
    %3420 = vmatprep.subr.mxu0 0.0
    %3421 = vmatpush1.msra.mxu0 %v3405
    %3422 = vmatprep.subr.mxu0 0.0
    %3423 = vmatpush1.msra.mxu0 0.0
    %3424 = vmatprep.subr.mxu0 0.0
    %3425 = vmatpush1.msra.mxu0 0.0
    %3426 = vmatprep.subr.mxu0 0.0
    %3427 = vmatpush1.msra.mxu0 0.0
    %3428 = vmatprep.subr.mxu0 0.0
    %3429 = vmatpush1.msra.mxu0 0.0
    %3430 = vmatprep.subr.mxu0 0.0
    %3431 = vmatpush1.msra.mxu0 0.0
    %3432 = vmatprep.subr.mxu0 0.0
    %3433 = vmatpush1.msra.mxu0 0.0
    %3434 = vmatprep.subr.mxu0 0.0
    %3435 = vmatpush1.msra.mxu0 0.0
    %3436 = vmatprep.subr.mxu0 0.0
    %3437 = vmatpush1.msra.mxu0 0.0
    %3438 = vmatprep.subr.mxu0 0.0
    %3439 = vmatpush1.msra.mxu0 0.0
    %3440 = vmatprep.subr.mxu0 0.0
    %3441 = vmatpush1.msra.mxu0 0.0
    %3442 = vmatprep.subr.mxu0 0.0
    %3443 = vmatpush1.msra.mxu0 0.0
    %3444 = vmatprep.subr.mxu0 0.0
    %3445 = vmatpush1.msra.mxu0 0.0
    %3446 = vmatprep.subr.mxu0 0.0
    %3447 = vmatpush1.msra.mxu0 0.0
    %3448 = vmatprep.subr.mxu0 0.0
    %3449 = vmatpush1.msra.mxu0 0.0
    %3450 = vmatprep.subr.mxu0 0.0
    %3451 = vmatpush1.msra.mxu0 0.0
    %3452 = vmatprep.subr.mxu0 0.0
    %3453 = vmatpush1.msra.mxu0 0.0
    %3454 = vmatprep.subr.mxu0 0.0
    %3455 = vmatpush1.msra.mxu0 0.0
    %3456 = vmatprep.subr.mxu0 0.0
    %3457 = vmatpush1.msra.mxu0 0.0
    %3458 = vmatprep.subr.mxu0 0.0
    %3459 = vmatpush1.msra.mxu0 0.0
    %3460 = vmatprep.subr.mxu0 0.0
    %3461 = vmatpush1.msra.mxu0 0.0
    %3462 = vmatprep.subr.mxu0 0.0
    %3463 = vmatpush1.msra.mxu0 0.0
    %3464 = vmatprep.subr.mxu0 0.0
    %3465 = vmatpush1.msra.mxu0 0.0
    %3466 = vmatprep.subr.mxu0 0.0
    %3467 = vmatpush1.msra.mxu0 0.0
    %3468 = vmatprep.subr.mxu0 0.0
    %3469 = vmatpush1.msra.mxu0 0.0
    %3470 = vmatprep.subr.mxu0 0.0
    %3471 = vmatpush1.msra.mxu0 0.0
    %3472 = vmatprep.subr.mxu0 0.0
    %3473 = vmatpush1.msra.mxu0 0.0
    %3474 = vmatprep.subr.mxu0 0.0
    %3475 = vmatpush1.msra.mxu0 0.0
    %3476 = vmatprep.subr.mxu0 0.0
    %3477 = vmatpush1.msra.mxu0 0.0
    %3478 = vmatprep.mubr.f32.mxu0 0.0
    %3479 = vmatmul.mubr.f32.gmra.mrb[0].mxu0 %v522
    %v3480 = vpop.f32.mrb[0].mxu0
    %v3481 = vadd.f32 %v3412, %v3480
    %v3482 = vpop.f32.mrb[0].mxu0
    %3483 = vmatprep.mubr.f32.mxu0 0.0
    %3484 = vmatmul.mubr.f32.gmra.mrb[0].mxu0 %v525
    %v3485 = vpop.f32.mrb[0].mxu0
    %v3486 = vadd.f32 %v3412, %v3485
    %v3487 = vpop.f32.mrb[0].mxu0
    %3488 = vmatprep.mubr.f32.mxu0 0.0
    %3489 = vmatmul.mubr.f32.gmra.mrb[0].mxu0 %v528
    %v3490 = vpop.f32.mrb[0].mxu0
    %v3491 = vadd.f32 %v3412, %v3490
    %v3492 = vpop.f32.mrb[0].mxu0
    %3493 = vmatprep.mubr.f32.mxu0 0.0
    %3494 = vmatmul.mubr.f32.gmra.mrb[0].mxu0 %v522
    %v3495 = vpop.f32.mrb[0].mxu0
    %v3496 = vadd.f32 %v3412, %v3495
    %v3497 = vpop.f32.mrb[0].mxu0
    %3498 = vmatprep.mubr.f32.mxu0 0.0
    %3499 = vmatmul.mubr.f32.gmra.mrb[0].mxu0 %v531
    %v3500 = vpop.f32.mrb[0].mxu0
    %v3501 = vadd.f32 %v3412, %v3500
    %v3502 = vpop.f32.mrb[0].mxu0
    %3503 = vmatprep.mubr.f32.mxu0 0.0
    %3504 = vmatmul.mubr.f32.gmra.mrb[0].mxu0 %v534
    %v3505 = vpop.f32.mrb[0].mxu0
    %v3506 = vadd.f32 %v3412, %v3505
    %v3507 = vpop.f32.mrb[0].mxu0
    %3508 = vdwg.mxu0
    %v3510 = vsel %vm847, %v3265, 0
    %v3513 = vsel %vm847, %v3270, 0
    %v3516 = vsel %vm847, %v3275, 0
    %v3519 = vsel %vm847, %v3373, 0
    %v3522 = vsel %vm847, %v3378, 0
    %v3525 = vsel %vm847, %v3383, 0
    %3527 = vmatprep.subr.mxu0 0.0
    %3528 = vmatpush1.xpose.msra.mxu0 %v3519
    %3529 = vmatprep.subr.mxu0 0.0
    %3530 = vmatpush1.xpose.msra.mxu0 %v3522
    %3531 = vmatprep.subr.mxu0 0.0
    %3532 = vmatpush1.xpose.msra.mxu0 %v3525
    %3533 = vmatprep.subr.mxu0 0.0
    %3534 = vmatpush1.xpose.msra.mxu0 0.0
    %3535 = vmatprep.subr.mxu0 0.0
    %3536 = vmatpush1.xpose.msra.mxu0 0.0
    %3537 = vmatprep.subr.mxu0 0.0
    %3538 = vmatpush1.xpose.msra.mxu0 0.0
    %3539 = vmatprep.subr.mxu0 0.0
    %3540 = vmatpush1.xpose.msra.mxu0 0.0
    %3541 = vmatprep.subr.mxu0 0.0
    %3542 = vmatpush1.xpose.msra.mxu0 0.0
    %3543 = vmatprep.subr.mxu0 0.0
    %3544 = vmatpush1.xpose.msra.mxu0 0.0
    %3545 = vmatprep.subr.mxu0 0.0
    %3546 = vmatpush1.xpose.msra.mxu0 0.0
    %3547 = vmatprep.subr.mxu0 0.0
    %3548 = vmatpush1.xpose.msra.mxu0 0.0
    %3549 = vmatprep.subr.mxu0 0.0
    %3550 = vmatpush1.xpose.msra.mxu0 0.0
    %3551 = vmatprep.subr.mxu0 0.0
    %3552 = vmatpush1.xpose.msra.mxu0 0.0
    %3553 = vmatprep.subr.mxu0 0.0
    %3554 = vmatpush1.xpose.msra.mxu0 0.0
    %3555 = vmatprep.subr.mxu0 0.0
    %3556 = vmatpush1.xpose.msra.mxu0 0.0
    %3557 = vmatprep.subr.mxu0 0.0
    %3558 = vmatpush1.xpose.msra.mxu0 0.0
    %3559 = vmatprep.subr.mxu0 0.0
    %3560 = vmatpush1.xpose.msra.mxu0 0.0
    %3561 = vmatprep.subr.mxu0 0.0
    %3562 = vmatpush1.xpose.msra.mxu0 0.0
    %3563 = vmatprep.subr.mxu0 0.0
    %3564 = vmatpush1.xpose.msra.mxu0 0.0
    %3565 = vmatprep.subr.mxu0 0.0
    %3566 = vmatpush1.xpose.msra.mxu0 0.0
    %3567 = vmatprep.subr.mxu0 0.0
    %3568 = vmatpush1.xpose.msra.mxu0 0.0
    %3569 = vmatprep.subr.mxu0 0.0
    %3570 = vmatpush1.xpose.msra.mxu0 0.0
    %3571 = vmatprep.subr.mxu0 0.0
    %3572 = vmatpush1.xpose.msra.mxu0 0.0
    %3573 = vmatprep.subr.mxu0 0.0
    %3574 = vmatpush1.xpose.msra.mxu0 0.0
    %3575 = vmatprep.subr.mxu0 0.0
    %3576 = vmatpush1.xpose.msra.mxu0 0.0
    %3577 = vmatprep.subr.mxu0 0.0
    %3578 = vmatpush1.xpose.msra.mxu0 0.0
    %3579 = vmatprep.subr.mxu0 0.0
    %3580 = vmatpush1.xpose.msra.mxu0 0.0
    %3581 = vmatprep.subr.mxu0 0.0
    %3582 = vmatpush1.xpose.msra.mxu0 0.0
    %3583 = vmatprep.subr.mxu0 0.0
    %3584 = vmatpush1.xpose.msra.mxu0 0.0
    %3585 = vmatprep.subr.mxu0 0.0
    %3586 = vmatpush1.xpose.msra.mxu0 0.0
    %3587 = vmatprep.subr.mxu0 0.0
    %3588 = vmatpush1.xpose.msra.mxu0 0.0
    %3589 = vmatprep.subr.mxu0 0.0
    %3590 = vmatpush1.xpose.msra.mxu0 0.0
    %3591 = vmatprep.mubr.f32.mxu0 0.0
    %3592 = vmatmul.mubr.f32.gmra.mrb[0].mxu0 %v3510
    %v3593 = vpop.f32.mrb[0].mxu0
    %v3594 = vadd.f32 0.0, %v3593
    %v3595 = vpop.f32.mrb[0].mxu0
    %3596 = vmatprep.mubr.f32.mxu0 0.0
    %3597 = vmatmul.mubr.f32.gmra.mrb[0].mxu0 %v3513
    %v3598 = vpop.f32.mrb[0].mxu0
    %v3599 = vadd.f32 0.0, %v3598
    %v3600 = vpop.f32.mrb[0].mxu0
    %3601 = vmatprep.mubr.f32.mxu0 0.0
    %3602 = vmatmul.mubr.f32.gmra.mrb[0].mxu0 %v3516
    %v3603 = vpop.f32.mrb[0].mxu0
    %v3604 = vadd.f32 0.0, %v3603
    %v3605 = vpop.f32.mrb[0].mxu0
    %3606 = vdwg.mxu0
    %v3608 = vsel %vm847, %v3280, 0
    %v3611 = vsel %vm847, %v3285, 0
    %v3614 = vsel %vm847, %v3290, 0
    %v3617 = vsel %vm847, %v3388, 0
    %v3620 = vsel %vm847, %v3393, 0
    %v3623 = vsel %vm847, %v3398, 0
    %3625 = vmatprep.subr.mxu0 0.0
    %3626 = vmatpush1.xpose.msra.mxu0 %v3617
    %3627 = vmatprep.subr.mxu0 0.0
    %3628 = vmatpush1.xpose.msra.mxu0 %v3620
    %3629 = vmatprep.subr.mxu0 0.0
    %3630 = vmatpush1.xpose.msra.mxu0 %v3623
    %3631 = vmatprep.subr.mxu0 0.0
    %3632 = vmatpush1.xpose.msra.mxu0 0.0
    %3633 = vmatprep.subr.mxu0 0.0
    %3634 = vmatpush1.xpose.msra.mxu0 0.0
    %3635 = vmatprep.subr.mxu0 0.0
    %3636 = vmatpush1.xpose.msra.mxu0 0.0
    %3637 = vmatprep.subr.mxu0 0.0
    %3638 = vmatpush1.xpose.msra.mxu0 0.0
    %3639 = vmatprep.subr.mxu0 0.0
    %3640 = vmatpush1.xpose.msra.mxu0 0.0
    %3641 = vmatprep.subr.mxu0 0.0
    %3642 = vmatpush1.xpose.msra.mxu0 0.0
    %3643 = vmatprep.subr.mxu0 0.0
    %3644 = vmatpush1.xpose.msra.mxu0 0.0
    %3645 = vmatprep.subr.mxu0 0.0
    %3646 = vmatpush1.xpose.msra.mxu0 0.0
    %3647 = vmatprep.subr.mxu0 0.0
    %3648 = vmatpush1.xpose.msra.mxu0 0.0
    %3649 = vmatprep.subr.mxu0 0.0
    %3650 = vmatpush1.xpose.msra.mxu0 0.0
    %3651 = vmatprep.subr.mxu0 0.0
    %3652 = vmatpush1.xpose.msra.mxu0 0.0
    %3653 = vmatprep.subr.mxu0 0.0
    %3654 = vmatpush1.xpose.msra.mxu0 0.0
    %3655 = vmatprep.subr.mxu0 0.0
    %3656 = vmatpush1.xpose.msra.mxu0 0.0
    %3657 = vmatprep.subr.mxu0 0.0
    %3658 = vmatpush1.xpose.msra.mxu0 0.0
    %3659 = vmatprep.subr.mxu0 0.0
    %3660 = vmatpush1.xpose.msra.mxu0 0.0
    %3661 = vmatprep.subr.mxu0 0.0
    %3662 = vmatpush1.xpose.msra.mxu0 0.0
    %3663 = vmatprep.subr.mxu0 0.0
    %3664 = vmatpush1.xpose.msra.mxu0 0.0
    %3665 = vmatprep.subr.mxu0 0.0
    %3666 = vmatpush1.xpose.msra.mxu0 0.0
    %3667 = vmatprep.subr.mxu0 0.0
    %3668 = vmatpush1.xpose.msra.mxu0 0.0
    %3669 = vmatprep.subr.mxu0 0.0
    %3670 = vmatpush1.xpose.msra.mxu0 0.0
    %3671 = vmatprep.subr.mxu0 0.0
    %3672 = vmatpush1.xpose.msra.mxu0 0.0
    %3673 = vmatprep.subr.mxu0 0.0
    %3674 = vmatpush1.xpose.msra.mxu0 0.0
    %3675 = vmatprep.subr.mxu0 0.0
    %3676 = vmatpush1.xpose.msra.mxu0 0.0
    %3677 = vmatprep.subr.mxu0 0.0
    %3678 = vmatpush1.xpose.msra.mxu0 0.0
    %3679 = vmatprep.subr.mxu0 0.0
    %3680 = vmatpush1.xpose.msra.mxu0 0.0
    %3681 = vmatprep.subr.mxu0 0.0
    %3682 = vmatpush1.xpose.msra.mxu0 0.0
    %3683 = vmatprep.subr.mxu0 0.0
    %3684 = vmatpush1.xpose.msra.mxu0 0.0
    %3685 = vmatprep.subr.mxu0 0.0
    %3686 = vmatpush1.xpose.msra.mxu0 0.0
    %3687 = vmatprep.subr.mxu0 0.0
    %3688 = vmatpush1.xpose.msra.mxu0 0.0
    %3689 = vmatprep.mubr.f32.mxu0 0.0
    %3690 = vmatmul.mubr.f32.gmra.mrb[0].mxu0 %v3608
    %v3691 = vpop.f32.mrb[0].mxu0
    %v3692 = vadd.f32 0.0, %v3691
    %v3693 = vpop.f32.mrb[0].mxu0
    %3694 = vmatprep.mubr.f32.mxu0 0.0
    %3695 = vmatmul.mubr.f32.gmra.mrb[0].mxu0 %v3611
    %v3696 = vpop.f32.mrb[0].mxu0
    %v3697 = vadd.f32 0.0, %v3696
    %v3698 = vpop.f32.mrb[0].mxu0
    %3699 = vmatprep.mubr.f32.mxu0 0.0
    %3700 = vmatmul.mubr.f32.gmra.mrb[0].mxu0 %v3614
    %v3701 = vpop.f32.mrb[0].mxu0
    %v3702 = vadd.f32 0.0, %v3701
    %v3703 = vpop.f32.mrb[0].mxu0
    %3704 = vdwg.mxu0
    %v3705 = vmul.f32 %v3594, 0.35355338
    %v3706 = vmul.f32 %v3599, 0.35355338
    %v3707 = vmul.f32 %v3604, 0.35355338
    %v3708 = vmul.f32 %v3692, 0.35355338
    %v3709 = vmul.f32 %v3697, 0.35355338
    %v3710 = vmul.f32 %v3702, 0.35355338
    %v3711 = vsel %vm1050, %v3705, -inf
    %3712 = vmax.xlane.f32.xlu0 %v3711
    %v3713 = vpop.xlane.xlu0 %3712
    %v3714 = vsel %vm1050, %v3706, -inf
    %3715 = vmax.xlane.f32.xlu0 %v3714
    %v3716 = vpop.xlane.xlu0 %3715
    %v3717 = vsel %vm1050, %v3707, -inf
    %3718 = vmax.xlane.f32.xlu0 %v3717
    %v3719 = vpop.xlane.xlu0 %3718
    %v3720 = vsel %vm1050, %v3708, -inf
    %3721 = vmax.xlane.f32.xlu0 %v3720
    %v3722 = vpop.xlane.xlu0 %3721
    %v3723 = vsel %vm1050, %v3709, -inf
    %3724 = vmax.xlane.f32.xlu0 %v3723
    %v3725 = vpop.xlane.xlu0 %3724
    %v3726 = vsel %vm1050, %v3710, -inf
    %3727 = vmax.xlane.f32.xlu0 %v3726
    %v3728 = vpop.xlane.xlu0 %3727
    %v3729 = vsub.f32 %v3705, %v3713
    %v3730 = vsub.f32 %v3706, %v3716
    %v3731 = vsub.f32 %v3707, %v3719
    %v3732 = vsub.f32 %v3708, %v3722
    %v3733 = vsub.f32 %v3709, %v3725
    %v3734 = vsub.f32 %v3710, %v3728
    %v3735 = vmul.f32 %v3729, 1.442695
    %v3736 = vpow.pop %v3735
    %v3737 = vmul.f32 %v3730, 1.442695
    %v3738 = vpow.pop %v3737
    %v3739 = vmul.f32 %v3731, 1.442695
    %v3740 = vpow.pop %v3739
    %v3741 = vmul.f32 %v3732, 1.442695
    %v3742 = vpow.pop %v3741
    %v3743 = vmul.f32 %v3733, 1.442695
    %v3744 = vpow.pop %v3743
    %v3745 = vmul.f32 %v3734, 1.442695
    %v3746 = vpow.pop %v3745
    %v3747 = vsel %vm1050, %v3736, 0.0
    %3748 = vadd.xlane.f32.xlu0 %v3747
    %v3749 = vpop.xlane.xlu0 %3748
    %v3750 = vsel %vm1050, %v3738, 0.0
    %3751 = vadd.xlane.f32.xlu0 %v3750
    %v3752 = vpop.xlane.xlu0 %3751
    %v3753 = vsel %vm1050, %v3740, 0.0
    %3754 = vadd.xlane.f32.xlu0 %v3753
    %v3755 = vpop.xlane.xlu0 %3754
    %v3756 = vsel %vm1050, %v3742, 0.0
    %3757 = vadd.xlane.f32.xlu0 %v3756
    %v3758 = vpop.xlane.xlu0 %3757
    %v3759 = vsel %vm1050, %v3744, 0.0
    %3760 = vadd.xlane.f32.xlu0 %v3759
    %v3761 = vpop.xlane.xlu0 %3760
    %v3762 = vsel %vm1050, %v3746, 0.0
    %3763 = vadd.xlane.f32.xlu0 %v3762
    %v3764 = vpop.xlane.xlu0 %3763
    %v3765 = vrcp.pop %v3749
    %v3766 = vrcp.pop %v3752
    %v3767 = vrcp.pop %v3755
    %v3768 = vrcp.pop %v3758
    %v3769 = vrcp.pop %v3761
    %v3770 = vrcp.pop %v3764
    %v3771 = vmul.f32 %v3736, %v3765
    %v3772 = vmul.f32 %v3738, %v3766
    %v3773 = vmul.f32 %v3740, %v3767
    %v3774 = vmul.f32 %v3742, %v3768
    %v3775 = vmul.f32 %v3744, %v3769
    %v3776 = vmul.f32 %v3746, %v3770
    %v3778 = vsel %vm1050, %v3771, 0
    %v3781 = vsel %vm1050, %v3772, 0
    %v3784 = vsel %vm1050, %v3773, 0
    %3786 = vmatprep.subr.mxu0 0.0
    %3787 = vmatpush1.msra.mxu0 %v3481
    %3788 = vmatprep.subr.mxu0 0.0
    %3789 = vmatpush1.msra.mxu0 %v3486
    %3790 = vmatprep.subr.mxu0 0.0
    %3791 = vmatpush1.msra.mxu0 %v3491
    %3792 = vmatprep.subr.mxu0 0.0
    %3793 = vmatpush1.msra.mxu0 0.0
    %3794 = vmatprep.subr.mxu0 0.0
    %3795 = vmatpush1.msra.mxu0 0.0
    %3796 = vmatprep.subr.mxu0 0.0
    %3797 = vmatpush1.msra.mxu0 0.0
    %3798 = vmatprep.subr.mxu0 0.0
    %3799 = vmatpush1.msra.mxu0 0.0
    %3800 = vmatprep.subr.mxu0 0.0
    %3801 = vmatpush1.msra.mxu0 0.0
    %3802 = vmatprep.subr.mxu0 0.0
    %3803 = vmatpush1.msra.mxu0 0.0
    %3804 = vmatprep.subr.mxu0 0.0
    %3805 = vmatpush1.msra.mxu0 0.0
    %3806 = vmatprep.subr.mxu0 0.0
    %3807 = vmatpush1.msra.mxu0 0.0
    %3808 = vmatprep.subr.mxu0 0.0
    %3809 = vmatpush1.msra.mxu0 0.0
    %3810 = vmatprep.subr.mxu0 0.0
    %3811 = vmatpush1.msra.mxu0 0.0
    %3812 = vmatprep.subr.mxu0 0.0
    %3813 = vmatpush1.msra.mxu0 0.0
    %3814 = vmatprep.subr.mxu0 0.0
    %3815 = vmatpush1.msra.mxu0 0.0
    %3816 = vmatprep.subr.mxu0 0.0
    %3817 = vmatpush1.msra.mxu0 0.0
    %3818 = vmatprep.subr.mxu0 0.0
    %3819 = vmatpush1.msra.mxu0 0.0
    %3820 = vmatprep.subr.mxu0 0.0
    %3821 = vmatpush1.msra.mxu0 0.0
    %3822 = vmatprep.subr.mxu0 0.0
    %3823 = vmatpush1.msra.mxu0 0.0
    %3824 = vmatprep.subr.mxu0 0.0
    %3825 = vmatpush1.msra.mxu0 0.0
    %3826 = vmatprep.subr.mxu0 0.0
    %3827 = vmatpush1.msra.mxu0 0.0
    %3828 = vmatprep.subr.mxu0 0.0
    %3829 = vmatpush1.msra.mxu0 0.0
    %3830 = vmatprep.subr.mxu0 0.0
    %3831 = vmatpush1.msra.mxu0 0.0
    %3832 = vmatprep.subr.mxu0 0.0
    %3833 = vmatpush1.msra.mxu0 0.0
    %3834 = vmatprep.subr.mxu0 0.0
    %3835 = vmatpush1.msra.mxu0 0.0
    %3836 = vmatprep.subr.mxu0 0.0
    %3837 = vmatpush1.msra.mxu0 0.0
    %3838 = vmatprep.subr.mxu0 0.0
    %3839 = vmatpush1.msra.mxu0 0.0
    %3840 = vmatprep.subr.mxu0 0.0
    %3841 = vmatpush1.msra.mxu0 0.0
    %3842 = vmatprep.subr.mxu0 0.0
    %3843 = vmatpush1.msra.mxu0 0.0
    %3844 = vmatprep.subr.mxu0 0.0
    %3845 = vmatpush1.msra.mxu0 0.0
    %3846 = vmatprep.subr.mxu0 0.0
    %3847 = vmatpush1.msra.mxu0 0.0
    %3848 = vmatprep.subr.mxu0 0.0
    %3849 = vmatpush1.msra.mxu0 0.0
    %3850 = vmatprep.mubr.f32.mxu0 0.0
    %3851 = vmatmul.mubr.f32.gmra.mrb[0].mxu0 %v3778
    %v3852 = vpop.f32.mrb[0].mxu0
    %v3853 = vadd.f32 0.0, %v3852
    %v3854 = vpop.f32.mrb[0].mxu0
    %3855 = vmatprep.mubr.f32.mxu0 0.0
    %3856 = vmatmul.mubr.f32.gmra.mrb[0].mxu0 %v3781
    %v3857 = vpop.f32.mrb[0].mxu0
    %v3858 = vadd.f32 0.0, %v3857
    %v3859 = vpop.f32.mrb[0].mxu0
    %3860 = vmatprep.mubr.f32.mxu0 0.0
    %3861 = vmatmul.mubr.f32.gmra.mrb[0].mxu0 %v3784
    %v3862 = vpop.f32.mrb[0].mxu0
    %v3863 = vadd.f32 0.0, %v3862
    %v3864 = vpop.f32.mrb[0].mxu0
    %3865 = vdwg.mxu0
    %v3867 = vsel %vm1050, %v3774, 0
    %v3870 = vsel %vm1050, %v3775, 0
    %v3873 = vsel %vm1050, %v3776, 0
    %3875 = vmatprep.subr.mxu0 0.0
    %3876 = vmatpush1.msra.mxu0 %v3496
    %3877 = vmatprep.subr.mxu0 0.0
    %3878 = vmatpush1.msra.mxu0 %v3501
    %3879 = vmatprep.subr.mxu0 0.0
    %3880 = vmatpush1.msra.mxu0 %v3506
    %3881 = vmatprep.subr.mxu0 0.0
    %3882 = vmatpush1.msra.mxu0 0.0
    %3883 = vmatprep.subr.mxu0 0.0
    %3884 = vmatpush1.msra.mxu0 0.0
    %3885 = vmatprep.subr.mxu0 0.0
    %3886 = vmatpush1.msra.mxu0 0.0
    %3887 = vmatprep.subr.mxu0 0.0
    %3888 = vmatpush1.msra.mxu0 0.0
    %3889 = vmatprep.subr.mxu0 0.0
    %3890 = vmatpush1.msra.mxu0 0.0
    %3891 = vmatprep.subr.mxu0 0.0
    %3892 = vmatpush1.msra.mxu0 0.0
    %3893 = vmatprep.subr.mxu0 0.0
    %3894 = vmatpush1.msra.mxu0 0.0
    %3895 = vmatprep.subr.mxu0 0.0
    %3896 = vmatpush1.msra.mxu0 0.0
    %3897 = vmatprep.subr.mxu0 0.0
    %3898 = vmatpush1.msra.mxu0 0.0
    %3899 = vmatprep.subr.mxu0 0.0
    %3900 = vmatpush1.msra.mxu0 0.0
    %3901 = vmatprep.subr.mxu0 0.0
    %3902 = vmatpush1.msra.mxu0 0.0
    %3903 = vmatprep.subr.mxu0 0.0
    %3904 = vmatpush1.msra.mxu0 0.0
    %3905 = vmatprep.subr.mxu0 0.0
    %3906 = vmatpush1.msra.mxu0 0.0
    %3907 = vmatprep.subr.mxu0 0.0
    %3908 = vmatpush1.msra.mxu0 0.0
    %3909 = vmatprep.subr.mxu0 0.0
    %3910 = vmatpush1.msra.mxu0 0.0
    %3911 = vmatprep.subr.mxu0 0.0
    %3912 = vmatpush1.msra.mxu0 0.0
    %3913 = vmatprep.subr.mxu0 0.0
    %3914 = vmatpush1.msra.mxu0 0.0
    %3915 = vmatprep.subr.mxu0 0.0
    %3916 = vmatpush1.msra.mxu0 0.0
    %3917 = vmatprep.subr.mxu0 0.0
    %3918 = vmatpush1.msra.mxu0 0.0
    %3919 = vmatprep.subr.mxu0 0.0
    %3920 = vmatpush1.msra.mxu0 0.0
    %3921 = vmatprep.subr.mxu0 0.0
    %3922 = vmatpush1.msra.mxu0 0.0
    %3923 = vmatprep.subr.mxu0 0.0
    %3924 = vmatpush1.msra.mxu0 0.0
    %3925 = vmatprep.subr.mxu0 0.0
    %3926 = vmatpush1.msra.mxu0 0.0
    %3927 = vmatprep.subr.mxu0 0.0
    %3928 = vmatpush1.msra.mxu0 0.0
    %3929 = vmatprep.subr.mxu0 0.0
    %3930 = vmatpush1.msra.mxu0 0.0
    %3931 = vmatprep.subr.mxu0 0.0
    %3932 = vmatpush1.msra.mxu0 0.0
    %3933 = vmatprep.subr.mxu0 0.0
    %3934 = vmatpush1.msra.mxu0 0.0
    %3935 = vmatprep.subr.mxu0 0.0
    %3936 = vmatpush1.msra.mxu0 0.0
    %3937 = vmatprep.subr.mxu0 0.0
    %3938 = vmatpush1.msra.mxu0 0.0
    %3939 = vmatprep.mubr.f32.mxu0 0.0
    %3940 = vmatmul.mubr.f32.gmra.mrb[0].mxu0 %v3867
    %v3941 = vpop.f32.mrb[0].mxu0
    %v3942 = vadd.f32 0.0, %v3941
    %v3943 = vpop.f32.mrb[0].mxu0
    %3944 = vmatprep.mubr.f32.mxu0 0.0
    %3945 = vmatmul.mubr.f32.gmra.mrb[0].mxu0 %v3870
    %v3946 = vpop.f32.mrb[0].mxu0
    %v3947 = vadd.f32 0.0, %v3946
    %v3948 = vpop.f32.mrb[0].mxu0
    %3949 = vmatprep.mubr.f32.mxu0 0.0
    %3950 = vmatmul.mubr.f32.gmra.mrb[0].mxu0 %v3873
    %v3951 = vpop.f32.mrb[0].mxu0
    %v3952 = vadd.f32 0.0, %v3951
    %v3953 = vpop.f32.mrb[0].mxu0
    %3954 = vdwg.mxu0
    %s3955 = scalar_lea.vmem %s6, 24
    %v3956 = vld [vmem:[%s3955] sm:$0xff]
    %v3958 = vsel %vm847, %v3853, 0
    %v3961 = vsel %vm847, %v3858, 0
    %v3964 = vsel %vm847, %v3863, 0
    %v3967 = vsel %vm847, %v3942, 0
    %v3970 = vsel %vm847, %v3947, 0
    %v3973 = vsel %vm847, %v3952, 0
    %3975 = vmatprep.subr.mxu0 0.0
    %3976 = vmatpush1.msra.mxu0 %v3956
    %3977 = vmatprep.subr.mxu0 0.0
    %3978 = vmatpush1.msra.mxu0 0.0
    %3979 = vmatprep.subr.mxu0 0.0
    %3980 = vmatpush1.msra.mxu0 0.0
    %3981 = vmatprep.subr.mxu0 0.0
    %3982 = vmatpush1.msra.mxu0 0.0
    %3983 = vmatprep.subr.mxu0 0.0
    %3984 = vmatpush1.msra.mxu0 0.0
    %3985 = vmatprep.subr.mxu0 0.0
    %3986 = vmatpush1.msra.mxu0 0.0
    %3987 = vmatprep.subr.mxu0 0.0
    %3988 = vmatpush1.msra.mxu0 0.0
    %3989 = vmatprep.subr.mxu0 0.0
    %3990 = vmatpush1.msra.mxu0 0.0
    %3991 = vmatprep.subr.mxu0 0.0
    %3992 = vmatpush1.msra.mxu0 0.0
    %3993 = vmatprep.subr.mxu0 0.0
    %3994 = vmatpush1.msra.mxu0 0.0
    %3995 = vmatprep.subr.mxu0 0.0
    %3996 = vmatpush1.msra.mxu0 0.0
    %3997 = vmatprep.subr.mxu0 0.0
    %3998 = vmatpush1.msra.mxu0 0.0
    %3999 = vmatprep.subr.mxu0 0.0
    %4000 = vmatpush1.msra.mxu0 0.0
    %4001 = vmatprep.subr.mxu0 0.0
    %4002 = vmatpush1.msra.mxu0 0.0
    %4003 = vmatprep.subr.mxu0 0.0
    %4004 = vmatpush1.msra.mxu0 0.0
    %4005 = vmatprep.subr.mxu0 0.0
    %4006 = vmatpush1.msra.mxu0 0.0
    %4007 = vmatprep.subr.mxu0 0.0
    %4008 = vmatpush1.msra.mxu0 0.0
    %4009 = vmatprep.subr.mxu0 0.0
    %4010 = vmatpush1.msra.mxu0 0.0
    %4011 = vmatprep.subr.mxu0 0.0
    %4012 = vmatpush1.msra.mxu0 0.0
    %4013 = vmatprep.subr.mxu0 0.0
    %4014 = vmatpush1.msra.mxu0 0.0
    %4015 = vmatprep.subr.mxu0 0.0
    %4016 = vmatpush1.msra.mxu0 0.0
    %4017 = vmatprep.subr.mxu0 0.0
    %4018 = vmatpush1.msra.mxu0 0.0
    %4019 = vmatprep.subr.mxu0 0.0
    %4020 = vmatpush1.msra.mxu0 0.0
    %4021 = vmatprep.subr.mxu0 0.0
    %4022 = vmatpush1.msra.mxu0 0.0
    %4023 = vmatprep.subr.mxu0 0.0
    %4024 = vmatpush1.msra.mxu0 0.0
    %4025 = vmatprep.subr.mxu0 0.0
    %4026 = vmatpush1.msra.mxu0 0.0
    %4027 = vmatprep.subr.mxu0 0.0
    %4028 = vmatpush1.msra.mxu0 0.0
    %4029 = vmatprep.subr.mxu0 0.0
    %4030 = vmatpush1.msra.mxu0 0.0
    %4031 = vmatprep.subr.mxu0 0.0
    %4032 = vmatpush1.msra.mxu0 0.0
    %4033 = vmatprep.subr.mxu0 0.0
    %4034 = vmatpush1.msra.mxu0 0.0
    %4035 = vmatprep.subr.mxu0 0.0
    %4036 = vmatpush1.msra.mxu0 0.0
    %4037 = vmatprep.subr.mxu0 0.0
    %4038 = vmatpush1.msra.mxu0 0.0
    %4039 = vmatprep.mubr.f32.mxu0 0.0
    %4040 = vmatmul.mubr.f32.gmra.mrb[0].mxu0 %v3958
    %v4041 = vpop.f32.mrb[0].mxu0
    %v4042 = vadd.f32 0.0, %v4041
    %v4043 = vpop.f32.mrb[0].mxu0
    %4044 = vmatprep.mubr.f32.mxu0 0.0
    %4045 = vmatmul.mubr.f32.gmra.mrb[0].mxu0 %v3961
    %v4046 = vpop.f32.mrb[0].mxu0
    %v4047 = vadd.f32 0.0, %v4046
    %v4048 = vpop.f32.mrb[0].mxu0
    %4049 = vmatprep.mubr.f32.mxu0 0.0
    %4050 = vmatmul.mubr.f32.gmra.mrb[0].mxu0 %v3964
    %v4051 = vpop.f32.mrb[0].mxu0
    %v4052 = vadd.f32 0.0, %v4051
    %v4053 = vpop.f32.mrb[0].mxu0
    %4054 = vmatprep.mubr.f32.mxu0 0.0
    %4055 = vmatmul.mubr.f32.gmra.mrb[0].mxu0 %v3967
    %v4056 = vpop.f32.mrb[0].mxu0
    %v4057 = vadd.f32 0.0, %v4056
    %v4058 = vpop.f32.mrb[0].mxu0
    %4059 = vmatprep.mubr.f32.mxu0 0.0
    %4060 = vmatmul.mubr.f32.gmra.mrb[0].mxu0 %v3970
    %v4061 = vpop.f32.mrb[0].mxu0
    %v4062 = vadd.f32 0.0, %v4061
    %v4063 = vpop.f32.mrb[0].mxu0
    %4064 = vmatprep.mubr.f32.mxu0 0.0
    %4065 = vmatmul.mubr.f32.gmra.mrb[0].mxu0 %v3973
    %v4066 = vpop.f32.mrb[0].mxu0
    %v4067 = vadd.f32 0.0, %v4066
    %v4068 = vpop.f32.mrb[0].mxu0
    %4069 = vdwg.mxu0
    %v4070 = vadd.f32 %v3179, %v4042
    %v4071 = vadd.f32 %v3180, %v4047
    %v4072 = vadd.f32 %v3181, %v4052
    %v4073 = vadd.f32 %v3182, %v4057
    %v4074 = vadd.f32 %v3183, %v4062
    %v4075 = vadd.f32 %v3184, %v4067
    %v4076 = vadd.f32 %v276, %v4070
    %v4077 = vadd.f32 %v414, %v4071
    %v4078 = vadd.f32 %v415, %v4072
    %v4079 = vadd.f32 %v276, %v4073
    %v4080 = vadd.f32 %v416, %v4074
    %v4081 = vadd.f32 %v417, %v4075
    %s4082 = scalar_lea.vmem %s8, 1
    %v4083 = vld [vmem:[%s4082] sm:$0x1]
    %v4085 = vlaneseq
    %v4086 = vshrl.u32 %v4085, 7
    %v4087 = vsub.s32 0, %v4086
    %v4088 = vrot.slane %v4083, %v4087
    %v4090 = vadd.f32 %v4076, %v4088
    %v4091 = vadd.f32 %v4077, %v4088
    %v4092 = vadd.f32 %v4078, %v4088
    %v4093 = vadd.f32 %v4079, %v4088
    %v4094 = vadd.f32 %v4080, %v4088
    %v4095 = vadd.f32 %v4081, %v4088
    %v4096 = vsel %vm418, %v4090, 0.0
    %4097 = vadd.xlane.f32.xlu0 %v4096
    %v4098 = vpop.xlane.xlu0 %4097
    %v4099 = vsel %vm418, %v4091, 0.0
    %4100 = vadd.xlane.f32.xlu0 %v4099
    %v4101 = vpop.xlane.xlu0 %4100
    %v4102 = vsel %vm418, %v4092, 0.0
    %4103 = vadd.xlane.f32.xlu0 %v4102
    %v4104 = vpop.xlane.xlu0 %4103
    %v4105 = vsel %vm418, %v4093, 0.0
    %4106 = vadd.xlane.f32.xlu0 %v4105
    %v4107 = vpop.xlane.xlu0 %4106
    %v4108 = vsel %vm418, %v4094, 0.0
    %4109 = vadd.xlane.f32.xlu0 %v4108
    %v4110 = vpop.xlane.xlu0 %4109
    %v4111 = vsel %vm418, %v4095, 0.0
    %4112 = vadd.xlane.f32.xlu0 %v4111
    %v4113 = vpop.xlane.xlu0 %4112
    %v4114 = vmul.f32 %v4098, %v434
    %v4115 = vmul.f32 %v4101, %v434
    %v4116 = vmul.f32 %v4104, %v434
    %v4117 = vmul.f32 %v4107, %v434
    %v4118 = vmul.f32 %v4110, %v434
    %v4119 = vmul.f32 %v4113, %v434
    %v4120 = vsub.f32 %v4090, %v4114
    %v4121 = vsub.f32 %v4091, %v4115
    %v4122 = vsub.f32 %v4092, %v4116
    %v4123 = vsub.f32 %v4093, %v4117
    %v4124 = vsub.f32 %v4094, %v4118
    %v4125 = vsub.f32 %v4095, %v4119
    %v4126 = vmul.f32 %v4120, %v4120
    %v4127 = vmul.f32 %v4121, %v4121
    %v4128 = vmul.f32 %v4122, %v4122
    %v4129 = vmul.f32 %v4123, %v4123
    %v4130 = vmul.f32 %v4124, %v4124
    %v4131 = vmul.f32 %v4125, %v4125
    %v4132 = vsel %vm418, %v4126, 0.0
    %4133 = vadd.xlane.f32.xlu0 %v4132
    %v4134 = vpop.xlane.xlu0 %4133
    %v4135 = vsel %vm418, %v4127, 0.0
    %4136 = vadd.xlane.f32.xlu0 %v4135
    %v4137 = vpop.xlane.xlu0 %4136
    %v4138 = vsel %vm418, %v4128, 0.0
    %4139 = vadd.xlane.f32.xlu0 %v4138
    %v4140 = vpop.xlane.xlu0 %4139
    %v4141 = vsel %vm418, %v4129, 0.0
    %4142 = vadd.xlane.f32.xlu0 %v4141
    %v4143 = vpop.xlane.xlu0 %4142
    %v4144 = vsel %vm418, %v4130, 0.0
    %4145 = vadd.xlane.f32.xlu0 %v4144
    %v4146 = vpop.xlane.xlu0 %4145
    %v4147 = vsel %vm418, %v4131, 0.0
    %4148 = vadd.xlane.f32.xlu0 %v4147
    %v4149 = vpop.xlane.xlu0 %4148
    %v4150 = vmul.f32 %v4134, %v434
    %v4151 = vmul.f32 %v4137, %v434
    %v4152 = vmul.f32 %v4140, %v434
    %v4153 = vmul.f32 %v4143, %v434
    %v4154 = vmul.f32 %v4146, %v434
    %v4155 = vmul.f32 %v4149, %v434
    %v4156 = vadd.f32 %v4150, 1e-06
    %v4157 = vadd.f32 %v4151, 1e-06
    %v4158 = vadd.f32 %v4152, 1e-06
    %v4159 = vadd.f32 %v4153, 1e-06
    %v4160 = vadd.f32 %v4154, 1e-06
    %v4161 = vadd.f32 %v4155, 1e-06
    %v4162 = vrsqrt.pop %v4156
    %v4163 = vrsqrt.pop %v4157
    %v4164 = vrsqrt.pop %v4158
    %v4165 = vrsqrt.pop %v4159
    %v4166 = vrsqrt.pop %v4160
    %v4167 = vrsqrt.pop %v4161
    %v4168 = vmul.f32 %v4120, %v4162
    %v4169 = vmul.f32 %v4121, %v4163
    %v4170 = vmul.f32 %v4122, %v4164
    %v4171 = vmul.f32 %v4123, %v4165
    %v4172 = vmul.f32 %v4124, %v4166
    %v4173 = vmul.f32 %v4125, %v4167
    %s4174 = scalar_lea.vmem %s7, 2
    %v4175 = vld [vmem:[%s4174] sm:$0x1]
    %v4177 = vlaneseq
    %v4178 = vshrl.u32 %v4177, 7
    %v4179 = vsub.s32 0, %v4178
    %v4180 = vrot.slane %v4175, %v4179
    %v4182 = vmul.f32 %v4168, %v4180
    %v4183 = vmul.f32 %v4169, %v4180
    %v4184 = vmul.f32 %v4170, %v4180
    %v4185 = vmul.f32 %v4171, %v4180
    %v4186 = vmul.f32 %v4172, %v4180
    %v4187 = vmul.f32 %v4173, %v4180
    %s4188 = scalar_lea.vmem %s7, 3
    %v4189 = vld [vmem:[%s4188] sm:$0x1]
    %v4191 = vlaneseq
    %v4192 = vshrl.u32 %v4191, 7
    %v4193 = vsub.s32 0, %v4192
    %v4194 = vrot.slane %v4189, %v4193
    %v4196 = vadd.f32 %v4182, %v4194
    %v4197 = vadd.f32 %v4183, %v4194
    %v4198 = vadd.f32 %v4184, %v4194
    %v4199 = vadd.f32 %v4185, %v4194
    %v4200 = vadd.f32 %v4186, %v4194
    %v4201 = vadd.f32 %v4187, %v4194
    %v4202 = vld [vmem:[%s9] sm:$0xff]
    %v4203 = vld [vmem:[%s9 + $0x8] sm:$0xff]
    %v4204 = vld [vmem:[%s9 + $0x10] sm:$0xff]
    %v4205 = vld [vmem:[%s9 + $0x18] sm:$0xff]
    %v4206 = vld [vmem:[%s10] sm:$0x1]
    %v4208 = vlaneseq
    %v4209 = vshrl.u32 %v4208, 7
    %v4210 = vsub.s32 0, %v4209
    %v4211 = vrot.slane %v4206, %v4210
    %v4214 = vsel %vm418, %v4196, 0
    %v4217 = vsel %vm418, %v4197, 0
    %v4220 = vsel %vm418, %v4198, 0
    %v4223 = vsel %vm418, %v4199, 0
    %v4226 = vsel %vm418, %v4200, 0
    %v4229 = vsel %vm418, %v4201, 0
    %4231 = vmatprep.subr.mxu0 0.0
    %4232 = vmatpush1.msra.mxu0 %v4202
    %4233 = vmatprep.subr.mxu0 0.0
    %4234 = vmatpush1.msra.mxu0 %v4203
    %4235 = vmatprep.subr.mxu0 0.0
    %4236 = vmatpush1.msra.mxu0 %v4204
    %4237 = vmatprep.subr.mxu0 0.0
    %4238 = vmatpush1.msra.mxu0 %v4205
    %4239 = vmatprep.subr.mxu0 0.0
    %4240 = vmatpush1.msra.mxu0 0.0
    %4241 = vmatprep.subr.mxu0 0.0
    %4242 = vmatpush1.msra.mxu0 0.0
    %4243 = vmatprep.subr.mxu0 0.0
    %4244 = vmatpush1.msra.mxu0 0.0
    %4245 = vmatprep.subr.mxu0 0.0
    %4246 = vmatpush1.msra.mxu0 0.0
    %4247 = vmatprep.subr.mxu0 0.0
    %4248 = vmatpush1.msra.mxu0 0.0
    %4249 = vmatprep.subr.mxu0 0.0
    %4250 = vmatpush1.msra.mxu0 0.0
    %4251 = vmatprep.subr.mxu0 0.0
    %4252 = vmatpush1.msra.mxu0 0.0
    %4253 = vmatprep.subr.mxu0 0.0
    %4254 = vmatpush1.msra.mxu0 0.0
    %4255 = vmatprep.subr.mxu0 0.0
    %4256 = vmatpush1.msra.mxu0 0.0
    %4257 = vmatprep.subr.mxu0 0.0
    %4258 = vmatpush1.msra.mxu0 0.0
    %4259 = vmatprep.subr.mxu0 0.0
    %4260 = vmatpush1.msra.mxu0 0.0
    %4261 = vmatprep.subr.mxu0 0.0
    %4262 = vmatpush1.msra.mxu0 0.0
    %4263 = vmatprep.subr.mxu0 0.0
    %4264 = vmatpush1.msra.mxu0 0.0
    %4265 = vmatprep.subr.mxu0 0.0
    %4266 = vmatpush1.msra.mxu0 0.0
    %4267 = vmatprep.subr.mxu0 0.0
    %4268 = vmatpush1.msra.mxu0 0.0
    %4269 = vmatprep.subr.mxu0 0.0
    %4270 = vmatpush1.msra.mxu0 0.0
    %4271 = vmatprep.subr.mxu0 0.0
    %4272 = vmatpush1.msra.mxu0 0.0
    %4273 = vmatprep.subr.mxu0 0.0
    %4274 = vmatpush1.msra.mxu0 0.0
    %4275 = vmatprep.subr.mxu0 0.0
    %4276 = vmatpush1.msra.mxu0 0.0
    %4277 = vmatprep.subr.mxu0 0.0
    %4278 = vmatpush1.msra.mxu0 0.0
    %4279 = vmatprep.subr.mxu0 0.0
    %4280 = vmatpush1.msra.mxu0 0.0
    %4281 = vmatprep.subr.mxu0 0.0
    %4282 = vmatpush1.msra.mxu0 0.0
    %4283 = vmatprep.subr.mxu0 0.0
    %4284 = vmatpush1.msra.mxu0 0.0
    %4285 = vmatprep.subr.mxu0 0.0
    %4286 = vmatpush1.msra.mxu0 0.0
    %4287 = vmatprep.subr.mxu0 0.0
    %4288 = vmatpush1.msra.mxu0 0.0
    %4289 = vmatprep.subr.mxu0 0.0
    %4290 = vmatpush1.msra.mxu0 0.0
    %4291 = vmatprep.subr.mxu0 0.0
    %4292 = vmatpush1.msra.mxu0 0.0
    %4293 = vmatprep.subr.mxu0 0.0
    %4294 = vmatpush1.msra.mxu0 0.0
    %4295 = vmatprep.mubr.f32.mxu0 0.0
    %4296 = vmatmul.mubr.f32.gmra.mrb[0].mxu0 %v4214
    %v4297 = vpop.f32.mrb[0].mxu0
    %v4298 = vadd.f32 %v4211, %v4297
    %v4299 = vpop.f32.mrb[0].mxu0
    %4300 = vmatprep.mubr.f32.mxu0 0.0
    %4301 = vmatmul.mubr.f32.gmra.mrb[0].mxu0 %v4217
    %v4302 = vpop.f32.mrb[0].mxu0
    %v4303 = vadd.f32 %v4211, %v4302
    %v4304 = vpop.f32.mrb[0].mxu0
    %4305 = vmatprep.mubr.f32.mxu0 0.0
    %4306 = vmatmul.mubr.f32.gmra.mrb[0].mxu0 %v4220
    %v4307 = vpop.f32.mrb[0].mxu0
    %v4308 = vadd.f32 %v4211, %v4307
    %v4309 = vpop.f32.mrb[0].mxu0
    %4310 = vmatprep.mubr.f32.mxu0 0.0
    %4311 = vmatmul.mubr.f32.gmra.mrb[0].mxu0 %v4223
    %v4312 = vpop.f32.mrb[0].mxu0
    %v4313 = vadd.f32 %v4211, %v4312
    %v4314 = vpop.f32.mrb[0].mxu0
    %4315 = vmatprep.mubr.f32.mxu0 0.0
    %4316 = vmatmul.mubr.f32.gmra.mrb[0].mxu0 %v4226
    %v4317 = vpop.f32.mrb[0].mxu0
    %v4318 = vadd.f32 %v4211, %v4317
    %v4319 = vpop.f32.mrb[0].mxu0
    %4320 = vmatprep.mubr.f32.mxu0 0.0
    %4321 = vmatmul.mubr.f32.gmra.mrb[0].mxu0 %v4229
    %v4322 = vpop.f32.mrb[0].mxu0
    %v4323 = vadd.f32 %v4211, %v4322
    %v4324 = vpop.f32.mrb[0].mxu0
    %4325 = vdwg.mxu0
    %v4326 = vmul.f32 %v4298, %v4298
    %v4327 = vmul.f32 %v4303, %v4303
    %v4328 = vmul.f32 %v4308, %v4308
    %v4329 = vmul.f32 %v4313, %v4313
    %v4330 = vmul.f32 %v4318, %v4318
    %v4331 = vmul.f32 %v4323, %v4323
    %v4332 = vmul.f32 %v4298, %v4326
    %v4333 = vmul.f32 %v4303, %v4327
    %v4334 = vmul.f32 %v4308, %v4328
    %v4335 = vmul.f32 %v4313, %v4329
    %v4336 = vmul.f32 %v4318, %v4330
    %v4337 = vmul.f32 %v4323, %v4331
    %v4338 = vmul.f32 %v4332, 0.044715
    %v4339 = vmul.f32 %v4333, 0.044715
    %v4340 = vmul.f32 %v4334, 0.044715
    %v4341 = vmul.f32 %v4335, 0.044715
    %v4342 = vmul.f32 %v4336, 0.044715
    %v4343 = vmul.f32 %v4337, 0.044715
    %v4344 = vadd.f32 %v4298, %v4338
    %v4345 = vadd.f32 %v4303, %v4339
    %v4346 = vadd.f32 %v4308, %v4340
    %v4347 = vadd.f32 %v4313, %v4341
    %v4348 = vadd.f32 %v4318, %v4342
    %v4349 = vadd.f32 %v4323, %v4343
    %v4350 = vmul.f32 %v4344, 0.7978846
    %v4351 = vmul.f32 %v4345, 0.7978846
    %v4352 = vmul.f32 %v4346, 0.7978846
    %v4353 = vmul.f32 %v4347, 0.7978846
    %v4354 = vmul.f32 %v4348, 0.7978846
    %v4355 = vmul.f32 %v4349, 0.7978846
    %v4356 = vtanh.pop %v4350
    %v4357 = vtanh.pop %v4351
    %v4358 = vtanh.pop %v4352
    %v4359 = vtanh.pop %v4353
    %v4360 = vtanh.pop %v4354
    %v4361 = vtanh.pop %v4355
    %v4362 = vadd.f32 %v4356, 1.0
    %v4363 = vadd.f32 %v4357, 1.0
    %v4364 = vadd.f32 %v4358, 1.0
    %v4365 = vadd.f32 %v4359, 1.0
    %v4366 = vadd.f32 %v4360, 1.0
    %v4367 = vadd.f32 %v4361, 1.0
    %v4368 = vmul.f32 %v4362, 0.5
    %v4369 = vmul.f32 %v4363, 0.5
    %v4370 = vmul.f32 %v4364, 0.5
    %v4371 = vmul.f32 %v4365, 0.5
    %v4372 = vmul.f32 %v4366, 0.5
    %v4373 = vmul.f32 %v4367, 0.5
    %v4374 = vmul.f32 %v4298, %v4368
    %v4375 = vmul.f32 %v4303, %v4369
    %v4376 = vmul.f32 %v4308, %v4370
    %v4377 = vmul.f32 %v4313, %v4371
    %v4378 = vmul.f32 %v4318, %v4372
    %v4379 = vmul.f32 %v4323, %v4373
    %v4380 = vld [vmem:[%s11] sm:$0xff]
    %v4381 = vld [vmem:[%s11 + $0x8] sm:$0xff]
    %v4382 = vld [vmem:[%s11 + $0x10] sm:$0xff]
    %v4383 = vld [vmem:[%s11 + $0x18] sm:$0xff]
    %v4384 = vld [vmem:[%s11 + $0x20] sm:$0xff]
    %v4385 = vld [vmem:[%s11 + $0x28] sm:$0xff]
    %v4386 = vld [vmem:[%s11 + $0x30] sm:$0xff]
    %v4387 = vld [vmem:[%s11 + $0x38] sm:$0xff]
    %v4388 = vld [vmem:[%s11 + $0x40] sm:$0xff]
    %v4389 = vld [vmem:[%s11 + $0x48] sm:$0xff]
    %v4390 = vld [vmem:[%s11 + $0x50] sm:$0xff]
    %v4391 = vld [vmem:[%s11 + $0x58] sm:$0xff]
    %v4392 = vld [vmem:[%s11 + $0x60] sm:$0xff]
    %v4393 = vld [vmem:[%s11 + $0x68] sm:$0xff]
    %v4394 = vld [vmem:[%s11 + $0x70] sm:$0xff]
    %v4395 = vld [vmem:[%s11 + $0x78] sm:$0xff]
    %s4396 = scalar_lea.vmem %s8, 2
    %v4397 = vld [vmem:[%s4396] sm:$0x1]
    %v4399 = vlaneseq
    %v4400 = vshrl.u32 %v4399, 7
    %v4401 = vsub.s32 0, %v4400
    %v4402 = vrot.slane %v4397, %v4401
    %4404 = vmatprep.subr.mxu0 0.0
    %4405 = vmatpush1.msra.mxu0 %v4380
    %4406 = vmatprep.subr.mxu0 0.0
    %4407 = vmatpush1.msra.mxu0 %v4381
    %4408 = vmatprep.subr.mxu0 0.0
    %4409 = vmatpush1.msra.mxu0 %v4382
    %4410 = vmatprep.subr.mxu0 0.0
    %4411 = vmatpush1.msra.mxu0 %v4383
    %4412 = vmatprep.subr.mxu0 0.0
    %4413 = vmatpush1.msra.mxu0 %v4384
    %4414 = vmatprep.subr.mxu0 0.0
    %4415 = vmatpush1.msra.mxu0 %v4385
    %4416 = vmatprep.subr.mxu0 0.0
    %4417 = vmatpush1.msra.mxu0 %v4386
    %4418 = vmatprep.subr.mxu0 0.0
    %4419 = vmatpush1.msra.mxu0 %v4387
    %4420 = vmatprep.subr.mxu0 0.0
    %4421 = vmatpush1.msra.mxu0 %v4388
    %4422 = vmatprep.subr.mxu0 0.0
    %4423 = vmatpush1.msra.mxu0 %v4389
    %4424 = vmatprep.subr.mxu0 0.0
    %4425 = vmatpush1.msra.mxu0 %v4390
    %4426 = vmatprep.subr.mxu0 0.0
    %4427 = vmatpush1.msra.mxu0 %v4391
    %4428 = vmatprep.subr.mxu0 0.0
    %4429 = vmatpush1.msra.mxu0 %v4392
    %4430 = vmatprep.subr.mxu0 0.0
    %4431 = vmatpush1.msra.mxu0 %v4393
    %4432 = vmatprep.subr.mxu0 0.0
    %4433 = vmatpush1.msra.mxu0 %v4394
    %4434 = vmatprep.subr.mxu0 0.0
    %4435 = vmatpush1.msra.mxu0 %v4395
    %4436 = vmatprep.subr.mxu0 0.0
    %4437 = vmatpush1.msra.mxu0 0.0
    %4438 = vmatprep.subr.mxu0 0.0
    %4439 = vmatpush1.msra.mxu0 0.0
    %4440 = vmatprep.subr.mxu0 0.0
    %4441 = vmatpush1.msra.mxu0 0.0
    %4442 = vmatprep.subr.mxu0 0.0
    %4443 = vmatpush1.msra.mxu0 0.0
    %4444 = vmatprep.subr.mxu0 0.0
    %4445 = vmatpush1.msra.mxu0 0.0
    %4446 = vmatprep.subr.mxu0 0.0
    %4447 = vmatpush1.msra.mxu0 0.0
    %4448 = vmatprep.subr.mxu0 0.0
    %4449 = vmatpush1.msra.mxu0 0.0
    %4450 = vmatprep.subr.mxu0 0.0
    %4451 = vmatpush1.msra.mxu0 0.0
    %4452 = vmatprep.subr.mxu0 0.0
    %4453 = vmatpush1.msra.mxu0 0.0
    %4454 = vmatprep.subr.mxu0 0.0
    %4455 = vmatpush1.msra.mxu0 0.0
    %4456 = vmatprep.subr.mxu0 0.0
    %4457 = vmatpush1.msra.mxu0 0.0
    %4458 = vmatprep.subr.mxu0 0.0
    %4459 = vmatpush1.msra.mxu0 0.0
    %4460 = vmatprep.subr.mxu0 0.0
    %4461 = vmatpush1.msra.mxu0 0.0
    %4462 = vmatprep.subr.mxu0 0.0
    %4463 = vmatpush1.msra.mxu0 0.0
    %4464 = vmatprep.subr.mxu0 0.0
    %4465 = vmatpush1.msra.mxu0 0.0
    %4466 = vmatprep.subr.mxu0 0.0
    %4467 = vmatpush1.msra.mxu0 0.0
    %4468 = vmatprep.mubr.f32.mxu0 0.0
    %4469 = vmatmul.mubr.f32.gmra.mrb[0].mxu0 %v4374
    %v4470 = vpop.f32.mrb[0].mxu0
    %v4471 = vadd.f32 %v4402, %v4470
    %v4472 = vpop.f32.mrb[0].mxu0
    %4473 = vmatprep.mubr.f32.mxu0 0.0
    %4474 = vmatmul.mubr.f32.gmra.mrb[0].mxu0 %v4375
    %v4475 = vpop.f32.mrb[0].mxu0
    %v4476 = vpop.f32.mrb[0].mxu0
    %4477 = vmatprep.mubr.f32.mxu0 0.0
    %4478 = vmatmul.mubr.f32.gmra.mrb[0].mxu0 %v4376
    %v4479 = vpop.f32.mrb[0].mxu0
    %v4480 = vpop.f32.mrb[0].mxu0
    %4481 = vmatprep.mubr.f32.mxu0 0.0
    %4482 = vmatmul.mubr.f32.gmra.mrb[0].mxu0 %v4377
    %v4483 = vpop.f32.mrb[0].mxu0
    %v4484 = vadd.f32 %v4402, %v4483
    %v4485 = vpop.f32.mrb[0].mxu0
    %4486 = vmatprep.mubr.f32.mxu0 0.0
    %4487 = vmatmul.mubr.f32.gmra.mrb[0].mxu0 %v4378
    %v4488 = vpop.f32.mrb[0].mxu0
    %v4489 = vpop.f32.mrb[0].mxu0
    %4490 = vmatprep.mubr.f32.mxu0 0.0
    %4491 = vmatmul.mubr.f32.gmra.mrb[0].mxu0 %v4379
    %v4492 = vpop.f32.mrb[0].mxu0
    %v4493 = vpop.f32.mrb[0].mxu0
    %4494 = vdwg.mxu0
    %v4495 = vadd.f32 %v4090, %v4471
    %v4496 = vadd.f32 %v4093, %v4484
    %v4497 = vsel %vm418, %v4495, 0.0
    %4498 = vadd.xlane.f32.xlu0 %v4497
    %v4499 = vpop.xlane.xlu0 %4498
    %v4500 = vsel %vm418, %v4496, 0.0
    %4501 = vadd.xlane.f32.xlu0 %v4500
    %v4502 = vpop.xlane.xlu0 %4501
    %v4503 = vmul.f32 %v4499, %v434
    %v4504 = vmul.f32 %v4502, %v434
    %v4505 = vsub.f32 %v4495, %v4503
    %v4506 = vsub.f32 %v4496, %v4504
    %v4507 = vmul.f32 %v4505, %v4505
    %v4508 = vmul.f32 %v4506, %v4506
    %v4509 = vsel %vm418, %v4507, 0.0
    %4510 = vadd.xlane.f32.xlu0 %v4509
    %v4511 = vpop.xlane.xlu0 %4510
    %v4512 = vsel %vm418, %v4508, 0.0
    %4513 = vadd.xlane.f32.xlu0 %v4512
    %v4514 = vpop.xlane.xlu0 %4513
    %v4515 = vmul.f32 %v4511, %v434
    %v4516 = vmul.f32 %v4514, %v434
    %v4517 = vadd.f32 %v4515, 1e-06
    %v4518 = vadd.f32 %v4516, 1e-06
    %v4519 = vrsqrt.pop %v4517
    %v4520 = vrsqrt.pop %v4518
    %v4521 = vmul.f32 %v4505, %v4519
    %v4522 = vmul.f32 %v4506, %v4520
    %s4523 = scalar_lea.vmem %s7, 4
    %v4524 = vld [vmem:[%s4523] sm:$0x1]
    %v4526 = vlaneseq
    %v4527 = vshrl.u32 %v4526, 7
    %v4528 = vsub.s32 0, %v4527
    %v4529 = vrot.slane %v4524, %v4528
    %v4531 = vmul.f32 %v4521, %v4529
    %v4532 = vmul.f32 %v4522, %v4529
    %s4533 = scalar_lea.vmem %s7, 5
    %v4534 = vld [vmem:[%s4533] sm:$0x1]
    %v4536 = vlaneseq
    %v4537 = vshrl.u32 %v4536, 7
    %v4538 = vsub.s32 0, %v4537
    %v4539 = vrot.slane %v4534, %v4538
    %v4541 = vadd.f32 %v4531, %v4539
    %v4542 = vadd.f32 %v4532, %v4539
    %v4543 = vld [vmem:[%s13] sm:$0xff]
    %v4544 = vmul.f32 %v4541, %v4543
    %v4545 = vmul.f32 %v4542, %v4543
    %v4546 = vsel %vm418, %v4544, 0.0
    %4547 = vadd.xlane.f32.xlu0 %v4546
    %v4548 = vpop.xlane.xlu0 %4547
    %v4549 = vsel %vm418, %v4545, 0.0
    %4550 = vadd.xlane.f32.xlu0 %v4549
    %v4551 = vpop.xlane.xlu0 %4550
    %v4552 = vld [vmem:[%s14] sm:$0x1]
    %v4554 = vlaneseq
    %v4555 = vshrl.u32 %v4554, 7
    %v4556 = vsub.s32 0, %v4555
    %v4557 = vrot.slane %v4552, %v4556
    %4559 = vbcast.lane.b32.xlu0 %v4557, 256
    %v4560 = vpop.permute.xlu0 %4559
    %v4562 = vadd.f32 %v4548, %v4560
    %v4563 = vadd.f32 %v4551, %v4560
    %s4564 = scalar_lea.vmem %s14, 3
    %v4565 = vld [vmem:[%s4564] sm:$0x1]
    %v4567 = vlaneseq
    %v4568 = vshrl.u32 %v4567, 7
    %v4569 = vsub.s32 0, %v4568
    %v4570 = vrot.slane %v4565, %v4569
    %4572 = vbcast.lane.b32.xlu0 %v4570, 256
    %v4573 = vpop.permute.xlu0 %4572
    %v4575 = vsub.f32 %v4562, %v4573
    %v4576 = vsub.f32 %v4563, %v4573
    %s4577 = scalar_lea.vmem %s14, 4
    %v4578 = vld [vmem:[%s4577] sm:$0x1]
    %v4579 = vadd.f32 %v4578, 1e-05
    %v4580 = vrsqrt.pop %v4579
    %v4582 = vlaneseq
    %v4583 = vshrl.u32 %v4582, 7
    %v4584 = vsub.s32 0, %v4583
    %v4585 = vrot.slane %v4580, %v4584
    %4587 = vbcast.lane.b32.xlu0 %v4585, 256
    %v4588 = vpop.permute.xlu0 %4587
    %v4590 = vmul.f32 %v4575, %v4588
    %v4591 = vmul.f32 %v4576, %v4588
    %s4592 = scalar_lea.vmem %s14, 1
    %v4593 = vld [vmem:[%s4592] sm:$0x1]
    %v4595 = vlaneseq
    %v4596 = vshrl.u32 %v4595, 7
    %v4597 = vsub.s32 0, %v4596
    %v4598 = vrot.slane %v4593, %v4597
    %4600 = vbcast.lane.b32.xlu0 %v4598, 256
    %v4601 = vpop.permute.xlu0 %4600
    %v4603 = vmul.f32 %v4590, %v4601
    %v4604 = vmul.f32 %v4591, %v4601
    %s4605 = scalar_lea.vmem %s14, 2
    %v4606 = vld [vmem:[%s4605] sm:$0x1]
    %v4608 = vlaneseq
    %v4609 = vshrl.u32 %v4608, 7
    %v4610 = vsub.s32 0, %v4609
    %v4611 = vrot.slane %v4606, %v4610
    %4613 = vbcast.lane.b32.xlu0 %v4611, 256
    %v4614 = vpop.permute.xlu0 %4613
    %v4616 = vadd.f32 %v4603, %v4614
    %v4617 = vadd.f32 %v4604, %v4614
    %4620 = vset.pattern.permute.xlu0 0
    %4621 = vperm.xlu0 %4620, %v4616
    %v4622 = vpop.permute.xlu0 %4621
    %4623 = vset.pattern.permute.xlu0 0
    %4624 = vperm.xlu0 %4623, %v4617
    %v4625 = vpop.permute.xlu0 %4624
    %v4626 = vlaneseq
    %v4627 = vand.u32 %v4626, 127
    %v4628 = vlaneseq
    %v4629 = vshrl.u32 %v4628, 7
    %v4630 = vsub.s32 %v4627, %v4629
    %v4631 = vrot.slane %v4622, %v4630
    %v4632 = vlaneseq
    %v4633 = vshrl.u32 %v4632, 7
    %v4634 = vsub.s32 %v4627, %v4633
    %v4635 = vrot.slane %v4625, %v4634
    %vm4636 = vcmask 1041409
    %v4637 = vsel %vm4636, %v4635, %v4631
    %vm4639 = vcmask 58368
    %4640 = vst.msk [vmem:[#allocation5] sm:$0x3] %vm4639, %v4637
    // Predicated region
    $region66: #{transformer_classifier_forward.1} parent=1 // pred_check
      _
    $region67: #{transformer_classifier_forward.1} parent=1 // pred_check_branch
      %4642 = sbr.rel (0) target = $region69
    $region68: #{transformer_classifier_forward.1} parent=1 // pred_region
      %s4644 = ssub.s32 32, 32
      %4645 = vsyncadd [#allocation3], %s4644
      %s4647 = sshll.u32 [#allocation5], 4
      %s4648 = int_to_ptr.vmem [resolvable:$true] %s4647
      %4650 = dma.vmem_to_hbm [thread:$0]  %s4648, 32, %s15, [#allocation3]
    $region69: #{transformer_classifier_forward.1} parent=1 // pred_fallthru
      _
    // Predicated region
    $region70: #{transformer_classifier_forward.1} parent=1 // pred_check
      _
    $region71: #{transformer_classifier_forward.1} parent=1 // pred_check_branch
      %4652 = sbr.rel (0) target = $region73
    $region72: #{transformer_classifier_forward.1} parent=1 // pred_region
      %4653 = dma.done [#allocation3], 32
    $region73: #{transformer_classifier_forward.1} parent=1 // pred_fallthru
      _
    %4654 = vsyncpa [#allocation3], 1
    %4655 = vsyncpa [#allocation4], 1

</llo_original>
